<compile_context>
chip_gen: v6e
topology: v6e:2x2x1
jax: 0.10.0
libtpu: 0.0.40
codegen_flags: <defaults>
</compile_context>

<pallas_src>
import functools
from dataclasses import dataclass

import numpy as np
import jax
import jax.numpy as jnp
from jax.experimental import pallas as pl
from jax.experimental.pallas import tpu as pltpu


# ----------------------------- hyper-parameters (the `args` of net.py) ------------
@dataclass(frozen=True)
class Args:
    # pre block
    n_pre_blk_filters: int = 32
    pre_blk_kernel_size: int = 3
    pre_blk_stride: int = 1
    pre_blk_padding: int = 1
    pre_blk_act: str = "relu"
    # res blocks
    n_res_blocks: int = 2
    n_res_filters: int = 32
    res_kernel_size: int = 3
    res_stride: int = 1
    res_padding: int = 1
    # policy head
    n_policy_filters: int = 4
    policy_kernel_size: int = 1
    policy_stride: int = 1
    policy_padding: int = 0
    policy_act: str = "relu"
    # value head
    n_value_filters: int = 4
    value_kernel_size: int = 1
    value_stride: int = 1
    value_padding: int = 0
    value_act1: str = "relu"
    value_act2: str = "relu"
    value_act_out: str = "tanh"
    dense_hidden_size: int = 32
    # board / loss
    border_size: int = 8
    c_policy: float = 1.0
    c_value: float = 1.0


ARGS = Args()
BN_EPS = 1e-5
MXU_DTYPE = jnp.bfloat16      # MXU operands; accumulation / epilogue stays f32


def _cdiv(a, b):
    return -(-a // b)


# ----------------------------- activations ----------------------------------------
def _apply_act(y, name):
    if name == "relu":
        return jnp.maximum(y, 0.0)
    if name == "tanh":
        return jnp.tanh(y)
    if name == "sigmoid":
        return jax.nn.sigmoid(y)
    if name == "selu":
        return jax.nn.selu(y)
    if name == "linear":
        return y
    raise ValueError(f"unknown activation {name}")


# ----------------------------- the single fused kernel ----------------------------
def _make_fused_kernel(*, R, BB, F, KK, deltas, NB, CP, CV, O_P, OUT_W, mxu_dtype, acts):
    """One grid step == BB packed boards (rows = BB*H*W, channels on lanes)."""
    pre_act, policy_act, v_act1, v_act2, v_act_out = acts
    # roll amounts implementing out[r] = y[(r + delta) mod R]  (pltpu.roll == jnp.roll)
    shifts = [int((-int(d)) % R) for d in deltas]

    def kernel(x_ref, premask_ref,
               w_pre_ref, s_pre_ref, w_res_ref, s_res_ref,
               w_hconv_ref, s_hconv_ref,
               wpcol_ref, bpd_ref, wvcol_ref, bvd1_ref, wvd2_ref, bvd2_ref,
               sel_ref, out_ref):

        premask = premask_ref[...]       # (R, KK*F) f32 : 0/1 pre-shift border masks (all convs)
        sel = sel_ref[...]               # (BB, R)   f32 : 0/1 board selector for head row-sums

        # ---- 3x3 conv = ONE matmul against the 9-tap packed weight, then 8 rolls + adds ------
        def conv3x3(a, wcat_bf, bn_shift, residual, act_name):
            a_bf = a.astype(mxu_dtype)                              # hoisted: one cast per conv
            y = jnp.dot(a_bf, wcat_bf, preferred_element_type=jnp.float32)   # (R, KK*F)
            z = y * premask                                         # zero out border leakage
            acc = None
            for k in range(KK):
                zk = z[:, k * F:(k + 1) * F]                        # (R, F) lane slice
                if shifts[k] != 0:
                    zk = pltpu.roll(zk, shifts[k], axis=0)          # XLU sublane rotate
                acc = zk if acc is None else acc + zk
            out = acc + bn_shift                                    # folded-BN shift (f32)
            if residual is not None:
                out = out + residual
            return _apply_act(out, act_name)

        # ---- head dense: channel-weighted columns (VPU, nch tiny) + per-board MXU row-sum ----
        def head_dense(h, wcol_ref, nch):
            u = h[:, 0:1] * wcol_ref[0]                             # (R, O)
            for c in range(1, nch):
                u = u + h[:, c:c + 1] * wcol_ref[c]
            return jnp.dot(sel, u, preferred_element_type=jnp.float32)   # (BB, O)

        a = x_ref[0]                                                # (R, Cin) f32

        # pre block: conv3x3 -> BN -> act
        a = conv3x3(a, w_pre_ref[...], s_pre_ref[...], None, pre_act)

        # res blocks: relu(conv-bn-relu -> conv-bn (+x))
        for blk in range(NB):
            h = conv3x3(a, w_res_ref[2 * blk], s_res_ref[2 * blk], None, "relu")
            a = conv3x3(h, w_res_ref[2 * blk + 1], s_res_ref[2 * blk + 1], a, "relu")

        # fused policy+value 1x1 convs (+ folded BN) in one matmul
        hc = jnp.dot(a.astype(mxu_dtype), w_hconv_ref[...],
                     preferred_element_type=jnp.float32) + s_hconv_ref[...]   # (R, CP+CV)
        hp = _apply_act(hc[:, :CP], policy_act)
        hv = _apply_act(hc[:, CP:CP + CV], v_act1)

        # policy head: Linear (logits, no activation)
        policy = head_dense(hp, wpcol_ref, CP) + bpd_ref[...]                 # (BB, O_P)

        # value head: Linear -> act -> Linear -> tanh
        h1 = _apply_act(head_dense(hv, wvcol_ref, CV) + bvd1_ref[...], v_act2)   # (BB, hidden)
        v = jnp.sum(h1 * wvd2_ref[...], axis=-1, keepdims=True) + bvd2_ref[...]
        v = _apply_act(v, v_act_out)                                          # (BB, 1)

        # single lane-dense (BB, OUT_W=128) store: [policy logits | value broadcast]
        out_ref[0] = jnp.concatenate(
            [policy, jnp.broadcast_to(v, (BB, OUT_W - O_P))], axis=-1)

    return kernel


# ----------------------------- host-side tap geometry & weight packing ------------
def _conv_taps(h, w, k, pad):
    """Tap order (kh-major, kw-minor), row-shift deltas and the pre-shift border masks."""
    ii, jj = np.meshgrid(np.arange(h), np.arange(w), indexing="ij")
    ii = ii.reshape(-1)
    jj = jj.reshape(-1)
    deltas, masks = [], []
    for kh in range(k):
        for kw_ in range(k):
            dr, dc = kh - pad, kw_ - pad
            delta = dr * w + dc
            valid = ((ii + dr >= 0) & (ii + dr < h) &
                     (jj + dc >= 0) & (jj + dc < w)).astype(np.float32)   # post-shift mask
            masks.append(np.roll(valid, delta))                           # pre-shift mask
            deltas.append(int(delta))
    return deltas, np.stack(masks, axis=0)            # (KK,), (KK, HW)


def _fold_conv_bn_cat(p, mxu_dtype):
    """3x3 conv: fold bias + eval BN scale into a (Cin, KK*Cout) packed weight + shift."""
    cout, cin, kh, kw = p["w"].shape
    scale = p["gamma"] / jnp.sqrt(p["var"] + BN_EPS)                     # (cout,)
    shift = (p["beta"] + (p["b"] - p["mean"]) * scale).reshape(1, cout).astype(jnp.float32)
    w = jnp.transpose(p["w"], (2, 3, 1, 0)) * scale                      # (kh, kw, cin, cout)
    wcat = jnp.transpose(w.reshape(kh * kw, cin, cout), (1, 0, 2))       # (cin, KK, cout)
    wcat = wcat.reshape(cin, kh * kw * cout).astype(mxu_dtype)
    return wcat, shift


def _fold_conv1x1_bn(p, mxu_dtype):
    cout, cin, _, _ = p["w"].shape
    scale = p["gamma"] / jnp.sqrt(p["var"] + BN_EPS)
    shift = (p["beta"] + (p["b"] - p["mean"]) * scale).reshape(1, cout).astype(jnp.float32)
    wmat = (p["w"].reshape(cout, cin).T * scale).astype(mxu_dtype)       # (cin, cout)
    return wmat, shift


def _dense_to_cols(p, n_ch, hw):
    """torch Linear weight (O, C*HW) [NCHW flatten] -> per-channel columns (C, HW, O)."""
    out_f = p["w"].shape[0]
    wcol = jnp.transpose(p["w"].reshape(out_f, n_ch, hw), (1, 2, 0)).astype(jnp.float32)
    return wcol, p["b"].reshape(1, out_f).astype(jnp.float32)


def prepare_kernel_params(tp, h, w):
    hw = h * w
    K = ARGS.res_kernel_size
    assert ARGS.pre_blk_kernel_size == K and ARGS.pre_blk_padding == ARGS.res_padding
    assert ARGS.pre_blk_stride == 1 and ARGS.res_stride == 1
    assert 2 * ARGS.res_padding == K - 1
    assert ARGS.policy_kernel_size == 1 and ARGS.value_kernel_size == 1
    assert ARGS.n_pre_blk_filters == ARGS.n_res_filters

    _, masks = _conv_taps(h, w, K, ARGS.res_padding)                     # (KK, hw)
    F = ARGS.n_res_filters
    premask_board = np.repeat(masks[:, :, None], F, axis=2)              # (KK, hw, F)
    premask_board = np.transpose(premask_board, (1, 0, 2)).reshape(hw, K * K * F)

    w_pre, s_pre = _fold_conv_bn_cat(tp["pre"], MXU_DTYPE)

    res_ws, res_ss = [], []
    for blk in tp["res_blocks"]:
        for name in ("conv1", "conv2"):
            wc, sc = _fold_conv_bn_cat(blk[name], MXU_DTYPE)
            res_ws.append(wc)
            res_ss.append(sc)
    w_res = jnp.stack(res_ws, axis=0)                 # (NB*2, F, KK*F)
    s_res = jnp.stack(res_ss, axis=0)                 # (NB*2, 1, F)

    wpc, spc = _fold_conv1x1_bn(tp["policy"]["conv"], MXU_DTYPE)
    wvc, svc = _fold_conv1x1_bn(tp["value"]["conv"], MXU_DTYPE)
    w_hconv = jnp.concatenate([wpc, wvc], axis=1)     # (F, CP+CV)
    s_hconv = jnp.concatenate([spc, svc], axis=1)     # (1, CP+CV)

    w_pdense, b_pdense = _dense_to_cols(tp["policy"]["dense"], ARGS.n_policy_filters, hw)
    w_vdense1, b_vdense1 = _dense_to_cols(tp["value"]["dense1"], ARGS.n_value_filters, hw)
    w_vdense2 = tp["value"]["dense2"]["w"].reshape(1, -1).astype(jnp.float32)
    b_vdense2 = tp["value"]["dense2"]["b"].reshape(1, 1).astype(jnp.float32)

    return dict(premask_board=jnp.asarray(premask_board, jnp.float32),
                w_pre=w_pre, s_pre=s_pre, w_res=w_res, s_res=s_res,
                w_hconv=w_hconv, s_hconv=s_hconv,
                w_pdense=w_pdense, b_pdense=b_pdense,
                w_vdense1=w_vdense1, b_vdense1=b_vdense1,
                w_vdense2=w_vdense2, b_vdense2=b_vdense2)


# ----------------------------- parameter init (PyTorch layouts) -------------------
def _conv_params_torch(key, cin, cout, k):
    ks = jax.random.split(key, 6)
    return dict(
        w=0.1 * jax.random.normal(ks[0], (cout, cin, k, k), jnp.float32),
        b=0.1 * jax.random.normal(ks[1], (cout,), jnp.float32),
        gamma=1.0 + 0.1 * jax.random.normal(ks[2], (cout,), jnp.float32),
        beta=0.1 * jax.random.normal(ks[3], (cout,), jnp.float32),
        mean=0.1 * jax.random.normal(ks[4], (cout,), jnp.float32),
        var=0.9 + 0.1 * jnp.abs(jax.random.normal(ks[5], (cout,), jnp.float32)),
    )


def _linear_params_torch(key, fin, fout):
    k1, k2 = jax.random.split(key)
    return dict(w=0.1 * jax.random.normal(k1, (fout, fin), jnp.float32),
                b=0.1 * jax.random.normal(k2, (fout,), jnp.float32))


def init_torch_style_params(key, pre_feature_dim, in_dense_size):
    keys = jax.random.split(key, 6 + 2 * ARGS.n_res_blocks)
    it = iter(keys)
    params = {"pre": _conv_params_torch(next(it), pre_feature_dim,
                                        ARGS.n_pre_blk_filters, ARGS.pre_blk_kernel_size)}
    blocks = []
    for _ in range(ARGS.n_res_blocks):
        c1 = _conv_params_torch(next(it), ARGS.n_pre_blk_filters,
                                ARGS.n_res_filters, ARGS.res_kernel_size)
        c2 = _conv_params_torch(next(it), ARGS.n_res_filters,
                                ARGS.n_pre_blk_filters, ARGS.res_kernel_size)
        blocks.append({"conv1": c1, "conv2": c2})
    params["res_blocks"] = blocks
    params["policy"] = {
        "conv": _conv_params_torch(next(it), ARGS.n_res_filters,
                                   ARGS.n_policy_filters, ARGS.policy_kernel_size),
        "dense": _linear_params_torch(next(it),
                                      ARGS.n_policy_filters * in_dense_size ** 2,
                                      ARGS.border_size ** 2),
    }
    params["value"] = {
        "conv": _conv_params_torch(next(it), ARGS.n_res_filters,
                                   ARGS.n_value_filters, ARGS.value_kernel_size),
        "dense1": _linear_params_torch(next(it),
                                       ARGS.n_value_filters * in_dense_size ** 2,
                                       ARGS.dense_hidden_size),
        "dense2": _linear_params_torch(next(it), ARGS.dense_hidden_size, 1),
    }
    return params


# ----------------------------- ResNetForState.forward -----------------------------
def resnet_for_state_forward(prep, x_nchw, trained=True,
                             target_policy=None, target_value=None):
    B, Cin, H, W = x_nchw.shape
    HW = H * W
    F = ARGS.n_res_filters
    K = ARGS.res_kernel_size
    KK = K * K
    NB = ARGS.n_res_blocks
    CP = ARGS.n_policy_filters
    CV = ARGS.n_value_filters
    O_P = ARGS.border_size ** 2
    OUT_W = _cdiv(O_P + 1, 128) * 128                  # lane-dense merged policy+value output

    # ---- batch packing: fill MXU M dim, but keep >=2 parallel steps for v7x's two TCs ----
    BB_MAX = 4
    num_steps = 1 if B <= 1 else max(2, _cdiv(B, BB_MAX))
    BB = _cdiv(B, num_steps)
    num_steps = _cdiv(B, BB)
    B_pad = num_steps * BB
    R = BB * HW

    deltas, _ = _conv_taps(H, W, K, ARGS.res_padding)   # static Python ints (trace-time numpy)

    # layout glue: NCHW -> (B, HW, Cin); rows are (h, w), channels on the lane dim
    x_rows = jnp.transpose(x_nchw.astype(jnp.float32), (0, 2, 3, 1)).reshape(B, HW, Cin)
    if B_pad > B:
        x_rows = jnp.concatenate(
            [x_rows, jnp.zeros((B_pad - B, HW, Cin), jnp.float32)], axis=0)
    x_k = x_rows.reshape(num_steps, R, Cin)

    # tile per-board constants to the packed-row layout (no-ops at BB=1)
    premask = jnp.tile(prep["premask_board"], (BB, 1))            # (R, KK*F)
    wpcol = jnp.tile(prep["w_pdense"], (1, BB, 1))                # (CP, R, O_P)
    wvcol = jnp.tile(prep["w_vdense1"], (1, BB, 1))               # (CV, R, hidden)
    sel = jnp.repeat(jnp.eye(BB, dtype=jnp.float32), HW, axis=1)  # (BB, R)

    kernel = _make_fused_kernel(
        R=R, BB=BB, F=F, KK=KK, deltas=tuple(deltas), NB=NB, CP=CP, CV=CV,
        O_P=O_P, OUT_W=OUT_W, mxu_dtype=MXU_DTYPE,
        acts=(ARGS.pre_blk_act, ARGS.policy_act, ARGS.value_act1,
              ARGS.value_act2, ARGS.value_act_out))

    weights = [premask, prep["w_pre"], prep["s_pre"], prep["w_res"], prep["s_res"],
               prep["w_hconv"], prep["s_hconv"],
               wpcol, prep["b_pdense"], wvcol, prep["b_vdense1"],
               prep["w_vdense2"], prep["b_vdense2"], sel]

    def _full_spec(arr):
        zeros = (0,) * arr.ndim
        return pl.BlockSpec(arr.shape, lambda i, _z=zeros: _z)

    in_specs = [pl.BlockSpec((1, R, Cin), lambda i: (i, 0, 0))]
    in_specs += [_full_spec(a) for a in weights]

    out = pl.pallas_call(
        kernel,
        out_shape=jax.ShapeDtypeStruct((num_steps, BB, OUT_W), jnp.float32),
        grid=(num_steps,),                               # BB packed boards per step
        in_specs=in_specs,
        out_specs=pl.BlockSpec((1, BB, OUT_W), lambda i: (i, 0, 0)),
        compiler_params=pltpu.CompilerParams(
            dimension_semantics=("parallel",),           # lets v7x shard steps over both TCs
            vmem_limit_bytes=max(4, 2 + 2 * BB) * 1024 * 1024),
    )(x_k, *weights)

    out2 = out.reshape(B_pad, OUT_W)[:B]
    pred_policy = out2[:, :O_P]
    pred_value = out2[:, O_P:O_P + 1]

    if trained:
        # F.cross_entropy (class-index targets) + F.mse_loss, in plain-JAX glue.
        logp = jax.nn.log_softmax(pred_policy, axis=-1)
        ce = -jnp.mean(jnp.take_along_axis(logp, target_policy[:, None], axis=-1))
        mse = jnp.mean((pred_value - target_value) ** 2)
        loss = ARGS.c_policy * ce + ARGS.c_value * mse
        return loss, pred_policy, pred_value
    return pred_policy, pred_value


# ----------------------------- main ------------------------------------------------
if __name__ == "__main__":
    B = 2
    pre_feature_dim = 4
    in_dense_size = 8   # spatial size (preserved by all convs with these args)

    key = jax.random.PRNGKey(0)
    k_par, k_x, k_tp, k_tv = jax.random.split(key, 4)

    tparams = init_torch_style_params(k_par, pre_feature_dim, in_dense_size)
    prep = prepare_kernel_params(tparams, in_dense_size, in_dense_size)

    x = jax.random.normal(k_x, (B, pre_feature_dim, in_dense_size, in_dense_size),
                          jnp.float32)                                   # NCHW like PyTorch
    target_policy = jax.random.randint(k_tp, (B,), 0, ARGS.border_size ** 2)
    target_value = jax.random.uniform(k_tv, (B, 1), jnp.float32, -1.0, 1.0)

    fwd_train = jax.jit(functools.partial(resnet_for_state_forward, trained=True))
    loss, pred_policy, pred_value = fwd_train(prep, x, target_policy=target_policy,
                                              target_value=target_value)
    jax.block_until_ready((loss, pred_policy, pred_value))

    assert pred_policy.shape == (B, ARGS.border_size ** 2)
    assert pred_value.shape == (B, 1)
    assert loss.shape == ()
    assert bool(jnp.all(jnp.isfinite(pred_policy))) and bool(jnp.isfinite(loss))

    # inference branch (trained=False), as used by policy_value_fn
    fwd_infer = jax.jit(functools.partial(resnet_for_state_forward, trained=False))
    pp, pv = fwd_infer(prep, x)
    jax.block_until_ready((pp, pv))
    assert bool(jnp.all(jnp.abs(pv) <= 1.0 + 1e-6))     # tanh range

    print("KERNEL_OK")
</pallas_src>

<mosaic_0001>
module attributes {stable_mosaic.version = 11 : i64} {
  func.func @kernel(%arg0: i32, %arg1: memref<1x64x4xf32, #tpu.memory_space<vmem>>, %arg2: memref<64x288xf32, #tpu.memory_space<vmem>>, %arg3: memref<4x288xbf16, #tpu.memory_space<vmem>>, %arg4: memref<1x32xf32, #tpu.memory_space<vmem>>, %arg5: memref<4x32x288xbf16, #tpu.memory_space<vmem>>, %arg6: memref<4x1x32xf32, #tpu.memory_space<vmem>>, %arg7: memref<32x8xbf16, #tpu.memory_space<vmem>>, %arg8: memref<1x8xf32, #tpu.memory_space<vmem>>, %arg9: memref<4x64x64xf32, #tpu.memory_space<vmem>>, %arg10: memref<1x64xf32, #tpu.memory_space<vmem>>, %arg11: memref<4x64x32xf32, #tpu.memory_space<vmem>>, %arg12: memref<1x32xf32, #tpu.memory_space<vmem>>, %arg13: memref<1x32xf32, #tpu.memory_space<vmem>>, %arg14: memref<1x1xf32, #tpu.memory_space<vmem>>, %arg15: memref<1x64xf32, #tpu.memory_space<vmem>>, %arg16: memref<1x1x128xf32, #tpu.memory_space<vmem>>) attributes {dimension_semantics = [#tpu.dimension_semantics<parallel>], iteration_bounds = array<i64: 2>, scalar_prefetch = 0 : i64, scratch_operands = 0 : i64, tpu.core_type = #tpu.core_type<tc>, window_params = [{transform_indices = @transform_0, window_bounds = array<i64: 1, 64, 4>}, {pipeline_mode = #tpu.pipeline_mode<synchronous>, transform_indices = @transform_1, window_bounds = array<i64: 64, 288>}, {pipeline_mode = #tpu.pipeline_mode<synchronous>, transform_indices = @transform_2, window_bounds = array<i64: 4, 288>}, {pipeline_mode = #tpu.pipeline_mode<synchronous>, transform_indices = @transform_3, window_bounds = array<i64: 1, 32>}, {pipeline_mode = #tpu.pipeline_mode<synchronous>, transform_indices = @transform_4, window_bounds = array<i64: 4, 32, 288>}, {pipeline_mode = #tpu.pipeline_mode<synchronous>, transform_indices = @transform_5, window_bounds = array<i64: 4, 1, 32>}, {pipeline_mode = #tpu.pipeline_mode<synchronous>, transform_indices = @transform_6, window_bounds = array<i64: 32, 8>}, {pipeline_mode = #tpu.pipeline_mode<synchronous>, transform_indices = @transform_7, window_bounds = array<i64: 1, 8>}, {pipeline_mode = #tpu.pipeline_mode<synchronous>, transform_indices = @transform_8, window_bounds = array<i64: 4, 64, 64>}, {pipeline_mode = #tpu.pipeline_mode<synchronous>, transform_indices = @transform_9, window_bounds = array<i64: 1, 64>}, {pipeline_mode = #tpu.pipeline_mode<synchronous>, transform_indices = @transform_10, window_bounds = array<i64: 4, 64, 32>}, {pipeline_mode = #tpu.pipeline_mode<synchronous>, transform_indices = @transform_11, window_bounds = array<i64: 1, 32>}, {pipeline_mode = #tpu.pipeline_mode<synchronous>, transform_indices = @transform_12, window_bounds = array<i64: 1, 32>}, {pipeline_mode = #tpu.pipeline_mode<synchronous>, transform_indices = @transform_13, window_bounds = array<i64: 1, 1>}, {pipeline_mode = #tpu.pipeline_mode<synchronous>, transform_indices = @transform_14, window_bounds = array<i64: 1, 64>}, {transform_indices = @transform_15, window_bounds = array<i64: 1, 1, 128>}]} {
    %c0 = arith.constant 0 : index
    %c0_0 = arith.constant 0 : index
    %0 = vector.load %arg2[%c0, %c0_0] : memref<64x288xf32, #tpu.memory_space<vmem>>, vector<64x288xf32>
    %c0_1 = arith.constant 0 : index
    %c0_2 = arith.constant 0 : index
    %1 = vector.load %arg15[%c0_1, %c0_2] : memref<1x64xf32, #tpu.memory_space<vmem>>, vector<1x64xf32>
    %c0_3 = arith.constant 0 : index
    %c0_4 = arith.constant 0 : index
    %c0_5 = arith.constant 0 : index
    %2 = vector.load %arg1[%c0_3, %c0_4, %c0_5] : memref<1x64x4xf32, #tpu.memory_space<vmem>>, vector<1x64x4xf32>
    %3 = vector.shape_cast %2 : vector<1x64x4xf32> to vector<64x4xf32>
    %c0_6 = arith.constant 0 : index
    %c0_7 = arith.constant 0 : index
    %4 = vector.load %arg3[%c0_6, %c0_7] : memref<4x288xbf16, #tpu.memory_space<vmem>>, vector<4x288xbf16>
    %c0_8 = arith.constant 0 : index
    %c0_9 = arith.constant 0 : index
    %5 = vector.load %arg4[%c0_8, %c0_9] : memref<1x32xf32, #tpu.memory_space<vmem>>, vector<1x32xf32>
    %6 = arith.truncf %3 : vector<64x4xf32> to vector<64x4xbf16>
    %cst = arith.constant dense<0.000000e+00> : vector<64x288xf32>
    %7 = tpu.matmul %6, %4, %cst {dimension_numbers = #tpu.dot_dimension_numbers<[1], [0], [0], [1], [0, 0, 1, 1], [], []>} : vector<64x4xbf16>, vector<4x288xbf16>, vector<64x288xf32> -> vector<64x288xf32>
    %8 = arith.mulf %7, %0 : vector<64x288xf32>
    %9 = vector.extract_strided_slice %8 {offsets = [0, 0], sizes = [64, 32], strides = [1, 1]} : vector<64x288xf32> to vector<64x32xf32>
    %c9_i32 = arith.constant 9 : i32
    %10 = tpu.dynamic_rotate %9 by %c9_i32 dim 0 : vector<64x32xf32>, i32 -> vector<64x32xf32>
    %11 = vector.extract_strided_slice %8 {offsets = [0, 32], sizes = [64, 32], strides = [1, 1]} : vector<64x288xf32> to vector<64x32xf32>
    %c8_i32 = arith.constant 8 : i32
    %12 = tpu.dynamic_rotate %11 by %c8_i32 dim 0 : vector<64x32xf32>, i32 -> vector<64x32xf32>
    %13 = arith.addf %10, %12 : vector<64x32xf32>
    %14 = vector.extract_strided_slice %8 {offsets = [0, 64], sizes = [64, 32], strides = [1, 1]} : vector<64x288xf32> to vector<64x32xf32>
    %c7_i32 = arith.constant 7 : i32
    %15 = tpu.dynamic_rotate %14 by %c7_i32 dim 0 : vector<64x32xf32>, i32 -> vector<64x32xf32>
    %16 = arith.addf %13, %15 : vector<64x32xf32>
    %17 = vector.extract_strided_slice %8 {offsets = [0, 96], sizes = [64, 32], strides = [1, 1]} : vector<64x288xf32> to vector<64x32xf32>
    %c1_i32 = arith.constant 1 : i32
    %18 = tpu.dynamic_rotate %17 by %c1_i32 dim 0 : vector<64x32xf32>, i32 -> vector<64x32xf32>
    %19 = arith.addf %16, %18 : vector<64x32xf32>
    %20 = vector.extract_strided_slice %8 {offsets = [0, 128], sizes = [64, 32], strides = [1, 1]} : vector<64x288xf32> to vector<64x32xf32>
    %21 = arith.addf %19, %20 : vector<64x32xf32>
    %22 = vector.extract_strided_slice %8 {offsets = [0, 160], sizes = [64, 32], strides = [1, 1]} : vector<64x288xf32> to vector<64x32xf32>
    %c63_i32 = arith.constant 63 : i32
    %23 = tpu.dynamic_rotate %22 by %c63_i32 dim 0 : vector<64x32xf32>, i32 -> vector<64x32xf32>
    %24 = arith.addf %21, %23 : vector<64x32xf32>
    %25 = vector.extract_strided_slice %8 {offsets = [0, 192], sizes = [64, 32], strides = [1, 1]} : vector<64x288xf32> to vector<64x32xf32>
    %c57_i32 = arith.constant 57 : i32
    %26 = tpu.dynamic_rotate %25 by %c57_i32 dim 0 : vector<64x32xf32>, i32 -> vector<64x32xf32>
    %27 = arith.addf %24, %26 : vector<64x32xf32>
    %28 = vector.extract_strided_slice %8 {offsets = [0, 224], sizes = [64, 32], strides = [1, 1]} : vector<64x288xf32> to vector<64x32xf32>
    %c56_i32 = arith.constant 56 : i32
    %29 = tpu.dynamic_rotate %28 by %c56_i32 dim 0 : vector<64x32xf32>, i32 -> vector<64x32xf32>
    %30 = arith.addf %27, %29 : vector<64x32xf32>
    %31 = vector.extract_strided_slice %8 {offsets = [0, 256], sizes = [64, 32], strides = [1, 1]} : vector<64x288xf32> to vector<64x32xf32>
    %c55_i32 = arith.constant 55 : i32
    %32 = tpu.dynamic_rotate %31 by %c55_i32 dim 0 : vector<64x32xf32>, i32 -> vector<64x32xf32>
    %33 = arith.addf %30, %32 : vector<64x32xf32>
    %34 = vector.broadcast %5 : vector<1x32xf32> to vector<64x32xf32>
    %35 = arith.addf %33, %34 : vector<64x32xf32>
    %cst_10 = arith.constant 0.000000e+00 : f32
    %36 = vector.broadcast %cst_10 : f32 to vector<64x32xf32>
    %37 = arith.maximumf %35, %36 : vector<64x32xf32>
    %c0_11 = arith.constant 0 : index
    %c0_12 = arith.constant 0 : index
    %c0_13 = arith.constant 0 : index
    %38 = vector.load %arg5[%c0_11, %c0_12, %c0_13] : memref<4x32x288xbf16, #tpu.memory_space<vmem>>, vector<1x32x288xbf16>
    %39 = vector.shape_cast %38 : vector<1x32x288xbf16> to vector<32x288xbf16>
    %c0_14 = arith.constant 0 : index
    %c0_15 = arith.constant 0 : index
    %c0_16 = arith.constant 0 : index
    %40 = vector.load %arg6[%c0_14, %c0_15, %c0_16] : memref<4x1x32xf32, #tpu.memory_space<vmem>>, vector<1x1x32xf32>
    %41 = vector.shape_cast %40 : vector<1x1x32xf32> to vector<1x32xf32>
    %42 = arith.truncf %37 : vector<64x32xf32> to vector<64x32xbf16>
    %cst_17 = arith.constant dense<0.000000e+00> : vector<64x288xf32>
    %43 = tpu.matmul %42, %39, %cst_17 {dimension_numbers = #tpu.dot_dimension_numbers<[1], [0], [0], [1], [0, 0, 1, 1], [], []>} : vector<64x32xbf16>, vector<32x288xbf16>, vector<64x288xf32> -> vector<64x288xf32>
    %44 = arith.mulf %43, %0 : vector<64x288xf32>
    %45 = vector.extract_strided_slice %44 {offsets = [0, 0], sizes = [64, 32], strides = [1, 1]} : vector<64x288xf32> to vector<64x32xf32>
    %c9_i32_18 = arith.constant 9 : i32
    %46 = tpu.dynamic_rotate %45 by %c9_i32_18 dim 0 : vector<64x32xf32>, i32 -> vector<64x32xf32>
    %47 = vector.extract_strided_slice %44 {offsets = [0, 32], sizes = [64, 32], strides = [1, 1]} : vector<64x288xf32> to vector<64x32xf32>
    %c8_i32_19 = arith.constant 8 : i32
    %48 = tpu.dynamic_rotate %47 by %c8_i32_19 dim 0 : vector<64x32xf32>, i32 -> vector<64x32xf32>
    %49 = arith.addf %46, %48 : vector<64x32xf32>
    %50 = vector.extract_strided_slice %44 {offsets = [0, 64], sizes = [64, 32], strides = [1, 1]} : vector<64x288xf32> to vector<64x32xf32>
    %c7_i32_20 = arith.constant 7 : i32
    %51 = tpu.dynamic_rotate %50 by %c7_i32_20 dim 0 : vector<64x32xf32>, i32 -> vector<64x32xf32>
    %52 = arith.addf %49, %51 : vector<64x32xf32>
    %53 = vector.extract_strided_slice %44 {offsets = [0, 96], sizes = [64, 32], strides = [1, 1]} : vector<64x288xf32> to vector<64x32xf32>
    %c1_i32_21 = arith.constant 1 : i32
    %54 = tpu.dynamic_rotate %53 by %c1_i32_21 dim 0 : vector<64x32xf32>, i32 -> vector<64x32xf32>
    %55 = arith.addf %52, %54 : vector<64x32xf32>
    %56 = vector.extract_strided_slice %44 {offsets = [0, 128], sizes = [64, 32], strides = [1, 1]} : vector<64x288xf32> to vector<64x32xf32>
    %57 = arith.addf %55, %56 : vector<64x32xf32>
    %58 = vector.extract_strided_slice %44 {offsets = [0, 160], sizes = [64, 32], strides = [1, 1]} : vector<64x288xf32> to vector<64x32xf32>
    %c63_i32_22 = arith.constant 63 : i32
    %59 = tpu.dynamic_rotate %58 by %c63_i32_22 dim 0 : vector<64x32xf32>, i32 -> vector<64x32xf32>
    %60 = arith.addf %57, %59 : vector<64x32xf32>
    %61 = vector.extract_strided_slice %44 {offsets = [0, 192], sizes = [64, 32], strides = [1, 1]} : vector<64x288xf32> to vector<64x32xf32>
    %c57_i32_23 = arith.constant 57 : i32
    %62 = tpu.dynamic_rotate %61 by %c57_i32_23 dim 0 : vector<64x32xf32>, i32 -> vector<64x32xf32>
    %63 = arith.addf %60, %62 : vector<64x32xf32>
    %64 = vector.extract_strided_slice %44 {offsets = [0, 224], sizes = [64, 32], strides = [1, 1]} : vector<64x288xf32> to vector<64x32xf32>
    %c56_i32_24 = arith.constant 56 : i32
    %65 = tpu.dynamic_rotate %64 by %c56_i32_24 dim 0 : vector<64x32xf32>, i32 -> vector<64x32xf32>
    %66 = arith.addf %63, %65 : vector<64x32xf32>
    %67 = vector.extract_strided_slice %44 {offsets = [0, 256], sizes = [64, 32], strides = [1, 1]} : vector<64x288xf32> to vector<64x32xf32>
    %c55_i32_25 = arith.constant 55 : i32
    %68 = tpu.dynamic_rotate %67 by %c55_i32_25 dim 0 : vector<64x32xf32>, i32 -> vector<64x32xf32>
    %69 = arith.addf %66, %68 : vector<64x32xf32>
    %70 = vector.broadcast %41 : vector<1x32xf32> to vector<64x32xf32>
    %71 = arith.addf %69, %70 : vector<64x32xf32>
    %cst_26 = arith.constant 0.000000e+00 : f32
    %72 = vector.broadcast %cst_26 : f32 to vector<64x32xf32>
    %73 = arith.maximumf %71, %72 : vector<64x32xf32>
    %c1 = arith.constant 1 : index
    %c0_27 = arith.constant 0 : index
    %c0_28 = arith.constant 0 : index
    %74 = vector.load %arg5[%c1, %c0_27, %c0_28] : memref<4x32x288xbf16, #tpu.memory_space<vmem>>, vector<1x32x288xbf16>
    %75 = vector.shape_cast %74 : vector<1x32x288xbf16> to vector<32x288xbf16>
    %c1_29 = arith.constant 1 : index
    %c0_30 = arith.constant 0 : index
    %c0_31 = arith.constant 0 : index
    %76 = vector.load %arg6[%c1_29, %c0_30, %c0_31] : memref<4x1x32xf32, #tpu.memory_space<vmem>>, vector<1x1x32xf32>
    %77 = vector.shape_cast %76 : vector<1x1x32xf32> to vector<1x32xf32>
    %78 = arith.truncf %73 : vector<64x32xf32> to vector<64x32xbf16>
    %cst_32 = arith.constant dense<0.000000e+00> : vector<64x288xf32>
    %79 = tpu.matmul %78, %75, %cst_32 {dimension_numbers = #tpu.dot_dimension_numbers<[1], [0], [0], [1], [0, 0, 1, 1], [], []>} : vector<64x32xbf16>, vector<32x288xbf16>, vector<64x288xf32> -> vector<64x288xf32>
    %80 = arith.mulf %79, %0 : vector<64x288xf32>
    %81 = vector.extract_strided_slice %80 {offsets = [0, 0], sizes = [64, 32], strides = [1, 1]} : vector<64x288xf32> to vector<64x32xf32>
    %c9_i32_33 = arith.constant 9 : i32
    %82 = tpu.dynamic_rotate %81 by %c9_i32_33 dim 0 : vector<64x32xf32>, i32 -> vector<64x32xf32>
    %83 = vector.extract_strided_slice %80 {offsets = [0, 32], sizes = [64, 32], strides = [1, 1]} : vector<64x288xf32> to vector<64x32xf32>
    %c8_i32_34 = arith.constant 8 : i32
    %84 = tpu.dynamic_rotate %83 by %c8_i32_34 dim 0 : vector<64x32xf32>, i32 -> vector<64x32xf32>
    %85 = arith.addf %82, %84 : vector<64x32xf32>
    %86 = vector.extract_strided_slice %80 {offsets = [0, 64], sizes = [64, 32], strides = [1, 1]} : vector<64x288xf32> to vector<64x32xf32>
    %c7_i32_35 = arith.constant 7 : i32
    %87 = tpu.dynamic_rotate %86 by %c7_i32_35 dim 0 : vector<64x32xf32>, i32 -> vector<64x32xf32>
    %88 = arith.addf %85, %87 : vector<64x32xf32>
    %89 = vector.extract_strided_slice %80 {offsets = [0, 96], sizes = [64, 32], strides = [1, 1]} : vector<64x288xf32> to vector<64x32xf32>
    %c1_i32_36 = arith.constant 1 : i32
    %90 = tpu.dynamic_rotate %89 by %c1_i32_36 dim 0 : vector<64x32xf32>, i32 -> vector<64x32xf32>
    %91 = arith.addf %88, %90 : vector<64x32xf32>
    %92 = vector.extract_strided_slice %80 {offsets = [0, 128], sizes = [64, 32], strides = [1, 1]} : vector<64x288xf32> to vector<64x32xf32>
    %93 = arith.addf %91, %92 : vector<64x32xf32>
    %94 = vector.extract_strided_slice %80 {offsets = [0, 160], sizes = [64, 32], strides = [1, 1]} : vector<64x288xf32> to vector<64x32xf32>
    %c63_i32_37 = arith.constant 63 : i32
    %95 = tpu.dynamic_rotate %94 by %c63_i32_37 dim 0 : vector<64x32xf32>, i32 -> vector<64x32xf32>
    %96 = arith.addf %93, %95 : vector<64x32xf32>
    %97 = vector.extract_strided_slice %80 {offsets = [0, 192], sizes = [64, 32], strides = [1, 1]} : vector<64x288xf32> to vector<64x32xf32>
    %c57_i32_38 = arith.constant 57 : i32
    %98 = tpu.dynamic_rotate %97 by %c57_i32_38 dim 0 : vector<64x32xf32>, i32 -> vector<64x32xf32>
    %99 = arith.addf %96, %98 : vector<64x32xf32>
    %100 = vector.extract_strided_slice %80 {offsets = [0, 224], sizes = [64, 32], strides = [1, 1]} : vector<64x288xf32> to vector<64x32xf32>
    %c56_i32_39 = arith.constant 56 : i32
    %101 = tpu.dynamic_rotate %100 by %c56_i32_39 dim 0 : vector<64x32xf32>, i32 -> vector<64x32xf32>
    %102 = arith.addf %99, %101 : vector<64x32xf32>
    %103 = vector.extract_strided_slice %80 {offsets = [0, 256], sizes = [64, 32], strides = [1, 1]} : vector<64x288xf32> to vector<64x32xf32>
    %c55_i32_40 = arith.constant 55 : i32
    %104 = tpu.dynamic_rotate %103 by %c55_i32_40 dim 0 : vector<64x32xf32>, i32 -> vector<64x32xf32>
    %105 = arith.addf %102, %104 : vector<64x32xf32>
    %106 = vector.broadcast %77 : vector<1x32xf32> to vector<64x32xf32>
    %107 = arith.addf %105, %106 : vector<64x32xf32>
    %108 = arith.addf %107, %37 : vector<64x32xf32>
    %cst_41 = arith.constant 0.000000e+00 : f32
    %109 = vector.broadcast %cst_41 : f32 to vector<64x32xf32>
    %110 = arith.maximumf %108, %109 : vector<64x32xf32>
    %c2 = arith.constant 2 : index
    %c0_42 = arith.constant 0 : index
    %c0_43 = arith.constant 0 : index
    %111 = vector.load %arg5[%c2, %c0_42, %c0_43] : memref<4x32x288xbf16, #tpu.memory_space<vmem>>, vector<1x32x288xbf16>
    %112 = vector.shape_cast %111 : vector<1x32x288xbf16> to vector<32x288xbf16>
    %c2_44 = arith.constant 2 : index
    %c0_45 = arith.constant 0 : index
    %c0_46 = arith.constant 0 : index
    %113 = vector.load %arg6[%c2_44, %c0_45, %c0_46] : memref<4x1x32xf32, #tpu.memory_space<vmem>>, vector<1x1x32xf32>
    %114 = vector.shape_cast %113 : vector<1x1x32xf32> to vector<1x32xf32>
    %115 = arith.truncf %110 : vector<64x32xf32> to vector<64x32xbf16>
    %cst_47 = arith.constant dense<0.000000e+00> : vector<64x288xf32>
    %116 = tpu.matmul %115, %112, %cst_47 {dimension_numbers = #tpu.dot_dimension_numbers<[1], [0], [0], [1], [0, 0, 1, 1], [], []>} : vector<64x32xbf16>, vector<32x288xbf16>, vector<64x288xf32> -> vector<64x288xf32>
    %117 = arith.mulf %116, %0 : vector<64x288xf32>
    %118 = vector.extract_strided_slice %117 {offsets = [0, 0], sizes = [64, 32], strides = [1, 1]} : vector<64x288xf32> to vector<64x32xf32>
    %c9_i32_48 = arith.constant 9 : i32
    %119 = tpu.dynamic_rotate %118 by %c9_i32_48 dim 0 : vector<64x32xf32>, i32 -> vector<64x32xf32>
    %120 = vector.extract_strided_slice %117 {offsets = [0, 32], sizes = [64, 32], strides = [1, 1]} : vector<64x288xf32> to vector<64x32xf32>
    %c8_i32_49 = arith.constant 8 : i32
    %121 = tpu.dynamic_rotate %120 by %c8_i32_49 dim 0 : vector<64x32xf32>, i32 -> vector<64x32xf32>
    %122 = arith.addf %119, %121 : vector<64x32xf32>
    %123 = vector.extract_strided_slice %117 {offsets = [0, 64], sizes = [64, 32], strides = [1, 1]} : vector<64x288xf32> to vector<64x32xf32>
    %c7_i32_50 = arith.constant 7 : i32
    %124 = tpu.dynamic_rotate %123 by %c7_i32_50 dim 0 : vector<64x32xf32>, i32 -> vector<64x32xf32>
    %125 = arith.addf %122, %124 : vector<64x32xf32>
    %126 = vector.extract_strided_slice %117 {offsets = [0, 96], sizes = [64, 32], strides = [1, 1]} : vector<64x288xf32> to vector<64x32xf32>
    %c1_i32_51 = arith.constant 1 : i32
    %127 = tpu.dynamic_rotate %126 by %c1_i32_51 dim 0 : vector<64x32xf32>, i32 -> vector<64x32xf32>
    %128 = arith.addf %125, %127 : vector<64x32xf32>
    %129 = vector.extract_strided_slice %117 {offsets = [0, 128], sizes = [64, 32], strides = [1, 1]} : vector<64x288xf32> to vector<64x32xf32>
    %130 = arith.addf %128, %129 : vector<64x32xf32>
    %131 = vector.extract_strided_slice %117 {offsets = [0, 160], sizes = [64, 32], strides = [1, 1]} : vector<64x288xf32> to vector<64x32xf32>
    %c63_i32_52 = arith.constant 63 : i32
    %132 = tpu.dynamic_rotate %131 by %c63_i32_52 dim 0 : vector<64x32xf32>, i32 -> vector<64x32xf32>
    %133 = arith.addf %130, %132 : vector<64x32xf32>
    %134 = vector.extract_strided_slice %117 {offsets = [0, 192], sizes = [64, 32], strides = [1, 1]} : vector<64x288xf32> to vector<64x32xf32>
    %c57_i32_53 = arith.constant 57 : i32
    %135 = tpu.dynamic_rotate %134 by %c57_i32_53 dim 0 : vector<64x32xf32>, i32 -> vector<64x32xf32>
    %136 = arith.addf %133, %135 : vector<64x32xf32>
    %137 = vector.extract_strided_slice %117 {offsets = [0, 224], sizes = [64, 32], strides = [1, 1]} : vector<64x288xf32> to vector<64x32xf32>
    %c56_i32_54 = arith.constant 56 : i32
    %138 = tpu.dynamic_rotate %137 by %c56_i32_54 dim 0 : vector<64x32xf32>, i32 -> vector<64x32xf32>
    %139 = arith.addf %136, %138 : vector<64x32xf32>
    %140 = vector.extract_strided_slice %117 {offsets = [0, 256], sizes = [64, 32], strides = [1, 1]} : vector<64x288xf32> to vector<64x32xf32>
    %c55_i32_55 = arith.constant 55 : i32
    %141 = tpu.dynamic_rotate %140 by %c55_i32_55 dim 0 : vector<64x32xf32>, i32 -> vector<64x32xf32>
    %142 = arith.addf %139, %141 : vector<64x32xf32>
    %143 = vector.broadcast %114 : vector<1x32xf32> to vector<64x32xf32>
    %144 = arith.addf %142, %143 : vector<64x32xf32>
    %cst_56 = arith.constant 0.000000e+00 : f32
    %145 = vector.broadcast %cst_56 : f32 to vector<64x32xf32>
    %146 = arith.maximumf %144, %145 : vector<64x32xf32>
    %c3 = arith.constant 3 : index
    %c0_57 = arith.constant 0 : index
    %c0_58 = arith.constant 0 : index
    %147 = vector.load %arg5[%c3, %c0_57, %c0_58] : memref<4x32x288xbf16, #tpu.memory_space<vmem>>, vector<1x32x288xbf16>
    %148 = vector.shape_cast %147 : vector<1x32x288xbf16> to vector<32x288xbf16>
    %c3_59 = arith.constant 3 : index
    %c0_60 = arith.constant 0 : index
    %c0_61 = arith.constant 0 : index
    %149 = vector.load %arg6[%c3_59, %c0_60, %c0_61] : memref<4x1x32xf32, #tpu.memory_space<vmem>>, vector<1x1x32xf32>
    %150 = vector.shape_cast %149 : vector<1x1x32xf32> to vector<1x32xf32>
    %151 = arith.truncf %146 : vector<64x32xf32> to vector<64x32xbf16>
    %cst_62 = arith.constant dense<0.000000e+00> : vector<64x288xf32>
    %152 = tpu.matmul %151, %148, %cst_62 {dimension_numbers = #tpu.dot_dimension_numbers<[1], [0], [0], [1], [0, 0, 1, 1], [], []>} : vector<64x32xbf16>, vector<32x288xbf16>, vector<64x288xf32> -> vector<64x288xf32>
    %153 = arith.mulf %152, %0 : vector<64x288xf32>
    %154 = vector.extract_strided_slice %153 {offsets = [0, 0], sizes = [64, 32], strides = [1, 1]} : vector<64x288xf32> to vector<64x32xf32>
    %c9_i32_63 = arith.constant 9 : i32
    %155 = tpu.dynamic_rotate %154 by %c9_i32_63 dim 0 : vector<64x32xf32>, i32 -> vector<64x32xf32>
    %156 = vector.extract_strided_slice %153 {offsets = [0, 32], sizes = [64, 32], strides = [1, 1]} : vector<64x288xf32> to vector<64x32xf32>
    %c8_i32_64 = arith.constant 8 : i32
    %157 = tpu.dynamic_rotate %156 by %c8_i32_64 dim 0 : vector<64x32xf32>, i32 -> vector<64x32xf32>
    %158 = arith.addf %155, %157 : vector<64x32xf32>
    %159 = vector.extract_strided_slice %153 {offsets = [0, 64], sizes = [64, 32], strides = [1, 1]} : vector<64x288xf32> to vector<64x32xf32>
    %c7_i32_65 = arith.constant 7 : i32
    %160 = tpu.dynamic_rotate %159 by %c7_i32_65 dim 0 : vector<64x32xf32>, i32 -> vector<64x32xf32>
    %161 = arith.addf %158, %160 : vector<64x32xf32>
    %162 = vector.extract_strided_slice %153 {offsets = [0, 96], sizes = [64, 32], strides = [1, 1]} : vector<64x288xf32> to vector<64x32xf32>
    %c1_i32_66 = arith.constant 1 : i32
    %163 = tpu.dynamic_rotate %162 by %c1_i32_66 dim 0 : vector<64x32xf32>, i32 -> vector<64x32xf32>
    %164 = arith.addf %161, %163 : vector<64x32xf32>
    %165 = vector.extract_strided_slice %153 {offsets = [0, 128], sizes = [64, 32], strides = [1, 1]} : vector<64x288xf32> to vector<64x32xf32>
    %166 = arith.addf %164, %165 : vector<64x32xf32>
    %167 = vector.extract_strided_slice %153 {offsets = [0, 160], sizes = [64, 32], strides = [1, 1]} : vector<64x288xf32> to vector<64x32xf32>
    %c63_i32_67 = arith.constant 63 : i32
    %168 = tpu.dynamic_rotate %167 by %c63_i32_67 dim 0 : vector<64x32xf32>, i32 -> vector<64x32xf32>
    %169 = arith.addf %166, %168 : vector<64x32xf32>
    %170 = vector.extract_strided_slice %153 {offsets = [0, 192], sizes = [64, 32], strides = [1, 1]} : vector<64x288xf32> to vector<64x32xf32>
    %c57_i32_68 = arith.constant 57 : i32
    %171 = tpu.dynamic_rotate %170 by %c57_i32_68 dim 0 : vector<64x32xf32>, i32 -> vector<64x32xf32>
    %172 = arith.addf %169, %171 : vector<64x32xf32>
    %173 = vector.extract_strided_slice %153 {offsets = [0, 224], sizes = [64, 32], strides = [1, 1]} : vector<64x288xf32> to vector<64x32xf32>
    %c56_i32_69 = arith.constant 56 : i32
    %174 = tpu.dynamic_rotate %173 by %c56_i32_69 dim 0 : vector<64x32xf32>, i32 -> vector<64x32xf32>
    %175 = arith.addf %172, %174 : vector<64x32xf32>
    %176 = vector.extract_strided_slice %153 {offsets = [0, 256], sizes = [64, 32], strides = [1, 1]} : vector<64x288xf32> to vector<64x32xf32>
    %c55_i32_70 = arith.constant 55 : i32
    %177 = tpu.dynamic_rotate %176 by %c55_i32_70 dim 0 : vector<64x32xf32>, i32 -> vector<64x32xf32>
    %178 = arith.addf %175, %177 : vector<64x32xf32>
    %179 = vector.broadcast %150 : vector<1x32xf32> to vector<64x32xf32>
    %180 = arith.addf %178, %179 : vector<64x32xf32>
    %181 = arith.addf %180, %110 : vector<64x32xf32>
    %cst_71 = arith.constant 0.000000e+00 : f32
    %182 = vector.broadcast %cst_71 : f32 to vector<64x32xf32>
    %183 = arith.maximumf %181, %182 : vector<64x32xf32>
    %184 = arith.truncf %183 : vector<64x32xf32> to vector<64x32xbf16>
    %c0_72 = arith.constant 0 : index
    %c0_73 = arith.constant 0 : index
    %185 = vector.load %arg7[%c0_72, %c0_73] : memref<32x8xbf16, #tpu.memory_space<vmem>>, vector<32x8xbf16>
    %cst_74 = arith.constant dense<0.000000e+00> : vector<64x8xf32>
    %186 = tpu.matmul %184, %185, %cst_74 {dimension_numbers = #tpu.dot_dimension_numbers<[1], [0], [0], [1], [0, 0, 1, 1], [], []>} : vector<64x32xbf16>, vector<32x8xbf16>, vector<64x8xf32> -> vector<64x8xf32>
    %c0_75 = arith.constant 0 : index
    %c0_76 = arith.constant 0 : index
    %187 = vector.load %arg8[%c0_75, %c0_76] : memref<1x8xf32, #tpu.memory_space<vmem>>, vector<1x8xf32>
    %188 = vector.broadcast %187 : vector<1x8xf32> to vector<64x8xf32>
    %189 = arith.addf %186, %188 : vector<64x8xf32>
    %190 = vector.extract_strided_slice %189 {offsets = [0, 0], sizes = [64, 4], strides = [1, 1]} : vector<64x8xf32> to vector<64x4xf32>
    %cst_77 = arith.constant 0.000000e+00 : f32
    %191 = vector.broadcast %cst_77 : f32 to vector<64x4xf32>
    %192 = arith.maximumf %190, %191 : vector<64x4xf32>
    %193 = vector.extract_strided_slice %189 {offsets = [0, 4], sizes = [64, 4], strides = [1, 1]} : vector<64x8xf32> to vector<64x4xf32>
    %cst_78 = arith.constant 0.000000e+00 : f32
    %194 = vector.broadcast %cst_78 : f32 to vector<64x4xf32>
    %195 = arith.maximumf %193, %194 : vector<64x4xf32>
    %196 = vector.extract_strided_slice %192 {offsets = [0, 0], sizes = [64, 1], strides = [1, 1]} : vector<64x4xf32> to vector<64x1xf32>
    %c0_79 = arith.constant 0 : index
    %c0_80 = arith.constant 0 : index
    %c0_81 = arith.constant 0 : index
    %197 = vector.load %arg9[%c0_79, %c0_80, %c0_81] : memref<4x64x64xf32, #tpu.memory_space<vmem>>, vector<1x64x64xf32>
    %198 = vector.shape_cast %197 : vector<1x64x64xf32> to vector<64x64xf32>
    %199 = vector.broadcast %196 : vector<64x1xf32> to vector<64x64xf32>
    %200 = arith.mulf %199, %198 : vector<64x64xf32>
    %201 = vector.extract_strided_slice %192 {offsets = [0, 1], sizes = [64, 1], strides = [1, 1]} : vector<64x4xf32> to vector<64x1xf32>
    %c1_82 = arith.constant 1 : index
    %c0_83 = arith.constant 0 : index
    %c0_84 = arith.constant 0 : index
    %202 = vector.load %arg9[%c1_82, %c0_83, %c0_84] : memref<4x64x64xf32, #tpu.memory_space<vmem>>, vector<1x64x64xf32>
    %203 = vector.shape_cast %202 : vector<1x64x64xf32> to vector<64x64xf32>
    %204 = vector.broadcast %201 : vector<64x1xf32> to vector<64x64xf32>
    %205 = arith.mulf %204, %203 : vector<64x64xf32>
    %206 = arith.addf %200, %205 : vector<64x64xf32>
    %207 = vector.extract_strided_slice %192 {offsets = [0, 2], sizes = [64, 1], strides = [1, 1]} : vector<64x4xf32> to vector<64x1xf32>
    %c2_85 = arith.constant 2 : index
    %c0_86 = arith.constant 0 : index
    %c0_87 = arith.constant 0 : index
    %208 = vector.load %arg9[%c2_85, %c0_86, %c0_87] : memref<4x64x64xf32, #tpu.memory_space<vmem>>, vector<1x64x64xf32>
    %209 = vector.shape_cast %208 : vector<1x64x64xf32> to vector<64x64xf32>
    %210 = vector.broadcast %207 : vector<64x1xf32> to vector<64x64xf32>
    %211 = arith.mulf %210, %209 : vector<64x64xf32>
    %212 = arith.addf %206, %211 : vector<64x64xf32>
    %213 = vector.extract_strided_slice %192 {offsets = [0, 3], sizes = [64, 1], strides = [1, 1]} : vector<64x4xf32> to vector<64x1xf32>
    %c3_88 = arith.constant 3 : index
    %c0_89 = arith.constant 0 : index
    %c0_90 = arith.constant 0 : index
    %214 = vector.load %arg9[%c3_88, %c0_89, %c0_90] : memref<4x64x64xf32, #tpu.memory_space<vmem>>, vector<1x64x64xf32>
    %215 = vector.shape_cast %214 : vector<1x64x64xf32> to vector<64x64xf32>
    %216 = vector.broadcast %213 : vector<64x1xf32> to vector<64x64xf32>
    %217 = arith.mulf %216, %215 : vector<64x64xf32>
    %218 = arith.addf %212, %217 : vector<64x64xf32>
    %cst_91 = arith.constant dense<0.000000e+00> : vector<1x64xf32>
    %219 = tpu.matmul %1, %218, %cst_91 {dimension_numbers = #tpu.dot_dimension_numbers<[1], [0], [0], [1], [0, 0, 1, 1], [], []>} : vector<1x64xf32>, vector<64x64xf32>, vector<1x64xf32> -> vector<1x64xf32>
    %c0_92 = arith.constant 0 : index
    %c0_93 = arith.constant 0 : index
    %220 = vector.load %arg10[%c0_92, %c0_93] : memref<1x64xf32, #tpu.memory_space<vmem>>, vector<1x64xf32>
    %221 = arith.addf %219, %220 : vector<1x64xf32>
    %222 = vector.extract_strided_slice %195 {offsets = [0, 0], sizes = [64, 1], strides = [1, 1]} : vector<64x4xf32> to vector<64x1xf32>
    %c0_94 = arith.constant 0 : index
    %c0_95 = arith.constant 0 : index
    %c0_96 = arith.constant 0 : index
    %223 = vector.load %arg11[%c0_94, %c0_95, %c0_96] : memref<4x64x32xf32, #tpu.memory_space<vmem>>, vector<1x64x32xf32>
    %224 = vector.shape_cast %223 : vector<1x64x32xf32> to vector<64x32xf32>
    %225 = vector.broadcast %222 : vector<64x1xf32> to vector<64x32xf32>
    %226 = arith.mulf %225, %224 : vector<64x32xf32>
    %227 = vector.extract_strided_slice %195 {offsets = [0, 1], sizes = [64, 1], strides = [1, 1]} : vector<64x4xf32> to vector<64x1xf32>
    %c1_97 = arith.constant 1 : index
    %c0_98 = arith.constant 0 : index
    %c0_99 = arith.constant 0 : index
    %228 = vector.load %arg11[%c1_97, %c0_98, %c0_99] : memref<4x64x32xf32, #tpu.memory_space<vmem>>, vector<1x64x32xf32>
    %229 = vector.shape_cast %228 : vector<1x64x32xf32> to vector<64x32xf32>
    %230 = vector.broadcast %227 : vector<64x1xf32> to vector<64x32xf32>
    %231 = arith.mulf %230, %229 : vector<64x32xf32>
    %232 = arith.addf %226, %231 : vector<64x32xf32>
    %233 = vector.extract_strided_slice %195 {offsets = [0, 2], sizes = [64, 1], strides = [1, 1]} : vector<64x4xf32> to vector<64x1xf32>
    %c2_100 = arith.constant 2 : index
    %c0_101 = arith.constant 0 : index
    %c0_102 = arith.constant 0 : index
    %234 = vector.load %arg11[%c2_100, %c0_101, %c0_102] : memref<4x64x32xf32, #tpu.memory_space<vmem>>, vector<1x64x32xf32>
    %235 = vector.shape_cast %234 : vector<1x64x32xf32> to vector<64x32xf32>
    %236 = vector.broadcast %233 : vector<64x1xf32> to vector<64x32xf32>
    %237 = arith.mulf %236, %235 : vector<64x32xf32>
    %238 = arith.addf %232, %237 : vector<64x32xf32>
    %239 = vector.extract_strided_slice %195 {offsets = [0, 3], sizes = [64, 1], strides = [1, 1]} : vector<64x4xf32> to vector<64x1xf32>
    %c3_103 = arith.constant 3 : index
    %c0_104 = arith.constant 0 : index
    %c0_105 = arith.constant 0 : index
    %240 = vector.load %arg11[%c3_103, %c0_104, %c0_105] : memref<4x64x32xf32, #tpu.memory_space<vmem>>, vector<1x64x32xf32>
    %241 = vector.shape_cast %240 : vector<1x64x32xf32> to vector<64x32xf32>
    %242 = vector.broadcast %239 : vector<64x1xf32> to vector<64x32xf32>
    %243 = arith.mulf %242, %241 : vector<64x32xf32>
    %244 = arith.addf %238, %243 : vector<64x32xf32>
    %cst_106 = arith.constant dense<0.000000e+00> : vector<1x32xf32>
    %245 = tpu.matmul %1, %244, %cst_106 {dimension_numbers = #tpu.dot_dimension_numbers<[1], [0], [0], [1], [0, 0, 1, 1], [], []>} : vector<1x64xf32>, vector<64x32xf32>, vector<1x32xf32> -> vector<1x32xf32>
    %c0_107 = arith.constant 0 : index
    %c0_108 = arith.constant 0 : index
    %246 = vector.load %arg12[%c0_107, %c0_108] : memref<1x32xf32, #tpu.memory_space<vmem>>, vector<1x32xf32>
    %247 = arith.addf %245, %246 : vector<1x32xf32>
    %cst_109 = arith.constant 0.000000e+00 : f32
    %248 = vector.broadcast %cst_109 : f32 to vector<1x32xf32>
    %249 = arith.maximumf %247, %248 : vector<1x32xf32>
    %c0_110 = arith.constant 0 : index
    %c0_111 = arith.constant 0 : index
    %250 = vector.load %arg13[%c0_110, %c0_111] : memref<1x32xf32, #tpu.memory_space<vmem>>, vector<1x32xf32>
    %251 = arith.mulf %249, %250 : vector<1x32xf32>
    %cst_112 = arith.constant dense<0.000000e+00> : vector<1xf32>
    %252 = vector.multi_reduction <add>, %251, %cst_112 [1] : vector<1x32xf32> to vector<1xf32>
    %253 = vector.shape_cast %252 : vector<1xf32> to vector<1x1xf32>
    %c0_113 = arith.constant 0 : index
    %c0_114 = arith.constant 0 : index
    %254 = vector.load %arg14[%c0_113, %c0_114] : memref<1x1xf32, #tpu.memory_space<vmem>>, vector<1x1xf32>
    %255 = arith.addf %253, %254 : vector<1x1xf32>
    %256 = math.tanh %255 : vector<1x1xf32>
    %257 = vector.shape_cast %256 : vector<1x1xf32> to vector<1x1xf32>
    %258 = vector.broadcast %257 : vector<1x1xf32> to vector<1x64xf32>
    %259 = tpu.concatenate %221, %258 in 1 : vector<1x64xf32>, vector<1x64xf32> -> vector<1x128xf32>
    %c0_115 = arith.constant 0 : index
    %c0_116 = arith.constant 0 : index
    %c0_117 = arith.constant 0 : index
    %260 = vector.load %arg16[%c0_115, %c0_116, %c0_117] : memref<1x1x128xf32, #tpu.memory_space<vmem>>, vector<1x1x128xf32>
    %261 = vector.shape_cast %260 : vector<1x1x128xf32> to vector<1x128xf32>
    %262 = vector.shape_cast %259 : vector<1x128xf32> to vector<1x1x128xf32>
    tpu.vector_store %arg16[%c0_115, %c0_116, %c0_117], %262 {strides = array<i32>} : memref<1x1x128xf32, #tpu.memory_space<vmem>>, vector<1x1x128xf32>,
    return
  }
  func.func @transform_0(%arg0: i32) -> (i32, i32, i32) {
    %c0_i32 = arith.constant 0 : i32
    %c0_i32_0 = arith.constant 0 : i32
    %c0_i32_1 = arith.constant 0 : i32
    return %arg0, %c0_i32, %c0_i32_0 : i32, i32, i32
  }
  func.func @transform_1(%arg0: i32) -> (i32, i32) {
    %c0_i32 = arith.constant 0 : i32
    %c0_i32_0 = arith.constant 0 : i32
    %c0_i32_1 = arith.constant 0 : i32
    return %c0_i32, %c0_i32_0 : i32, i32
  }
  func.func @transform_2(%arg0: i32) -> (i32, i32) {
    %c0_i32 = arith.constant 0 : i32
    %c0_i32_0 = arith.constant 0 : i32
    %c0_i32_1 = arith.constant 0 : i32
    return %c0_i32, %c0_i32_0 : i32, i32
  }
  func.func @transform_3(%arg0: i32) -> (i32, i32) {
    %c0_i32 = arith.constant 0 : i32
    %c0_i32_0 = arith.constant 0 : i32
    %c0_i32_1 = arith.constant 0 : i32
    return %c0_i32, %c0_i32_0 : i32, i32
  }
  func.func @transform_4(%arg0: i32) -> (i32, i32, i32) {
    %c0_i32 = arith.constant 0 : i32
    %c0_i32_0 = arith.constant 0 : i32
    %c0_i32_1 = arith.constant 0 : i32
    %c0_i32_2 = arith.constant 0 : i32
    return %c0_i32, %c0_i32_0, %c0_i32_1 : i32, i32, i32
  }
  func.func @transform_5(%arg0: i32) -> (i32, i32, i32) {
    %c0_i32 = arith.constant 0 : i32
    %c0_i32_0 = arith.constant 0 : i32
    %c0_i32_1 = arith.constant 0 : i32
    %c0_i32_2 = arith.constant 0 : i32
    return %c0_i32, %c0_i32_0, %c0_i32_1 : i32, i32, i32
  }
  func.func @transform_6(%arg0: i32) -> (i32, i32) {
    %c0_i32 = arith.constant 0 : i32
    %c0_i32_0 = arith.constant 0 : i32
    %c0_i32_1 = arith.constant 0 : i32
    return %c0_i32, %c0_i32_0 : i32, i32
  }
  func.func @transform_7(%arg0: i32) -> (i32, i32) {
    %c0_i32 = arith.constant 0 : i32
    %c0_i32_0 = arith.constant 0 : i32
    %c0_i32_1 = arith.constant 0 : i32
    return %c0_i32, %c0_i32_0 : i32, i32
  }
  func.func @transform_8(%arg0: i32) -> (i32, i32, i32) {
    %c0_i32 = arith.constant 0 : i32
    %c0_i32_0 = arith.constant 0 : i32
    %c0_i32_1 = arith.constant 0 : i32
    %c0_i32_2 = arith.constant 0 : i32
    return %c0_i32, %c0_i32_0, %c0_i32_1 : i32, i32, i32
  }
  func.func @transform_9(%arg0: i32) -> (i32, i32) {
    %c0_i32 = arith.constant 0 : i32
    %c0_i32_0 = arith.constant 0 : i32
    %c0_i32_1 = arith.constant 0 : i32
    return %c0_i32, %c0_i32_0 : i32, i32
  }
  func.func @transform_10(%arg0: i32) -> (i32, i32, i32) {
    %c0_i32 = arith.constant 0 : i32
    %c0_i32_0 = arith.constant 0 : i32
    %c0_i32_1 = arith.constant 0 : i32
    %c0_i32_2 = arith.constant 0 : i32
    return %c0_i32, %c0_i32_0, %c0_i32_1 : i32, i32, i32
  }
  func.func @transform_11(%arg0: i32) -> (i32, i32) {
    %c0_i32 = arith.constant 0 : i32
    %c0_i32_0 = arith.constant 0 : i32
    %c0_i32_1 = arith.constant 0 : i32
    return %c0_i32, %c0_i32_0 : i32, i32
  }
  func.func @transform_12(%arg0: i32) -> (i32, i32) {
    %c0_i32 = arith.constant 0 : i32
    %c0_i32_0 = arith.constant 0 : i32
    %c0_i32_1 = arith.constant 0 : i32
    return %c0_i32, %c0_i32_0 : i32, i32
  }
  func.func @transform_13(%arg0: i32) -> (i32, i32) {
    %c0_i32 = arith.constant 0 : i32
    %c0_i32_0 = arith.constant 0 : i32
    %c0_i32_1 = arith.constant 0 : i32
    return %c0_i32, %c0_i32_0 : i32, i32
  }
  func.func @transform_14(%arg0: i32) -> (i32, i32) {
    %c0_i32 = arith.constant 0 : i32
    %c0_i32_0 = arith.constant 0 : i32
    %c0_i32_1 = arith.constant 0 : i32
    return %c0_i32, %c0_i32_0 : i32, i32
  }
  func.func @transform_15(%arg0: i32) -> (i32, i32, i32) {
    %c0_i32 = arith.constant 0 : i32
    %c0_i32_0 = arith.constant 0 : i32
    %c0_i32_1 = arith.constant 0 : i32
    return %arg0, %c0_i32, %c0_i32_0 : i32, i32, i32
  }
}

</mosaic_0001>

<llo_original>
// kernel: resnet_for_state_forward.1
$region0: #{resnet_for_state_forward.1}
  #allocation0 [shape = 'u32[]', space=smem, size = 0x4, offset = 0x4, fixed_abs, tag = 'smem constant byte address 0x4 - core index']
  #allocation1 [shape = 'u32[144,128]{1,0:T(1,128)}', space=vmem, size = 0x12000, scoped, tag = 'internal scratch']
  #allocation2 [shape = 'f32[1,1]{1,0:T(1,128)S(1)}', space=vmem, size = 0x200, scoped, tag = 'scoped memory for resnet_for_state_forward.1']
  %s0 = inlined_call_operand.vmem [shape: f32[2,64,4], index: 0, kind: input, shape index: {}]
  %s1 = inlined_call_operand.vmem [shape: f32[64,288], index: 1, kind: input, shape index: {}]
  %s2 = inlined_call_operand.vmem [shape: bf16[4,288], index: 2, kind: input, shape index: {}]
  %s3 = inlined_call_operand.vmem [shape: f32[1,32], index: 3, kind: input, shape index: {}]
  %s4 = inlined_call_operand.hbm [shape: bf16[4,32,288], index: 4, kind: input, shape index: {}]
  %s5 = inlined_call_operand.vmem [shape: f32[4,1,32], index: 5, kind: input, shape index: {}]
  %s6 = inlined_call_operand.vmem [shape: bf16[32,8], index: 6, kind: input, shape index: {}]
  %s7 = inlined_call_operand.vmem [shape: f32[1,8], index: 7, kind: input, shape index: {}]
  %s8 = inlined_call_operand.vmem [shape: f32[4,64,64], index: 8, kind: input, shape index: {}]
  %s9 = inlined_call_operand.vmem [shape: f32[1,64], index: 9, kind: input, shape index: {}]
  %s10 = inlined_call_operand.vmem [shape: f32[4,64,32], index: 10, kind: input, shape index: {}]
  %s11 = inlined_call_operand.vmem [shape: f32[1,32], index: 11, kind: input, shape index: {}]
  %s12 = inlined_call_operand.vmem [shape: f32[1,32], index: 12, kind: input, shape index: {}]
  %s13 = inlined_call_operand.<no memory space> [shape: f32[1,1], index: 13, kind: input, shape index: {}]
  %s14 = inlined_call_operand.vmem [shape: f32[1,64], index: 14, kind: input, shape index: {}]
  %s15 = inlined_call_operand.vmem [shape: f32[2,1,128], index: 15, kind: output, shape index: {}]
  %s16 = sld [smem:[#allocation0]]
  $region97: #{resnet_for_state_forward.1} parent=0
    _
  %s18 = ssub.s32 1, %s16
  %s19 = scalar_select 0, %s18, %s16
  %v20 = vstv %s13
  %21 = vst [vmem:[#allocation2] sm:$0x1] %v20
  $region1: #{resnet_for_state_forward.1} parent=0
    #allocation3 [shape = 'u8[98304]{0}', space=vmem, size = 0x18000, scoped, tag = 'input window, operand 4, single buffered']
    #allocation4 [shape = 's32[2]{0}', space=sflag, size = 0x8, scoped, tag = 'scoped memory for resnet_for_state_forward.1']
    %22 = vsyncpa [#allocation4], 0
    loop: start=0, step=1, limit=4
    $region2: #{resnet_for_state_forward.1} parent=1 // loop_pre_header
      _
    $region3: #{resnet_for_state_forward.1} parent=1 // loop_header
      %s24 = sphi 0, %s28
      %p25 = scmp.ge.s32.totalorder %s24, 4
      %s34 = sphi 0, %s36
      %s37 = sphi 0, %s34
      %s38 = sphi 0, %s37
      %s54 = sphi 0, %s38
      %s58 = sphi 0, %s58
      %s60 = sphi 0, %s58
      %s61 = sphi 0, %s60
      %s75 = sphi 0, %s61
      %s79 = sphi 0, %s79
      %s81 = sphi 0, %s79
      %s82 = sphi 0, %s81
      %s96 = sphi 0, %s82
      %s100 = sphi 0, %s100
      %s102 = sphi 0, %s100
      %s103 = sphi 0, %s102
      %s117 = sphi 0, %s103
      %s121 = sphi 0, %s121
      %s123 = sphi 0, %s121
      %s124 = sphi 0, %s123
      %s138 = sphi 0, %s124
      %s142 = sphi 0, %s142
      %s144 = sphi 0, %s142
      %s145 = sphi 0, %s144
      %s159 = sphi 0, %s145
      %s163 = sphi 0, %s163
      %s165 = sphi 0, %s163
      %s166 = sphi 0, %s165
      %s180 = sphi 0, %s166
      %s184 = sphi 0, %s184
      %s186 = sphi 0, %s184
      %s187 = sphi 0, %s186
      %s201 = sphi 0, %s187
      %s205 = sphi 0, %s205
      %s207 = sphi 0, %s205
      %s208 = sphi 0, %s207
      %s222 = sphi 0, %s208
      %s226 = sphi 0, %s226
      %s228 = sphi 0, %s226
      %s229 = sphi 0, %s228
      %s243 = sphi 0, %s229
      %s247 = sphi 0, %s247
      %s249 = sphi 0, %s247
      %s250 = sphi 0, %s249
      %s264 = sphi 0, %s250
      %s268 = sphi 0, %s268
      %s270 = sphi 0, %s268
      %s271 = sphi 0, %s270
      %s285 = sphi 0, %s271
      %s289 = sphi 0, %s289
      %s291 = sphi 0, %s289
      %s292 = sphi 0, %s291
      %s306 = sphi 0, %s292
      %s310 = sphi 0, %s310
      %s312 = sphi 0, %s310
      %s313 = sphi 0, %s312
      %s327 = sphi 0, %s313
      %s331 = sphi 0, %s331
      %s333 = sphi 0, %s331
      %s334 = sphi 0, %s333
      %s348 = sphi 0, %s334
      %s354 = sphi 0, %s356
      %s357 = sphi 0, %s354
      %s358 = sphi 0, %s357
      %s374 = sphi 0, %s358
    $region4: #{resnet_for_state_forward.1} parent=1 // loop_header_branch
      %27 = sbr.rel (%p25) target = $region8
    $region5: #{resnet_for_state_forward.1} parent=1 // loop_body
      %s29 = ssub.s32 %s24, 1
      %s30 = ssub.s32 %s24, 2
      %s31 = sadd.s32 %s24, 1
      %s32 = ssub.s32 %s24, %s31
      %p33 = scmp.eq.s32.totalorder %s32, 0
      %s35 = sadd.s32 %s34, 1
      %s36 = scalar_select %p33, %s34, %s35
      %p39 = pneg %p33
      %p40 = scmp.eq.s32.totalorder %s24, 1
      %p41 = por %p39, %p40
      %p42 = scmp.ne.s32.totalorder %s34, %s37
      %p43 = scmp.eq.s32.totalorder %s24, 0
      %p44 = por %p42, %p43
      %p45 = scmp.ne.s32.totalorder %s34, %s37
      %p46 = scmp.eq.s32.totalorder %s29, 1
      %p47 = por %p45, %p46
      %p48 = scmp.ne.s32.totalorder %s37, %s38
      %p49 = scmp.eq.s32.totalorder %s29, 0
      %p50 = por %p48, %p49
      %p51 = scmp.ne.s32.totalorder %s37, %s38
      %p52 = scmp.eq.s32.totalorder %s30, 1
      %p53 = por %p51, %p52
      %p55 = scmp.ne.s32.totalorder %s38, %s54
      %p56 = scmp.eq.s32.totalorder %s30, 0
      %p57 = por %p55, %p56
      %s59 = sadd.s32 %s58, 1
      %p62 = scmp.eq.s32.totalorder %s24, 1
      %p63 = scmp.ne.s32.totalorder %s58, %s60
      %p64 = scmp.eq.s32.totalorder %s24, 0
      %p65 = por %p63, %p64
      %p66 = scmp.ne.s32.totalorder %s58, %s60
      %p67 = scmp.eq.s32.totalorder %s29, 1
      %p68 = por %p66, %p67
      %p69 = scmp.ne.s32.totalorder %s60, %s61
      %p70 = scmp.eq.s32.totalorder %s29, 0
      %p71 = por %p69, %p70
      %p72 = scmp.ne.s32.totalorder %s60, %s61
      %p73 = scmp.eq.s32.totalorder %s30, 1
      %p74 = por %p72, %p73
      %p76 = scmp.ne.s32.totalorder %s61, %s75
      %p77 = scmp.eq.s32.totalorder %s30, 0
      %p78 = por %p76, %p77
      %s80 = sadd.s32 %s79, 1
      %p83 = scmp.eq.s32.totalorder %s24, 1
      %p84 = scmp.ne.s32.totalorder %s79, %s81
      %p85 = scmp.eq.s32.totalorder %s24, 0
      %p86 = por %p84, %p85
      %p87 = scmp.ne.s32.totalorder %s79, %s81
      %p88 = scmp.eq.s32.totalorder %s29, 1
      %p89 = por %p87, %p88
      %p90 = scmp.ne.s32.totalorder %s81, %s82
      %p91 = scmp.eq.s32.totalorder %s29, 0
      %p92 = por %p90, %p91
      %p93 = scmp.ne.s32.totalorder %s81, %s82
      %p94 = scmp.eq.s32.totalorder %s30, 1
      %p95 = por %p93, %p94
      %p97 = scmp.ne.s32.totalorder %s82, %s96
      %p98 = scmp.eq.s32.totalorder %s30, 0
      %p99 = por %p97, %p98
      %s101 = sadd.s32 %s100, 1
      %p104 = scmp.eq.s32.totalorder %s24, 1
      %p105 = scmp.ne.s32.totalorder %s100, %s102
      %p106 = scmp.eq.s32.totalorder %s24, 0
      %p107 = por %p105, %p106
      %p108 = scmp.ne.s32.totalorder %s100, %s102
      %p109 = scmp.eq.s32.totalorder %s29, 1
      %p110 = por %p108, %p109
      %p111 = scmp.ne.s32.totalorder %s102, %s103
      %p112 = scmp.eq.s32.totalorder %s29, 0
      %p113 = por %p111, %p112
      %p114 = scmp.ne.s32.totalorder %s102, %s103
      %p115 = scmp.eq.s32.totalorder %s30, 1
      %p116 = por %p114, %p115
      %p118 = scmp.ne.s32.totalorder %s103, %s117
      %p119 = scmp.eq.s32.totalorder %s30, 0
      %p120 = por %p118, %p119
      %s122 = sadd.s32 %s121, 1
      %p125 = scmp.eq.s32.totalorder %s24, 1
      %p126 = scmp.ne.s32.totalorder %s121, %s123
      %p127 = scmp.eq.s32.totalorder %s24, 0
      %p128 = por %p126, %p127
      %p129 = scmp.ne.s32.totalorder %s121, %s123
      %p130 = scmp.eq.s32.totalorder %s29, 1
      %p131 = por %p129, %p130
      %p132 = scmp.ne.s32.totalorder %s123, %s124
      %p133 = scmp.eq.s32.totalorder %s29, 0
      %p134 = por %p132, %p133
      %p135 = scmp.ne.s32.totalorder %s123, %s124
      %p136 = scmp.eq.s32.totalorder %s30, 1
      %p137 = por %p135, %p136
      %p139 = scmp.ne.s32.totalorder %s124, %s138
      %p140 = scmp.eq.s32.totalorder %s30, 0
      %p141 = por %p139, %p140
      %s143 = sadd.s32 %s142, 1
      %p146 = scmp.eq.s32.totalorder %s24, 1
      %p147 = scmp.ne.s32.totalorder %s142, %s144
      %p148 = scmp.eq.s32.totalorder %s24, 0
      %p149 = por %p147, %p148
      %p150 = scmp.ne.s32.totalorder %s142, %s144
      %p151 = scmp.eq.s32.totalorder %s29, 1
      %p152 = por %p150, %p151
      %p153 = scmp.ne.s32.totalorder %s144, %s145
      %p154 = scmp.eq.s32.totalorder %s29, 0
      %p155 = por %p153, %p154
      %p156 = scmp.ne.s32.totalorder %s144, %s145
      %p157 = scmp.eq.s32.totalorder %s30, 1
      %p158 = por %p156, %p157
      %p160 = scmp.ne.s32.totalorder %s145, %s159
      %p161 = scmp.eq.s32.totalorder %s30, 0
      %p162 = por %p160, %p161
      %s164 = sadd.s32 %s163, 1
      %p167 = scmp.eq.s32.totalorder %s24, 1
      %p168 = scmp.ne.s32.totalorder %s163, %s165
      %p169 = scmp.eq.s32.totalorder %s24, 0
      %p170 = por %p168, %p169
      %p171 = scmp.ne.s32.totalorder %s163, %s165
      %p172 = scmp.eq.s32.totalorder %s29, 1
      %p173 = por %p171, %p172
      %p174 = scmp.ne.s32.totalorder %s165, %s166
      %p175 = scmp.eq.s32.totalorder %s29, 0
      %p176 = por %p174, %p175
      %p177 = scmp.ne.s32.totalorder %s165, %s166
      %p178 = scmp.eq.s32.totalorder %s30, 1
      %p179 = por %p177, %p178
      %p181 = scmp.ne.s32.totalorder %s166, %s180
      %p182 = scmp.eq.s32.totalorder %s30, 0
      %p183 = por %p181, %p182
      %s185 = sadd.s32 %s184, 1
      %p188 = scmp.eq.s32.totalorder %s24, 1
      %p189 = scmp.ne.s32.totalorder %s184, %s186
      %p190 = scmp.eq.s32.totalorder %s24, 0
      %p191 = por %p189, %p190
      %p192 = scmp.ne.s32.totalorder %s184, %s186
      %p193 = scmp.eq.s32.totalorder %s29, 1
      %p194 = por %p192, %p193
      %p195 = scmp.ne.s32.totalorder %s186, %s187
      %p196 = scmp.eq.s32.totalorder %s29, 0
      %p197 = por %p195, %p196
      %p198 = scmp.ne.s32.totalorder %s186, %s187
      %p199 = scmp.eq.s32.totalorder %s30, 1
      %p200 = por %p198, %p199
      %p202 = scmp.ne.s32.totalorder %s187, %s201
      %p203 = scmp.eq.s32.totalorder %s30, 0
      %p204 = por %p202, %p203
      %s206 = sadd.s32 %s205, 1
      %p209 = scmp.eq.s32.totalorder %s24, 1
      %p210 = scmp.ne.s32.totalorder %s205, %s207
      %p211 = scmp.eq.s32.totalorder %s24, 0
      %p212 = por %p210, %p211
      %p213 = scmp.ne.s32.totalorder %s205, %s207
      %p214 = scmp.eq.s32.totalorder %s29, 1
      %p215 = por %p213, %p214
      %p216 = scmp.ne.s32.totalorder %s207, %s208
      %p217 = scmp.eq.s32.totalorder %s29, 0
      %p218 = por %p216, %p217
      %p219 = scmp.ne.s32.totalorder %s207, %s208
      %p220 = scmp.eq.s32.totalorder %s30, 1
      %p221 = por %p219, %p220
      %p223 = scmp.ne.s32.totalorder %s208, %s222
      %p224 = scmp.eq.s32.totalorder %s30, 0
      %p225 = por %p223, %p224
      %s227 = sadd.s32 %s226, 1
      %p230 = scmp.eq.s32.totalorder %s24, 1
      %p231 = scmp.ne.s32.totalorder %s226, %s228
      %p232 = scmp.eq.s32.totalorder %s24, 0
      %p233 = por %p231, %p232
      %p234 = scmp.ne.s32.totalorder %s226, %s228
      %p235 = scmp.eq.s32.totalorder %s29, 1
      %p236 = por %p234, %p235
      %p237 = scmp.ne.s32.totalorder %s228, %s229
      %p238 = scmp.eq.s32.totalorder %s29, 0
      %p239 = por %p237, %p238
      %p240 = scmp.ne.s32.totalorder %s228, %s229
      %p241 = scmp.eq.s32.totalorder %s30, 1
      %p242 = por %p240, %p241
      %p244 = scmp.ne.s32.totalorder %s229, %s243
      %p245 = scmp.eq.s32.totalorder %s30, 0
      %p246 = por %p244, %p245
      %s248 = sadd.s32 %s247, 1
      %p251 = scmp.eq.s32.totalorder %s24, 1
      %p252 = scmp.ne.s32.totalorder %s247, %s249
      %p253 = scmp.eq.s32.totalorder %s24, 0
      %p254 = por %p252, %p253
      %p255 = scmp.ne.s32.totalorder %s247, %s249
      %p256 = scmp.eq.s32.totalorder %s29, 1
      %p257 = por %p255, %p256
      %p258 = scmp.ne.s32.totalorder %s249, %s250
      %p259 = scmp.eq.s32.totalorder %s29, 0
      %p260 = por %p258, %p259
      %p261 = scmp.ne.s32.totalorder %s249, %s250
      %p262 = scmp.eq.s32.totalorder %s30, 1
      %p263 = por %p261, %p262
      %p265 = scmp.ne.s32.totalorder %s250, %s264
      %p266 = scmp.eq.s32.totalorder %s30, 0
      %p267 = por %p265, %p266
      %s269 = sadd.s32 %s268, 1
      %p272 = scmp.eq.s32.totalorder %s24, 1
      %p273 = scmp.ne.s32.totalorder %s268, %s270
      %p274 = scmp.eq.s32.totalorder %s24, 0
      %p275 = por %p273, %p274
      %p276 = scmp.ne.s32.totalorder %s268, %s270
      %p277 = scmp.eq.s32.totalorder %s29, 1
      %p278 = por %p276, %p277
      %p279 = scmp.ne.s32.totalorder %s270, %s271
      %p280 = scmp.eq.s32.totalorder %s29, 0
      %p281 = por %p279, %p280
      %p282 = scmp.ne.s32.totalorder %s270, %s271
      %p283 = scmp.eq.s32.totalorder %s30, 1
      %p284 = por %p282, %p283
      %p286 = scmp.ne.s32.totalorder %s271, %s285
      %p287 = scmp.eq.s32.totalorder %s30, 0
      %p288 = por %p286, %p287
      %s290 = sadd.s32 %s289, 1
      %p293 = scmp.eq.s32.totalorder %s24, 1
      %p294 = scmp.ne.s32.totalorder %s289, %s291
      %p295 = scmp.eq.s32.totalorder %s24, 0
      %p296 = por %p294, %p295
      %p297 = scmp.ne.s32.totalorder %s289, %s291
      %p298 = scmp.eq.s32.totalorder %s29, 1
      %p299 = por %p297, %p298
      %p300 = scmp.ne.s32.totalorder %s291, %s292
      %p301 = scmp.eq.s32.totalorder %s29, 0
      %p302 = por %p300, %p301
      %p303 = scmp.ne.s32.totalorder %s291, %s292
      %p304 = scmp.eq.s32.totalorder %s30, 1
      %p305 = por %p303, %p304
      %p307 = scmp.ne.s32.totalorder %s292, %s306
      %p308 = scmp.eq.s32.totalorder %s30, 0
      %p309 = por %p307, %p308
      %s311 = sadd.s32 %s310, 1
      %p314 = scmp.eq.s32.totalorder %s24, 1
      %p315 = scmp.ne.s32.totalorder %s310, %s312
      %p316 = scmp.eq.s32.totalorder %s24, 0
      %p317 = por %p315, %p316
      %p318 = scmp.ne.s32.totalorder %s310, %s312
      %p319 = scmp.eq.s32.totalorder %s29, 1
      %p320 = por %p318, %p319
      %p321 = scmp.ne.s32.totalorder %s312, %s313
      %p322 = scmp.eq.s32.totalorder %s29, 0
      %p323 = por %p321, %p322
      %p324 = scmp.ne.s32.totalorder %s312, %s313
      %p325 = scmp.eq.s32.totalorder %s30, 1
      %p326 = por %p324, %p325
      %p328 = scmp.ne.s32.totalorder %s313, %s327
      %p329 = scmp.eq.s32.totalorder %s30, 0
      %p330 = por %p328, %p329
      %s332 = sadd.s32 %s331, 1
      %p335 = scmp.eq.s32.totalorder %s24, 1
      %p336 = scmp.ne.s32.totalorder %s331, %s333
      %p337 = scmp.eq.s32.totalorder %s24, 0
      %p338 = por %p336, %p337
      %p339 = scmp.ne.s32.totalorder %s331, %s333
      %p340 = scmp.eq.s32.totalorder %s29, 1
      %p341 = por %p339, %p340
      %p342 = scmp.ne.s32.totalorder %s333, %s334
      %p343 = scmp.eq.s32.totalorder %s29, 0
      %p344 = por %p342, %p343
      %p345 = scmp.ne.s32.totalorder %s333, %s334
      %p346 = scmp.eq.s32.totalorder %s30, 1
      %p347 = por %p345, %p346
      %p349 = scmp.ne.s32.totalorder %s334, %s348
      %p350 = scmp.eq.s32.totalorder %s30, 0
      %p351 = por %p349, %p350
      %s352 = ssub.s32 %s24, %s31
      %p353 = scmp.eq.s32.totalorder %s352, 0
      %s355 = sadd.s32 %s354, 1
      %s356 = scalar_select %p353, %s354, %s355
      %p359 = pneg %p353
      %p360 = scmp.eq.s32.totalorder %s24, 1
      %p361 = por %p359, %p360
      %p362 = scmp.ne.s32.totalorder %s354, %s357
      %p363 = scmp.eq.s32.totalorder %s24, 0
      %p364 = por %p362, %p363
      %p365 = scmp.ne.s32.totalorder %s354, %s357
      %p366 = scmp.eq.s32.totalorder %s29, 1
      %p367 = por %p365, %p366
      %p368 = scmp.ne.s32.totalorder %s357, %s358
      %p369 = scmp.eq.s32.totalorder %s29, 0
      %p370 = por %p368, %p369
      %p371 = scmp.ne.s32.totalorder %s357, %s358
      %p372 = scmp.eq.s32.totalorder %s30, 1
      %p373 = por %p371, %p372
      %p375 = scmp.ne.s32.totalorder %s358, %s374
      %p376 = scmp.eq.s32.totalorder %s30, 0
      %p377 = por %p375, %p376
      %p378 = scmp.le.s32.totalorder 1, %s24
      %p379 = scmp.lt.s32.totalorder %s24, 3
      %p380 = pnand %p378, %p379
      %p381 = pneg %p380
      // Predicated region
      $region9: #{resnet_for_state_forward.1} parent=5 // pred_check
        _
      $region10: #{resnet_for_state_forward.1} parent=5 // pred_check_branch
        %383 = sbr.rel (%p380) target = $region12
      $region11: #{resnet_for_state_forward.1} parent=5 // pred_region
        %s384 = ssub.s32 %s24, 1
        // Predicated region
        $region13: #{resnet_for_state_forward.1} parent=11 // pred_check
          %p385 = pneg %p71
        $region14: #{resnet_for_state_forward.1} parent=11 // pred_check_branch
          %387 = sbr.rel (%p385) target = $region16
        $region15: #{resnet_for_state_forward.1} parent=11 // pred_region
          _
        $region16: #{resnet_for_state_forward.1} parent=11 // pred_fallthru
          _
        // Predicated region
        $region17: #{resnet_for_state_forward.1} parent=11 // pred_check
          %p388 = pneg %p92
        $region18: #{resnet_for_state_forward.1} parent=11 // pred_check_branch
          %390 = sbr.rel (%p388) target = $region20
        $region19: #{resnet_for_state_forward.1} parent=11 // pred_region
          _
        $region20: #{resnet_for_state_forward.1} parent=11 // pred_fallthru
          _
        // Predicated region
        $region21: #{resnet_for_state_forward.1} parent=11 // pred_check
          %p391 = pneg %p113
        $region22: #{resnet_for_state_forward.1} parent=11 // pred_check_branch
          %393 = sbr.rel (%p391) target = $region24
        $region23: #{resnet_for_state_forward.1} parent=11 // pred_region
          _
        $region24: #{resnet_for_state_forward.1} parent=11 // pred_fallthru
          _
        // Predicated region
        $region25: #{resnet_for_state_forward.1} parent=11 // pred_check
          %p394 = pneg %p134
        $region26: #{resnet_for_state_forward.1} parent=11 // pred_check_branch
          %396 = sbr.rel (%p394) target = $region28
        $region27: #{resnet_for_state_forward.1} parent=11 // pred_region
          %s398 = ssub.s32 3072, 3072
          %399 = vsyncadd [#allocation4], %s398
          %s400 = sshll.u32 [#allocation3], 4
          %s401 = int_to_ptr.vmem [resolvable:$true] %s400
          %406 = dma.hbm_to_vmem [thread:$0]  %s4, 3072, %s401, [#allocation4], 192, 192, 12
        $region28: #{resnet_for_state_forward.1} parent=11 // pred_fallthru
          _
        // Predicated region
        $region29: #{resnet_for_state_forward.1} parent=11 // pred_check
          %p407 = pneg %p155
        $region30: #{resnet_for_state_forward.1} parent=11 // pred_check_branch
          %409 = sbr.rel (%p407) target = $region32
        $region31: #{resnet_for_state_forward.1} parent=11 // pred_region
          _
        $region32: #{resnet_for_state_forward.1} parent=11 // pred_fallthru
          _
        // Predicated region
        $region33: #{resnet_for_state_forward.1} parent=11 // pred_check
          %p410 = pneg %p176
        $region34: #{resnet_for_state_forward.1} parent=11 // pred_check_branch
          %412 = sbr.rel (%p410) target = $region36
        $region35: #{resnet_for_state_forward.1} parent=11 // pred_region
          _
        $region36: #{resnet_for_state_forward.1} parent=11 // pred_fallthru
          _
        // Predicated region
        $region37: #{resnet_for_state_forward.1} parent=11 // pred_check
          %p413 = pneg %p197
        $region38: #{resnet_for_state_forward.1} parent=11 // pred_check_branch
          %415 = sbr.rel (%p413) target = $region40
        $region39: #{resnet_for_state_forward.1} parent=11 // pred_region
          _
        $region40: #{resnet_for_state_forward.1} parent=11 // pred_fallthru
          _
        // Predicated region
        $region41: #{resnet_for_state_forward.1} parent=11 // pred_check
          %p416 = pneg %p218
        $region42: #{resnet_for_state_forward.1} parent=11 // pred_check_branch
          %418 = sbr.rel (%p416) target = $region44
        $region43: #{resnet_for_state_forward.1} parent=11 // pred_region
          _
        $region44: #{resnet_for_state_forward.1} parent=11 // pred_fallthru
          _
        // Predicated region
        $region45: #{resnet_for_state_forward.1} parent=11 // pred_check
          %p419 = pneg %p239
        $region46: #{resnet_for_state_forward.1} parent=11 // pred_check_branch
          %421 = sbr.rel (%p419) target = $region48
        $region47: #{resnet_for_state_forward.1} parent=11 // pred_region
          _
        $region48: #{resnet_for_state_forward.1} parent=11 // pred_fallthru
          _
        // Predicated region
        $region49: #{resnet_for_state_forward.1} parent=11 // pred_check
          %p422 = pneg %p260
        $region50: #{resnet_for_state_forward.1} parent=11 // pred_check_branch
          %424 = sbr.rel (%p422) target = $region52
        $region51: #{resnet_for_state_forward.1} parent=11 // pred_region
          _
        $region52: #{resnet_for_state_forward.1} parent=11 // pred_fallthru
          _
        // Predicated region
        $region53: #{resnet_for_state_forward.1} parent=11 // pred_check
          %p425 = pneg %p281
        $region54: #{resnet_for_state_forward.1} parent=11 // pred_check_branch
          %427 = sbr.rel (%p425) target = $region56
        $region55: #{resnet_for_state_forward.1} parent=11 // pred_region
          _
        $region56: #{resnet_for_state_forward.1} parent=11 // pred_fallthru
          _
        // Predicated region
        $region57: #{resnet_for_state_forward.1} parent=11 // pred_check
          %p428 = pneg %p302
        $region58: #{resnet_for_state_forward.1} parent=11 // pred_check_branch
          %430 = sbr.rel (%p428) target = $region60
        $region59: #{resnet_for_state_forward.1} parent=11 // pred_region
          _
        $region60: #{resnet_for_state_forward.1} parent=11 // pred_fallthru
          _
        // Predicated region
        $region61: #{resnet_for_state_forward.1} parent=11 // pred_check
          %p431 = pneg %p323
        $region62: #{resnet_for_state_forward.1} parent=11 // pred_check_branch
          %433 = sbr.rel (%p431) target = $region64
        $region63: #{resnet_for_state_forward.1} parent=11 // pred_region
          _
        $region64: #{resnet_for_state_forward.1} parent=11 // pred_fallthru
          _
        // Predicated region
        $region65: #{resnet_for_state_forward.1} parent=11 // pred_check
          %p434 = pneg %p344
        $region66: #{resnet_for_state_forward.1} parent=11 // pred_check_branch
          %436 = sbr.rel (%p434) target = $region68
        $region67: #{resnet_for_state_forward.1} parent=11 // pred_region
          _
        $region68: #{resnet_for_state_forward.1} parent=11 // pred_fallthru
          _
      $region12: #{resnet_for_state_forward.1} parent=5 // pred_fallthru
        _
      %p437 = scmp.lt.s32.totalorder %s24, 2
      // Predicated region
      $region69: #{resnet_for_state_forward.1} parent=5 // pred_check
        %p438 = pneg %p437
      $region70: #{resnet_for_state_forward.1} parent=5 // pred_check_branch
        %440 = sbr.rel (%p438) target = $region72
      $region71: #{resnet_for_state_forward.1} parent=5 // pred_region
        // Predicated region
        $region73: #{resnet_for_state_forward.1} parent=71 // pred_check
          %p441 = pneg %p44
        $region74: #{resnet_for_state_forward.1} parent=71 // pred_check_branch
          %443 = sbr.rel (%p441) target = $region76
        $region75: #{resnet_for_state_forward.1} parent=71 // pred_region
          %p444 = scmp.lt.s32.totalorder %s24, 1
          %s445 = scalar_select %p444, %s24, 1
          %s446 = smul.addr %s445, 8
          %s447 = smul.addr %s446, 8
          %s448 = scalar_lea.vmem %s0, %s447
        $region76: #{resnet_for_state_forward.1} parent=71 // pred_fallthru
          _
      $region72: #{resnet_for_state_forward.1} parent=5 // pred_fallthru
        _
      %p449 = scmp.le.s32.totalorder 1, %s24
      %p450 = scmp.lt.s32.totalorder %s24, 3
      %p451 = pnand %p449, %p450
      %p452 = pneg %p451
      // Predicated region
      $region77: #{resnet_for_state_forward.1} parent=5 // pred_check
        _
      $region78: #{resnet_for_state_forward.1} parent=5 // pred_check_branch
        %454 = sbr.rel (%p451) target = $region80
      $region79: #{resnet_for_state_forward.1} parent=5 // pred_region
        %s455 = ssub.s32 %s24, 1
        // Predicated region
        $region81: #{resnet_for_state_forward.1} parent=79 // pred_check
          %p456 = pneg %p134
        $region82: #{resnet_for_state_forward.1} parent=79 // pred_check_branch
          %458 = sbr.rel (%p456) target = $region84
        $region83: #{resnet_for_state_forward.1} parent=79 // pred_region
          %459 = dma.done [#allocation4], 3072
        $region84: #{resnet_for_state_forward.1} parent=79 // pred_fallthru
          _
        %p460 = scmp.lt.s32.totalorder %s29, 1
        %s461 = scalar_select %p460, %s29, 1
        %s462 = smul.addr %s461, 8
        %s463 = smul.addr %s462, 8
        %s464 = scalar_lea.vmem %s0, %s463
        %p465 = pneg %p50
        %p466 = pneg %p47
        %p467 = pneg %p71
        %p468 = pneg %p68
        %p469 = pneg %p92
        %p470 = pneg %p89
        %p471 = pneg %p113
        %p472 = pneg %p110
        %p473 = pneg %p134
        %p474 = pneg %p131
        %p475 = pneg %p155
        %p476 = pneg %p152
        %p477 = pneg %p176
        %p478 = pneg %p173
        %p479 = pneg %p197
        %p480 = pneg %p194
        %p481 = pneg %p218
        %p482 = pneg %p215
        %p483 = pneg %p239
        %p484 = pneg %p236
        %p485 = pneg %p260
        %p486 = pneg %p257
        %p487 = pneg %p281
        %p488 = pneg %p278
        %p489 = pneg %p302
        %p490 = pneg %p299
        %p491 = pneg %p323
        %p492 = pneg %p320
        %p493 = pneg %p344
        %p494 = pneg %p341
        %p495 = pneg %p370
        %p496 = pneg %p367
        %p497 = scmp.lt.s32.totalorder %s29, 1
        %s498 = scalar_select %p497, %s29, 1
        %s499 = scalar_lea.vmem %s15, %s498
        %p500 = scmp.lt.s32.totalorder %s29, 1
        %s501 = scalar_select %p500, %s29, 1
        %s502 = smul.addr %s501, 8
        %s503 = smul.addr %s502, 8
        %s504 = scalar_lea.vmem %s0, %s503
        %p505 = scmp.lt.s32.totalorder %s29, 1
        %s506 = scalar_select %p505, %s29, 1
        %s507 = scalar_lea.vmem %s15, %s506
        %v509 = vld [vmem:[%s1] sm:$0xff]
        %v510 = vld [vmem:[%s1 + $0x8] sm:$0xff]
        %v511 = vld [vmem:[%s1 + $0x10] sm:$0xff]
        %v512 = vld [vmem:[%s1 + $0x18] sm:$0xff]
        %v513 = vld [vmem:[%s1 + $0x20] sm:$0xff]
        %v514 = vld [vmem:[%s1 + $0x28] sm:$0xff]
        %v515 = vld [vmem:[%s1 + $0x30] sm:$0xff]
        %v516 = vld [vmem:[%s1 + $0x38] sm:$0xff]
        %v517 = vld [vmem:[%s1 + $0x40] sm:$0xff]
        %v518 = vld [vmem:[%s1 + $0x48] sm:$0xff]
        %v519 = vld [vmem:[%s1 + $0x50] sm:$0xff]
        %v520 = vld [vmem:[%s1 + $0x58] sm:$0xff]
        %v521 = vld [vmem:[%s1 + $0x60] sm:$0xff]
        %v522 = vld [vmem:[%s1 + $0x68] sm:$0xff]
        %v523 = vld [vmem:[%s1 + $0x70] sm:$0xff]
        %v524 = vld [vmem:[%s1 + $0x78] sm:$0xff]
        %v525 = vld [vmem:[%s1 + $0x80] sm:$0xff]
        %v526 = vld [vmem:[%s1 + $0x88] sm:$0xff]
        %v527 = vld [vmem:[%s1 + $0x90] sm:$0xff]
        %v528 = vld [vmem:[%s1 + $0x98] sm:$0xff]
        %v529 = vld [vmem:[%s1 + $0xa0] sm:$0xff]
        %v530 = vld [vmem:[%s1 + $0xa8] sm:$0xff]
        %v531 = vld [vmem:[%s1 + $0xb0] sm:$0xff]
        %v532 = vld [vmem:[%s1 + $0xb8] sm:$0xff]
        %v533 = vld [vmem:[%s14] sm:$0x1]
        %v534 = vld [vmem:[%s504] sm:$0xff]
        %v535 = vld [vmem:[%s504 + $0x8] sm:$0xff]
        %v536 = vld [vmem:[%s504 + $0x10] sm:$0xff]
        %v537 = vld [vmem:[%s504 + $0x18] sm:$0xff]
        %v538 = vld [vmem:[%s504 + $0x20] sm:$0xff]
        %v539 = vld [vmem:[%s504 + $0x28] sm:$0xff]
        %v540 = vld [vmem:[%s504 + $0x30] sm:$0xff]
        %v541 = vld [vmem:[%s504 + $0x38] sm:$0xff]
        %v542 = vld [vmem:[%s2] sm:$0x3f]
        %v543 = vld [vmem:[%s3] sm:$0x1]
        %v544 = vpack.c.bf16 %v535, %v534
        %v545 = vpack.c.bf16 %v537, %v536
        %v546 = vpack.c.bf16 %v539, %v538
        %v547 = vpack.c.bf16 %v541, %v540
        %v549 = vcombine.high %v542, %v542
        %v551 = vunpack.c.l.s4 1983009808
        %v552 = vunpack.c.0.s8 %v551
        %v553 = vlaneseq
        %v554 = vshrl.u32 %v553, 7
        %v555 = vsub.s32 %v552, %v554
        %v556 = vrot.slane %v542, %v555
        %v558 = vunpack.c.l.s4 1983009808
        %v559 = vunpack.c.0.s8 %v558
        %v560 = vlaneseq
        %v561 = vshrl.u32 %v560, 7
        %v562 = vsub.s32 %v559, %v561
        %v563 = vrot.slane %v549, %v562
        %v564 = vcombine.high %v556, %v556
        %vm565 = vcmask 31744
        %v567 = vsel %vm565, %v544, 0
        %v570 = vsel %vm565, %v545, 0
        %v573 = vsel %vm565, %v546, 0
        %v576 = vsel %vm565, %v547, 0
        %vm578 = vcmask 1041408
        %v580 = vsel %vm578, %v556, 0
        %v583 = vsel %vm578, %v564, 0
        %v586 = vsel %vm578, %v563, 0
        %588 = vmatprep.subr.bf16.mxu0 0
        %589 = vmatpush1.bf16.msra.mxu0 0
        %590 = vmatprep.subr.bf16.mxu0 0
        %591 = vmatpush1.bf16.msra.mxu0 0
        %592 = vmatprep.subr.bf16.mxu0 0
        %593 = vmatpush1.bf16.msra.mxu0 0
        %594 = vmatprep.subr.bf16.mxu0 0
        %595 = vmatpush1.bf16.msra.mxu0 0
        %596 = vmatprep.subr.bf16.mxu0 0
        %597 = vmatpush1.bf16.msra.mxu0 0
        %598 = vmatprep.subr.bf16.mxu0 0
        %599 = vmatpush1.bf16.msra.mxu0 0
        %600 = vmatprep.subr.bf16.mxu0 0
        %601 = vmatpush1.bf16.msra.mxu0 0
        %602 = vmatprep.subr.bf16.mxu0 %v583
        %603 = vmatpush1.bf16.msra.mxu0 %v580
        %604 = vmatprep.subr.bf16.mxu0 0
        %605 = vmatpush2.bf16.msra.mxu0 0
        %606 = vmatprep.subr.bf16.mxu0 0
        %607 = vmatpush2.bf16.msra.mxu0 0
        %608 = vmatprep.subr.bf16.mxu0 0
        %609 = vmatpush2.bf16.msra.mxu0 0
        %610 = vmatprep.subr.bf16.mxu0 0
        %611 = vmatpush2.bf16.msra.mxu0 0
        %612 = vmatprep.subr.bf16.mxu0 0
        %613 = vmatpush2.bf16.msra.mxu0 0
        %614 = vmatprep.subr.bf16.mxu0 0
        %615 = vmatpush2.bf16.msra.mxu0 0
        %616 = vmatprep.subr.bf16.mxu0 0
        %617 = vmatpush2.bf16.msra.mxu0 0
        %618 = vmatprep.subr.bf16.mxu0 0
        %619 = vmatpush2.bf16.msra.mxu0 0
        %620 = vmatprep.mubr.bf16.mxu0 0
        %621 = vmatmul.mubr.bf16.gmra.mxu0 %v567
        %v622 = vpop.f32.mrf.mxu0
        %v623 = vadd.f32 0.0, %v622
        %v624 = vpop.f32.mrf.mxu0
        %v625 = vadd.f32 0.0, %v624
        %v626 = vpop.f32.mrf.mxu0
        %v627 = vadd.f32 0.0, %v626
        %v628 = vpop.f32.mrf.mxu0
        %v629 = vadd.f32 0.0, %v628
        %630 = vmatprep.mubr.bf16.mxu0 0
        %631 = vmatmul.mubr.bf16.gmra.mxu0 %v570
        %v632 = vpop.f32.mrf.mxu0
        %v633 = vadd.f32 0.0, %v632
        %v634 = vpop.f32.mrf.mxu0
        %v635 = vadd.f32 0.0, %v634
        %v636 = vpop.f32.mrf.mxu0
        %v637 = vadd.f32 0.0, %v636
        %v638 = vpop.f32.mrf.mxu0
        %v639 = vadd.f32 0.0, %v638
        %640 = vmatprep.mubr.bf16.mxu0 0
        %641 = vmatmul.mubr.bf16.gmra.mxu0 %v573
        %v642 = vpop.f32.mrf.mxu0
        %v643 = vadd.f32 0.0, %v642
        %v644 = vpop.f32.mrf.mxu0
        %v645 = vadd.f32 0.0, %v644
        %v646 = vpop.f32.mrf.mxu0
        %v647 = vadd.f32 0.0, %v646
        %v648 = vpop.f32.mrf.mxu0
        %v649 = vadd.f32 0.0, %v648
        %650 = vmatprep.mubr.bf16.mxu0 0
        %651 = vmatmul.mubr.bf16.gmra.mxu0 %v576
        %v652 = vpop.f32.mrf.mxu0
        %v653 = vadd.f32 0.0, %v652
        %v654 = vpop.f32.mrf.mxu0
        %v655 = vadd.f32 0.0, %v654
        %v656 = vpop.f32.mrf.mxu0
        %v657 = vadd.f32 0.0, %v656
        %v658 = vpop.f32.mrf.mxu0
        %v659 = vadd.f32 0.0, %v658
        %660 = vdwg.mxu0
        %661 = vmatprep.subr.bf16.mxu0 0
        %662 = vmatpush1.bf16.msra.mxu0 0
        %663 = vmatprep.subr.bf16.mxu0 0
        %664 = vmatpush1.bf16.msra.mxu0 0
        %665 = vmatprep.subr.bf16.mxu0 0
        %666 = vmatpush1.bf16.msra.mxu0 0
        %667 = vmatprep.subr.bf16.mxu0 0
        %668 = vmatpush1.bf16.msra.mxu0 0
        %669 = vmatprep.subr.bf16.mxu0 0
        %670 = vmatpush1.bf16.msra.mxu0 0
        %671 = vmatprep.subr.bf16.mxu0 0
        %672 = vmatpush1.bf16.msra.mxu0 0
        %673 = vmatprep.subr.bf16.mxu0 0
        %674 = vmatpush1.bf16.msra.mxu0 0
        %675 = vmatprep.subr.bf16.mxu0 0
        %676 = vmatpush1.bf16.msra.mxu0 %v586
        %677 = vmatprep.subr.bf16.mxu0 0
        %678 = vmatpush2.bf16.msra.mxu0 0
        %679 = vmatprep.subr.bf16.mxu0 0
        %680 = vmatpush2.bf16.msra.mxu0 0
        %681 = vmatprep.subr.bf16.mxu0 0
        %682 = vmatpush2.bf16.msra.mxu0 0
        %683 = vmatprep.subr.bf16.mxu0 0
        %684 = vmatpush2.bf16.msra.mxu0 0
        %685 = vmatprep.subr.bf16.mxu0 0
        %686 = vmatpush2.bf16.msra.mxu0 0
        %687 = vmatprep.subr.bf16.mxu0 0
        %688 = vmatpush2.bf16.msra.mxu0 0
        %689 = vmatprep.subr.bf16.mxu0 0
        %690 = vmatpush2.bf16.msra.mxu0 0
        %691 = vmatprep.subr.bf16.mxu0 0
        %692 = vmatpush2.bf16.msra.mxu0 0
        %693 = vmatprep.mubr.bf16.mxu0 0
        %694 = vmatmul.mubr.bf16.gmra.mxu0 %v567
        %v695 = vpop.f32.mrf.mxu0
        %v696 = vadd.f32 0.0, %v695
        %v697 = vpop.f32.mrf.mxu0
        %v698 = vpop.f32.mrf.mxu0
        %v699 = vadd.f32 0.0, %v698
        %v700 = vpop.f32.mrf.mxu0
        %701 = vmatprep.mubr.bf16.mxu0 0
        %702 = vmatmul.mubr.bf16.gmra.mxu0 %v570
        %v703 = vpop.f32.mrf.mxu0
        %v704 = vadd.f32 0.0, %v703
        %v705 = vpop.f32.mrf.mxu0
        %v706 = vpop.f32.mrf.mxu0
        %v707 = vadd.f32 0.0, %v706
        %v708 = vpop.f32.mrf.mxu0
        %709 = vmatprep.mubr.bf16.mxu0 0
        %710 = vmatmul.mubr.bf16.gmra.mxu0 %v573
        %v711 = vpop.f32.mrf.mxu0
        %v712 = vadd.f32 0.0, %v711
        %v713 = vpop.f32.mrf.mxu0
        %v714 = vpop.f32.mrf.mxu0
        %v715 = vadd.f32 0.0, %v714
        %v716 = vpop.f32.mrf.mxu0
        %717 = vmatprep.mubr.bf16.mxu0 0
        %718 = vmatmul.mubr.bf16.gmra.mxu0 %v576
        %v719 = vpop.f32.mrf.mxu0
        %v720 = vadd.f32 0.0, %v719
        %v721 = vpop.f32.mrf.mxu0
        %v722 = vpop.f32.mrf.mxu0
        %v723 = vadd.f32 0.0, %v722
        %v724 = vpop.f32.mrf.mxu0
        %725 = vdwg.mxu0
        %v726 = vmul.f32 %v623, %v509
        %v727 = vmul.f32 %v625, %v510
        %v728 = vmul.f32 %v696, %v511
        %v729 = vmul.f32 %v627, %v512
        %v730 = vmul.f32 %v629, %v513
        %v731 = vmul.f32 %v699, %v514
        %v732 = vmul.f32 %v633, %v515
        %v733 = vmul.f32 %v635, %v516
        %v734 = vmul.f32 %v704, %v517
        %v735 = vmul.f32 %v637, %v518
        %v736 = vmul.f32 %v639, %v519
        %v737 = vmul.f32 %v707, %v520
        %v738 = vmul.f32 %v643, %v521
        %v739 = vmul.f32 %v645, %v522
        %v740 = vmul.f32 %v712, %v523
        %v741 = vmul.f32 %v647, %v524
        %v742 = vmul.f32 %v649, %v525
        %v743 = vmul.f32 %v715, %v526
        %v744 = vmul.f32 %v653, %v527
        %v745 = vmul.f32 %v655, %v528
        %v746 = vmul.f32 %v720, %v529
        %v747 = vmul.f32 %v657, %v530
        %v748 = vmul.f32 %v659, %v531
        %v749 = vmul.f32 %v723, %v532
        %v750 = vrot.slane %v726, 7
        %v751 = vrot.slane %v729, 7
        %v752 = vrot.slane %v732, 7
        %v753 = vrot.slane %v735, 7
        %v754 = vrot.slane %v738, 7
        %v755 = vrot.slane %v741, 7
        %v756 = vrot.slane %v744, 7
        %v757 = vrot.slane %v747, 7
        %v758 = vlaneseq
        %v759 = vshrl.u32 %v758, 7
        %vm760 = vcmp.lt.s32.totalorder %v759, 1
        %v761 = vsel %vm760, %v756, %v757
        %v762 = vsel %vm760, %v755, %v756
        %v763 = vsel %vm760, %v754, %v755
        %v764 = vsel %vm760, %v753, %v754
        %v765 = vsel %vm760, %v752, %v753
        %v766 = vsel %vm760, %v751, %v752
        %v767 = vsel %vm760, %v750, %v751
        %v768 = vsel %vm760, %v757, %v750
        %777 = vrot.lane.b32.xlu0 %v726, 96
        %v778 = vpop.permute.xlu0 %777
        %779 = vrot.lane.b32.xlu0 %v729, 96
        %v780 = vpop.permute.xlu0 %779
        %781 = vrot.lane.b32.xlu0 %v732, 96
        %v782 = vpop.permute.xlu0 %781
        %783 = vrot.lane.b32.xlu0 %v735, 96
        %v784 = vpop.permute.xlu0 %783
        %785 = vrot.lane.b32.xlu0 %v738, 96
        %v786 = vpop.permute.xlu0 %785
        %787 = vrot.lane.b32.xlu0 %v741, 96
        %v788 = vpop.permute.xlu0 %787
        %789 = vrot.lane.b32.xlu0 %v744, 96
        %v790 = vpop.permute.xlu0 %789
        %791 = vrot.lane.b32.xlu0 %v747, 96
        %v792 = vpop.permute.xlu0 %791
        %v801 = vadd.f32 %v761, %v792
        %v802 = vadd.f32 %v768, %v778
        %v803 = vadd.f32 %v767, %v780
        %v804 = vadd.f32 %v766, %v782
        %v805 = vadd.f32 %v765, %v784
        %v806 = vadd.f32 %v764, %v786
        %v807 = vadd.f32 %v763, %v788
        %v808 = vadd.f32 %v762, %v790
        %809 = vrot.lane.b32.xlu0 %v726, 64
        %v810 = vpop.permute.xlu0 %809
        %811 = vrot.lane.b32.xlu0 %v729, 64
        %v812 = vpop.permute.xlu0 %811
        %813 = vrot.lane.b32.xlu0 %v732, 64
        %v814 = vpop.permute.xlu0 %813
        %815 = vrot.lane.b32.xlu0 %v735, 64
        %v816 = vpop.permute.xlu0 %815
        %817 = vrot.lane.b32.xlu0 %v738, 64
        %v818 = vpop.permute.xlu0 %817
        %819 = vrot.lane.b32.xlu0 %v741, 64
        %v820 = vpop.permute.xlu0 %819
        %821 = vrot.lane.b32.xlu0 %v744, 64
        %v822 = vpop.permute.xlu0 %821
        %823 = vrot.lane.b32.xlu0 %v747, 64
        %v824 = vpop.permute.xlu0 %823
        %v833 = vrot.slane %v810, 1
        %v834 = vrot.slane %v812, 1
        %v835 = vrot.slane %v814, 1
        %v836 = vrot.slane %v816, 1
        %v837 = vrot.slane %v818, 1
        %v838 = vrot.slane %v820, 1
        %v839 = vrot.slane %v822, 1
        %v840 = vrot.slane %v824, 1
        %vm841 = vcmp.lt.s32.totalorder %v759, 7
        %v842 = vsel %vm841, %v839, %v840
        %v843 = vsel %vm841, %v838, %v839
        %v844 = vsel %vm841, %v837, %v838
        %v845 = vsel %vm841, %v836, %v837
        %v846 = vsel %vm841, %v835, %v836
        %v847 = vsel %vm841, %v834, %v835
        %v848 = vsel %vm841, %v833, %v834
        %v849 = vsel %vm841, %v840, %v833
        %v850 = vadd.f32 %v801, %v849
        %v851 = vadd.f32 %v802, %v848
        %v852 = vadd.f32 %v803, %v847
        %v853 = vadd.f32 %v804, %v846
        %v854 = vadd.f32 %v805, %v845
        %v855 = vadd.f32 %v806, %v844
        %v856 = vadd.f32 %v807, %v843
        %v857 = vadd.f32 %v808, %v842
        %858 = vrot.lane.b32.xlu0 %v726, 32
        %v859 = vpop.permute.xlu0 %858
        %860 = vrot.lane.b32.xlu0 %v729, 32
        %v861 = vpop.permute.xlu0 %860
        %862 = vrot.lane.b32.xlu0 %v732, 32
        %v863 = vpop.permute.xlu0 %862
        %864 = vrot.lane.b32.xlu0 %v735, 32
        %v865 = vpop.permute.xlu0 %864
        %866 = vrot.lane.b32.xlu0 %v738, 32
        %v867 = vpop.permute.xlu0 %866
        %868 = vrot.lane.b32.xlu0 %v741, 32
        %v869 = vpop.permute.xlu0 %868
        %870 = vrot.lane.b32.xlu0 %v744, 32
        %v871 = vpop.permute.xlu0 %870
        %872 = vrot.lane.b32.xlu0 %v747, 32
        %v873 = vpop.permute.xlu0 %872
        %v882 = vrot.slane %v859, 7
        %v883 = vrot.slane %v861, 7
        %v884 = vrot.slane %v863, 7
        %v885 = vrot.slane %v865, 7
        %v886 = vrot.slane %v867, 7
        %v887 = vrot.slane %v869, 7
        %v888 = vrot.slane %v871, 7
        %v889 = vrot.slane %v873, 7
        %v890 = vsel %vm760, %v888, %v889
        %v891 = vsel %vm760, %v887, %v888
        %v892 = vsel %vm760, %v886, %v887
        %v893 = vsel %vm760, %v885, %v886
        %v894 = vsel %vm760, %v884, %v885
        %v895 = vsel %vm760, %v883, %v884
        %v896 = vsel %vm760, %v882, %v883
        %v897 = vsel %vm760, %v889, %v882
        %v898 = vadd.f32 %v850, %v897
        %v899 = vadd.f32 %v851, %v896
        %v900 = vadd.f32 %v852, %v895
        %v901 = vadd.f32 %v853, %v894
        %v902 = vadd.f32 %v854, %v893
        %v903 = vadd.f32 %v855, %v892
        %v904 = vadd.f32 %v856, %v891
        %v905 = vadd.f32 %v857, %v890
        %v906 = vadd.f32 %v898, %v727
        %v907 = vadd.f32 %v899, %v730
        %v908 = vadd.f32 %v900, %v733
        %v909 = vadd.f32 %v901, %v736
        %v910 = vadd.f32 %v902, %v739
        %v911 = vadd.f32 %v903, %v742
        %v912 = vadd.f32 %v904, %v745
        %v913 = vadd.f32 %v905, %v748
        %922 = vrot.lane.b32.xlu0 %v727, 96
        %v923 = vpop.permute.xlu0 %922
        %924 = vrot.lane.b32.xlu0 %v730, 96
        %v925 = vpop.permute.xlu0 %924
        %926 = vrot.lane.b32.xlu0 %v733, 96
        %v927 = vpop.permute.xlu0 %926
        %928 = vrot.lane.b32.xlu0 %v736, 96
        %v929 = vpop.permute.xlu0 %928
        %930 = vrot.lane.b32.xlu0 %v739, 96
        %v931 = vpop.permute.xlu0 %930
        %932 = vrot.lane.b32.xlu0 %v742, 96
        %v933 = vpop.permute.xlu0 %932
        %934 = vrot.lane.b32.xlu0 %v745, 96
        %v935 = vpop.permute.xlu0 %934
        %936 = vrot.lane.b32.xlu0 %v748, 96
        %v937 = vpop.permute.xlu0 %936
        %v946 = vrot.slane %v923, 1
        %v947 = vrot.slane %v925, 1
        %v948 = vrot.slane %v927, 1
        %v949 = vrot.slane %v929, 1
        %v950 = vrot.slane %v931, 1
        %v951 = vrot.slane %v933, 1
        %v952 = vrot.slane %v935, 1
        %v953 = vrot.slane %v937, 1
        %v954 = vsel %vm841, %v952, %v953
        %v955 = vsel %vm841, %v951, %v952
        %v956 = vsel %vm841, %v950, %v951
        %v957 = vsel %vm841, %v949, %v950
        %v958 = vsel %vm841, %v948, %v949
        %v959 = vsel %vm841, %v947, %v948
        %v960 = vsel %vm841, %v946, %v947
        %v961 = vsel %vm841, %v953, %v946
        %v962 = vadd.f32 %v906, %v960
        %v963 = vadd.f32 %v907, %v959
        %v964 = vadd.f32 %v908, %v958
        %v965 = vadd.f32 %v909, %v957
        %v966 = vadd.f32 %v910, %v956
        %v967 = vadd.f32 %v911, %v955
        %v968 = vadd.f32 %v912, %v954
        %v969 = vadd.f32 %v913, %v961
        %970 = vrot.lane.b32.xlu0 %v727, 64
        %v971 = vpop.permute.xlu0 %970
        %972 = vrot.lane.b32.xlu0 %v730, 64
        %v973 = vpop.permute.xlu0 %972
        %974 = vrot.lane.b32.xlu0 %v733, 64
        %v975 = vpop.permute.xlu0 %974
        %976 = vrot.lane.b32.xlu0 %v736, 64
        %v977 = vpop.permute.xlu0 %976
        %978 = vrot.lane.b32.xlu0 %v739, 64
        %v979 = vpop.permute.xlu0 %978
        %980 = vrot.lane.b32.xlu0 %v742, 64
        %v981 = vpop.permute.xlu0 %980
        %982 = vrot.lane.b32.xlu0 %v745, 64
        %v983 = vpop.permute.xlu0 %982
        %984 = vrot.lane.b32.xlu0 %v748, 64
        %v985 = vpop.permute.xlu0 %984
        %v994 = vrot.slane %v971, 7
        %v995 = vrot.slane %v973, 7
        %v996 = vrot.slane %v975, 7
        %v997 = vrot.slane %v977, 7
        %v998 = vrot.slane %v979, 7
        %v999 = vrot.slane %v981, 7
        %v1000 = vrot.slane %v983, 7
        %v1001 = vrot.slane %v985, 7
        %v1002 = vsel %vm760, %v1000, %v1001
        %v1003 = vsel %vm760, %v999, %v1000
        %v1004 = vsel %vm760, %v998, %v999
        %v1005 = vsel %vm760, %v997, %v998
        %v1006 = vsel %vm760, %v996, %v997
        %v1007 = vsel %vm760, %v995, %v996
        %v1008 = vsel %vm760, %v994, %v995
        %v1009 = vsel %vm760, %v1001, %v994
        %v1010 = vadd.f32 %v962, %v1008
        %v1011 = vadd.f32 %v963, %v1007
        %v1012 = vadd.f32 %v964, %v1006
        %v1013 = vadd.f32 %v965, %v1005
        %v1014 = vadd.f32 %v966, %v1004
        %v1015 = vadd.f32 %v967, %v1003
        %v1016 = vadd.f32 %v968, %v1002
        %v1017 = vadd.f32 %v969, %v1009
        %1018 = vrot.lane.b32.xlu0 %v727, 32
        %v1019 = vpop.permute.xlu0 %1018
        %1020 = vrot.lane.b32.xlu0 %v730, 32
        %v1021 = vpop.permute.xlu0 %1020
        %1022 = vrot.lane.b32.xlu0 %v733, 32
        %v1023 = vpop.permute.xlu0 %1022
        %1024 = vrot.lane.b32.xlu0 %v736, 32
        %v1025 = vpop.permute.xlu0 %1024
        %1026 = vrot.lane.b32.xlu0 %v739, 32
        %v1027 = vpop.permute.xlu0 %1026
        %1028 = vrot.lane.b32.xlu0 %v742, 32
        %v1029 = vpop.permute.xlu0 %1028
        %1030 = vrot.lane.b32.xlu0 %v745, 32
        %v1031 = vpop.permute.xlu0 %1030
        %1032 = vrot.lane.b32.xlu0 %v748, 32
        %v1033 = vpop.permute.xlu0 %1032
        %v1042 = vadd.f32 %v1010, %v1021
        %v1043 = vadd.f32 %v1011, %v1023
        %v1044 = vadd.f32 %v1012, %v1025
        %v1045 = vadd.f32 %v1013, %v1027
        %v1046 = vadd.f32 %v1014, %v1029
        %v1047 = vadd.f32 %v1015, %v1031
        %v1048 = vadd.f32 %v1016, %v1033
        %v1049 = vadd.f32 %v1017, %v1019
        %v1050 = vrot.slane %v728, 1
        %v1051 = vrot.slane %v731, 1
        %v1052 = vrot.slane %v734, 1
        %v1053 = vrot.slane %v737, 1
        %v1054 = vrot.slane %v740, 1
        %v1055 = vrot.slane %v743, 1
        %v1056 = vrot.slane %v746, 1
        %v1057 = vrot.slane %v749, 1
        %v1058 = vsel %vm841, %v1056, %v1057
        %v1059 = vsel %vm841, %v1055, %v1056
        %v1060 = vsel %vm841, %v1054, %v1055
        %v1061 = vsel %vm841, %v1053, %v1054
        %v1062 = vsel %vm841, %v1052, %v1053
        %v1063 = vsel %vm841, %v1051, %v1052
        %v1064 = vsel %vm841, %v1050, %v1051
        %v1065 = vsel %vm841, %v1057, %v1050
        %v1066 = vadd.f32 %v1042, %v1063
        %v1067 = vadd.f32 %v1043, %v1062
        %v1068 = vadd.f32 %v1044, %v1061
        %v1069 = vadd.f32 %v1045, %v1060
        %v1070 = vadd.f32 %v1046, %v1059
        %v1071 = vadd.f32 %v1047, %v1058
        %v1072 = vadd.f32 %v1048, %v1065
        %v1073 = vadd.f32 %v1049, %v1064
        %v1075 = vlaneseq
        %v1076 = vshrl.u32 %v1075, 7
        %v1077 = vsub.s32 0, %v1076
        %v1078 = vrot.slane %v543, %v1077
        %v1080 = vadd.f32 %v1066, %v1078
        %v1081 = vadd.f32 %v1067, %v1078
        %v1082 = vadd.f32 %v1068, %v1078
        %v1083 = vadd.f32 %v1069, %v1078
        %v1084 = vadd.f32 %v1070, %v1078
        %v1085 = vadd.f32 %v1071, %v1078
        %v1086 = vadd.f32 %v1072, %v1078
        %v1087 = vadd.f32 %v1073, %v1078
        %v1088 = vmax.f32 %v1080, 0.0
        %v1089 = vmax.f32 %v1081, 0.0
        %v1090 = vmax.f32 %v1082, 0.0
        %v1091 = vmax.f32 %v1083, 0.0
        %v1092 = vmax.f32 %v1084, 0.0
        %v1093 = vmax.f32 %v1085, 0.0
        %v1094 = vmax.f32 %v1086, 0.0
        %v1095 = vmax.f32 %v1087, 0.0
        %v1096 = vld [vmem:[#allocation3] sm:$0xff]
        %v1097 = vld [vmem:[#allocation3 + $0x8] sm:$0xf]
        %v1098 = vld [vmem:[#allocation3 + $0xc] sm:$0xff]
        %v1099 = vld [vmem:[#allocation3 + $0x14] sm:$0xf]
        %v1100 = vld [vmem:[#allocation3 + $0x18] sm:$0xff]
        %v1101 = vld [vmem:[#allocation3 + $0x20] sm:$0xf]
        %v1102 = vld [vmem:[#allocation3 + $0x24] sm:$0xff]
        %v1103 = vld [vmem:[#allocation3 + $0x2c] sm:$0xf]
        %v1104 = vld [vmem:[%s5] sm:$0x1]
        %v1105 = vpack.c.bf16 %v1089, %v1088
        %v1106 = vpack.c.bf16 %v1091, %v1090
        %v1107 = vpack.c.bf16 %v1093, %v1092
        %v1108 = vpack.c.bf16 %v1095, %v1094
        %v1117 = vunpack.c.l.b16 %v1096
        %v1118 = vunpack.c.h.b16 %v1096
        %v1119 = vunpack.c.l.b16 %v1097
        %v1120 = vunpack.c.l.b16 %v1098
        %v1121 = vunpack.c.h.b16 %v1098
        %v1122 = vunpack.c.l.b16 %v1099
        %v1123 = vunpack.c.l.b16 %v1100
        %v1124 = vunpack.c.h.b16 %v1100
        %v1125 = vunpack.c.l.b16 %v1101
        %v1126 = vunpack.c.l.b16 %v1102
        %v1127 = vunpack.c.h.b16 %v1102
        %v1128 = vunpack.c.l.b16 %v1103
        %v1129 = vpack.c.b16 %v1120, %v1117
        %v1130 = vpack.c.b16 %v1121, %v1118
        %v1131 = vpack.c.b16 %v1122, %v1119
        %v1132 = vpack.c.b16 %v1126, %v1123
        %v1133 = vpack.c.b16 %v1127, %v1124
        %v1134 = vpack.c.b16 %v1128, %v1125
        %vm1141 = vcmask 261120
        %v1143 = vsel %vm1141, %v1105, 0
        %v1146 = vsel %vm1141, %v1106, 0
        %v1149 = vsel %vm1141, %v1107, 0
        %v1152 = vsel %vm1141, %v1108, 0
        %1154 = vmatprep.subr.bf16.mxu0 0
        %1155 = vmatpush1.bf16.msra.mxu0 0
        %1156 = vmatprep.subr.bf16.mxu0 0
        %1157 = vmatpush1.bf16.msra.mxu0 0
        %1158 = vmatprep.subr.bf16.mxu0 0
        %1159 = vmatpush1.bf16.msra.mxu0 0
        %1160 = vmatprep.subr.bf16.mxu0 0
        %1161 = vmatpush1.bf16.msra.mxu0 0
        %1162 = vmatprep.subr.bf16.mxu0 0
        %1163 = vmatpush1.bf16.msra.mxu0 0
        %1164 = vmatprep.subr.bf16.mxu0 0
        %1165 = vmatpush1.bf16.msra.mxu0 0
        %1166 = vmatprep.subr.bf16.mxu0 %v1133
        %1167 = vmatpush1.bf16.msra.mxu0 %v1132
        %1168 = vmatprep.subr.bf16.mxu0 %v1130
        %1169 = vmatpush1.bf16.msra.mxu0 %v1129
        %1170 = vmatprep.subr.bf16.mxu0 0
        %1171 = vmatpush2.bf16.msra.mxu0 0
        %1172 = vmatprep.subr.bf16.mxu0 0
        %1173 = vmatpush2.bf16.msra.mxu0 0
        %1174 = vmatprep.subr.bf16.mxu0 0
        %1175 = vmatpush2.bf16.msra.mxu0 0
        %1176 = vmatprep.subr.bf16.mxu0 0
        %1177 = vmatpush2.bf16.msra.mxu0 0
        %1178 = vmatprep.subr.bf16.mxu0 0
        %1179 = vmatpush2.bf16.msra.mxu0 0
        %1180 = vmatprep.subr.bf16.mxu0 0
        %1181 = vmatpush2.bf16.msra.mxu0 0
        %1182 = vmatprep.subr.bf16.mxu0 0
        %1183 = vmatpush2.bf16.msra.mxu0 0
        %1184 = vmatprep.subr.bf16.mxu0 0
        %1185 = vmatpush2.bf16.msra.mxu0 0
        %1186 = vmatprep.mubr.bf16.mxu0 0
        %1187 = vmatmul.mubr.bf16.gmra.mxu0 %v1143
        %v1188 = vpop.f32.mrf.mxu0
        %v1189 = vadd.f32 0.0, %v1188
        %v1190 = vpop.f32.mrf.mxu0
        %v1191 = vadd.f32 0.0, %v1190
        %v1192 = vpop.f32.mrf.mxu0
        %v1193 = vadd.f32 0.0, %v1192
        %v1194 = vpop.f32.mrf.mxu0
        %v1195 = vadd.f32 0.0, %v1194
        %1196 = vmatprep.mubr.bf16.mxu0 0
        %1197 = vmatmul.mubr.bf16.gmra.mxu0 %v1146
        %v1198 = vpop.f32.mrf.mxu0
        %v1199 = vadd.f32 0.0, %v1198
        %v1200 = vpop.f32.mrf.mxu0
        %v1201 = vadd.f32 0.0, %v1200
        %v1202 = vpop.f32.mrf.mxu0
        %v1203 = vadd.f32 0.0, %v1202
        %v1204 = vpop.f32.mrf.mxu0
        %v1205 = vadd.f32 0.0, %v1204
        %1206 = vmatprep.mubr.bf16.mxu0 0
        %1207 = vmatmul.mubr.bf16.gmra.mxu0 %v1149
        %v1208 = vpop.f32.mrf.mxu0
        %v1209 = vadd.f32 0.0, %v1208
        %v1210 = vpop.f32.mrf.mxu0
        %v1211 = vadd.f32 0.0, %v1210
        %v1212 = vpop.f32.mrf.mxu0
        %v1213 = vadd.f32 0.0, %v1212
        %v1214 = vpop.f32.mrf.mxu0
        %v1215 = vadd.f32 0.0, %v1214
        %1216 = vmatprep.mubr.bf16.mxu0 0
        %1217 = vmatmul.mubr.bf16.gmra.mxu0 %v1152
        %v1218 = vpop.f32.mrf.mxu0
        %v1219 = vadd.f32 0.0, %v1218
        %v1220 = vpop.f32.mrf.mxu0
        %v1221 = vadd.f32 0.0, %v1220
        %v1222 = vpop.f32.mrf.mxu0
        %v1223 = vadd.f32 0.0, %v1222
        %v1224 = vpop.f32.mrf.mxu0
        %v1225 = vadd.f32 0.0, %v1224
        %1226 = vdwg.mxu0
        %1227 = vmatprep.subr.bf16.mxu0 0
        %1228 = vmatpush1.bf16.msra.mxu0 0
        %1229 = vmatprep.subr.bf16.mxu0 0
        %1230 = vmatpush1.bf16.msra.mxu0 0
        %1231 = vmatprep.subr.bf16.mxu0 0
        %1232 = vmatpush1.bf16.msra.mxu0 0
        %1233 = vmatprep.subr.bf16.mxu0 0
        %1234 = vmatpush1.bf16.msra.mxu0 0
        %1235 = vmatprep.subr.bf16.mxu0 0
        %1236 = vmatpush1.bf16.msra.mxu0 0
        %1237 = vmatprep.subr.bf16.mxu0 0
        %1238 = vmatpush1.bf16.msra.mxu0 0
        %1239 = vmatprep.subr.bf16.mxu0 0
        %1240 = vmatpush1.bf16.msra.mxu0 %v1134
        %1241 = vmatprep.subr.bf16.mxu0 0
        %1242 = vmatpush1.bf16.msra.mxu0 %v1131
        %1243 = vmatprep.subr.bf16.mxu0 0
        %1244 = vmatpush2.bf16.msra.mxu0 0
        %1245 = vmatprep.subr.bf16.mxu0 0
        %1246 = vmatpush2.bf16.msra.mxu0 0
        %1247 = vmatprep.subr.bf16.mxu0 0
        %1248 = vmatpush2.bf16.msra.mxu0 0
        %1249 = vmatprep.subr.bf16.mxu0 0
        %1250 = vmatpush2.bf16.msra.mxu0 0
        %1251 = vmatprep.subr.bf16.mxu0 0
        %1252 = vmatpush2.bf16.msra.mxu0 0
        %1253 = vmatprep.subr.bf16.mxu0 0
        %1254 = vmatpush2.bf16.msra.mxu0 0
        %1255 = vmatprep.subr.bf16.mxu0 0
        %1256 = vmatpush2.bf16.msra.mxu0 0
        %1257 = vmatprep.subr.bf16.mxu0 0
        %1258 = vmatpush2.bf16.msra.mxu0 0
        %1259 = vmatprep.mubr.bf16.mxu0 0
        %1260 = vmatmul.mubr.bf16.gmra.mxu0 %v1143
        %v1261 = vpop.f32.mrf.mxu0
        %v1262 = vadd.f32 0.0, %v1261
        %v1263 = vpop.f32.mrf.mxu0
        %v1264 = vpop.f32.mrf.mxu0
        %v1265 = vadd.f32 0.0, %v1264
        %v1266 = vpop.f32.mrf.mxu0
        %1267 = vmatprep.mubr.bf16.mxu0 0
        %1268 = vmatmul.mubr.bf16.gmra.mxu0 %v1146
        %v1269 = vpop.f32.mrf.mxu0
        %v1270 = vadd.f32 0.0, %v1269
        %v1271 = vpop.f32.mrf.mxu0
        %v1272 = vpop.f32.mrf.mxu0
        %v1273 = vadd.f32 0.0, %v1272
        %v1274 = vpop.f32.mrf.mxu0
        %1275 = vmatprep.mubr.bf16.mxu0 0
        %1276 = vmatmul.mubr.bf16.gmra.mxu0 %v1149
        %v1277 = vpop.f32.mrf.mxu0
        %v1278 = vadd.f32 0.0, %v1277
        %v1279 = vpop.f32.mrf.mxu0
        %v1280 = vpop.f32.mrf.mxu0
        %v1281 = vadd.f32 0.0, %v1280
        %v1282 = vpop.f32.mrf.mxu0
        %1283 = vmatprep.mubr.bf16.mxu0 0
        %1284 = vmatmul.mubr.bf16.gmra.mxu0 %v1152
        %v1285 = vpop.f32.mrf.mxu0
        %v1286 = vadd.f32 0.0, %v1285
        %v1287 = vpop.f32.mrf.mxu0
        %v1288 = vpop.f32.mrf.mxu0
        %v1289 = vadd.f32 0.0, %v1288
        %v1290 = vpop.f32.mrf.mxu0
        %1291 = vdwg.mxu0
        %v1292 = vmul.f32 %v1189, %v509
        %v1293 = vmul.f32 %v1191, %v510
        %v1294 = vmul.f32 %v1262, %v511
        %v1295 = vmul.f32 %v1193, %v512
        %v1296 = vmul.f32 %v1195, %v513
        %v1297 = vmul.f32 %v1265, %v514
        %v1298 = vmul.f32 %v1199, %v515
        %v1299 = vmul.f32 %v1201, %v516
        %v1300 = vmul.f32 %v1270, %v517
        %v1301 = vmul.f32 %v1203, %v518
        %v1302 = vmul.f32 %v1205, %v519
        %v1303 = vmul.f32 %v1273, %v520
        %v1304 = vmul.f32 %v1209, %v521
        %v1305 = vmul.f32 %v1211, %v522
        %v1306 = vmul.f32 %v1278, %v523
        %v1307 = vmul.f32 %v1213, %v524
        %v1308 = vmul.f32 %v1215, %v525
        %v1309 = vmul.f32 %v1281, %v526
        %v1310 = vmul.f32 %v1219, %v527
        %v1311 = vmul.f32 %v1221, %v528
        %v1312 = vmul.f32 %v1286, %v529
        %v1313 = vmul.f32 %v1223, %v530
        %v1314 = vmul.f32 %v1225, %v531
        %v1315 = vmul.f32 %v1289, %v532
        %v1316 = vrot.slane %v1292, 7
        %v1317 = vrot.slane %v1295, 7
        %v1318 = vrot.slane %v1298, 7
        %v1319 = vrot.slane %v1301, 7
        %v1320 = vrot.slane %v1304, 7
        %v1321 = vrot.slane %v1307, 7
        %v1322 = vrot.slane %v1310, 7
        %v1323 = vrot.slane %v1313, 7
        %v1324 = vsel %vm760, %v1322, %v1323
        %v1325 = vsel %vm760, %v1321, %v1322
        %v1326 = vsel %vm760, %v1320, %v1321
        %v1327 = vsel %vm760, %v1319, %v1320
        %v1328 = vsel %vm760, %v1318, %v1319
        %v1329 = vsel %vm760, %v1317, %v1318
        %v1330 = vsel %vm760, %v1316, %v1317
        %v1331 = vsel %vm760, %v1323, %v1316
        %1340 = vrot.lane.b32.xlu0 %v1292, 96
        %v1341 = vpop.permute.xlu0 %1340
        %1342 = vrot.lane.b32.xlu0 %v1295, 96
        %v1343 = vpop.permute.xlu0 %1342
        %1344 = vrot.lane.b32.xlu0 %v1298, 96
        %v1345 = vpop.permute.xlu0 %1344
        %1346 = vrot.lane.b32.xlu0 %v1301, 96
        %v1347 = vpop.permute.xlu0 %1346
        %1348 = vrot.lane.b32.xlu0 %v1304, 96
        %v1349 = vpop.permute.xlu0 %1348
        %1350 = vrot.lane.b32.xlu0 %v1307, 96
        %v1351 = vpop.permute.xlu0 %1350
        %1352 = vrot.lane.b32.xlu0 %v1310, 96
        %v1353 = vpop.permute.xlu0 %1352
        %1354 = vrot.lane.b32.xlu0 %v1313, 96
        %v1355 = vpop.permute.xlu0 %1354
        %v1364 = vadd.f32 %v1324, %v1355
        %v1365 = vadd.f32 %v1331, %v1341
        %v1366 = vadd.f32 %v1330, %v1343
        %v1367 = vadd.f32 %v1329, %v1345
        %v1368 = vadd.f32 %v1328, %v1347
        %v1369 = vadd.f32 %v1327, %v1349
        %v1370 = vadd.f32 %v1326, %v1351
        %v1371 = vadd.f32 %v1325, %v1353
        %1372 = vrot.lane.b32.xlu0 %v1292, 64
        %v1373 = vpop.permute.xlu0 %1372
        %1374 = vrot.lane.b32.xlu0 %v1295, 64
        %v1375 = vpop.permute.xlu0 %1374
        %1376 = vrot.lane.b32.xlu0 %v1298, 64
        %v1377 = vpop.permute.xlu0 %1376
        %1378 = vrot.lane.b32.xlu0 %v1301, 64
        %v1379 = vpop.permute.xlu0 %1378
        %1380 = vrot.lane.b32.xlu0 %v1304, 64
        %v1381 = vpop.permute.xlu0 %1380
        %1382 = vrot.lane.b32.xlu0 %v1307, 64
        %v1383 = vpop.permute.xlu0 %1382
        %1384 = vrot.lane.b32.xlu0 %v1310, 64
        %v1385 = vpop.permute.xlu0 %1384
        %1386 = vrot.lane.b32.xlu0 %v1313, 64
        %v1387 = vpop.permute.xlu0 %1386
        %v1396 = vrot.slane %v1373, 1
        %v1397 = vrot.slane %v1375, 1
        %v1398 = vrot.slane %v1377, 1
        %v1399 = vrot.slane %v1379, 1
        %v1400 = vrot.slane %v1381, 1
        %v1401 = vrot.slane %v1383, 1
        %v1402 = vrot.slane %v1385, 1
        %v1403 = vrot.slane %v1387, 1
        %v1404 = vsel %vm841, %v1402, %v1403
        %v1405 = vsel %vm841, %v1401, %v1402
        %v1406 = vsel %vm841, %v1400, %v1401
        %v1407 = vsel %vm841, %v1399, %v1400
        %v1408 = vsel %vm841, %v1398, %v1399
        %v1409 = vsel %vm841, %v1397, %v1398
        %v1410 = vsel %vm841, %v1396, %v1397
        %v1411 = vsel %vm841, %v1403, %v1396
        %v1412 = vadd.f32 %v1364, %v1411
        %v1413 = vadd.f32 %v1365, %v1410
        %v1414 = vadd.f32 %v1366, %v1409
        %v1415 = vadd.f32 %v1367, %v1408
        %v1416 = vadd.f32 %v1368, %v1407
        %v1417 = vadd.f32 %v1369, %v1406
        %v1418 = vadd.f32 %v1370, %v1405
        %v1419 = vadd.f32 %v1371, %v1404
        %1420 = vrot.lane.b32.xlu0 %v1292, 32
        %v1421 = vpop.permute.xlu0 %1420
        %1422 = vrot.lane.b32.xlu0 %v1295, 32
        %v1423 = vpop.permute.xlu0 %1422
        %1424 = vrot.lane.b32.xlu0 %v1298, 32
        %v1425 = vpop.permute.xlu0 %1424
        %1426 = vrot.lane.b32.xlu0 %v1301, 32
        %v1427 = vpop.permute.xlu0 %1426
        %1428 = vrot.lane.b32.xlu0 %v1304, 32
        %v1429 = vpop.permute.xlu0 %1428
        %1430 = vrot.lane.b32.xlu0 %v1307, 32
        %v1431 = vpop.permute.xlu0 %1430
        %1432 = vrot.lane.b32.xlu0 %v1310, 32
        %v1433 = vpop.permute.xlu0 %1432
        %1434 = vrot.lane.b32.xlu0 %v1313, 32
        %v1435 = vpop.permute.xlu0 %1434
        %v1444 = vrot.slane %v1421, 7
        %v1445 = vrot.slane %v1423, 7
        %v1446 = vrot.slane %v1425, 7
        %v1447 = vrot.slane %v1427, 7
        %v1448 = vrot.slane %v1429, 7
        %v1449 = vrot.slane %v1431, 7
        %v1450 = vrot.slane %v1433, 7
        %v1451 = vrot.slane %v1435, 7
        %v1452 = vsel %vm760, %v1450, %v1451
        %v1453 = vsel %vm760, %v1449, %v1450
        %v1454 = vsel %vm760, %v1448, %v1449
        %v1455 = vsel %vm760, %v1447, %v1448
        %v1456 = vsel %vm760, %v1446, %v1447
        %v1457 = vsel %vm760, %v1445, %v1446
        %v1458 = vsel %vm760, %v1444, %v1445
        %v1459 = vsel %vm760, %v1451, %v1444
        %v1460 = vadd.f32 %v1412, %v1459
        %v1461 = vadd.f32 %v1413, %v1458
        %v1462 = vadd.f32 %v1414, %v1457
        %v1463 = vadd.f32 %v1415, %v1456
        %v1464 = vadd.f32 %v1416, %v1455
        %v1465 = vadd.f32 %v1417, %v1454
        %v1466 = vadd.f32 %v1418, %v1453
        %v1467 = vadd.f32 %v1419, %v1452
        %v1468 = vadd.f32 %v1460, %v1293
        %v1469 = vadd.f32 %v1461, %v1296
        %v1470 = vadd.f32 %v1462, %v1299
        %v1471 = vadd.f32 %v1463, %v1302
        %v1472 = vadd.f32 %v1464, %v1305
        %v1473 = vadd.f32 %v1465, %v1308
        %v1474 = vadd.f32 %v1466, %v1311
        %v1475 = vadd.f32 %v1467, %v1314
        %1484 = vrot.lane.b32.xlu0 %v1293, 96
        %v1485 = vpop.permute.xlu0 %1484
        %1486 = vrot.lane.b32.xlu0 %v1296, 96
        %v1487 = vpop.permute.xlu0 %1486
        %1488 = vrot.lane.b32.xlu0 %v1299, 96
        %v1489 = vpop.permute.xlu0 %1488
        %1490 = vrot.lane.b32.xlu0 %v1302, 96
        %v1491 = vpop.permute.xlu0 %1490
        %1492 = vrot.lane.b32.xlu0 %v1305, 96
        %v1493 = vpop.permute.xlu0 %1492
        %1494 = vrot.lane.b32.xlu0 %v1308, 96
        %v1495 = vpop.permute.xlu0 %1494
        %1496 = vrot.lane.b32.xlu0 %v1311, 96
        %v1497 = vpop.permute.xlu0 %1496
        %1498 = vrot.lane.b32.xlu0 %v1314, 96
        %v1499 = vpop.permute.xlu0 %1498
        %v1508 = vrot.slane %v1485, 1
        %v1509 = vrot.slane %v1487, 1
        %v1510 = vrot.slane %v1489, 1
        %v1511 = vrot.slane %v1491, 1
        %v1512 = vrot.slane %v1493, 1
        %v1513 = vrot.slane %v1495, 1
        %v1514 = vrot.slane %v1497, 1
        %v1515 = vrot.slane %v1499, 1
        %v1516 = vsel %vm841, %v1514, %v1515
        %v1517 = vsel %vm841, %v1513, %v1514
        %v1518 = vsel %vm841, %v1512, %v1513
        %v1519 = vsel %vm841, %v1511, %v1512
        %v1520 = vsel %vm841, %v1510, %v1511
        %v1521 = vsel %vm841, %v1509, %v1510
        %v1522 = vsel %vm841, %v1508, %v1509
        %v1523 = vsel %vm841, %v1515, %v1508
        %v1524 = vadd.f32 %v1468, %v1522
        %v1525 = vadd.f32 %v1469, %v1521
        %v1526 = vadd.f32 %v1470, %v1520
        %v1527 = vadd.f32 %v1471, %v1519
        %v1528 = vadd.f32 %v1472, %v1518
        %v1529 = vadd.f32 %v1473, %v1517
        %v1530 = vadd.f32 %v1474, %v1516
        %v1531 = vadd.f32 %v1475, %v1523
        %1532 = vrot.lane.b32.xlu0 %v1293, 64
        %v1533 = vpop.permute.xlu0 %1532
        %1534 = vrot.lane.b32.xlu0 %v1296, 64
        %v1535 = vpop.permute.xlu0 %1534
        %1536 = vrot.lane.b32.xlu0 %v1299, 64
        %v1537 = vpop.permute.xlu0 %1536
        %1538 = vrot.lane.b32.xlu0 %v1302, 64
        %v1539 = vpop.permute.xlu0 %1538
        %1540 = vrot.lane.b32.xlu0 %v1305, 64
        %v1541 = vpop.permute.xlu0 %1540
        %1542 = vrot.lane.b32.xlu0 %v1308, 64
        %v1543 = vpop.permute.xlu0 %1542
        %1544 = vrot.lane.b32.xlu0 %v1311, 64
        %v1545 = vpop.permute.xlu0 %1544
        %1546 = vrot.lane.b32.xlu0 %v1314, 64
        %v1547 = vpop.permute.xlu0 %1546
        %v1556 = vrot.slane %v1533, 7
        %v1557 = vrot.slane %v1535, 7
        %v1558 = vrot.slane %v1537, 7
        %v1559 = vrot.slane %v1539, 7
        %v1560 = vrot.slane %v1541, 7
        %v1561 = vrot.slane %v1543, 7
        %v1562 = vrot.slane %v1545, 7
        %v1563 = vrot.slane %v1547, 7
        %v1564 = vsel %vm760, %v1562, %v1563
        %v1565 = vsel %vm760, %v1561, %v1562
        %v1566 = vsel %vm760, %v1560, %v1561
        %v1567 = vsel %vm760, %v1559, %v1560
        %v1568 = vsel %vm760, %v1558, %v1559
        %v1569 = vsel %vm760, %v1557, %v1558
        %v1570 = vsel %vm760, %v1556, %v1557
        %v1571 = vsel %vm760, %v1563, %v1556
        %v1572 = vadd.f32 %v1524, %v1570
        %v1573 = vadd.f32 %v1525, %v1569
        %v1574 = vadd.f32 %v1526, %v1568
        %v1575 = vadd.f32 %v1527, %v1567
        %v1576 = vadd.f32 %v1528, %v1566
        %v1577 = vadd.f32 %v1529, %v1565
        %v1578 = vadd.f32 %v1530, %v1564
        %v1579 = vadd.f32 %v1531, %v1571
        %1580 = vrot.lane.b32.xlu0 %v1293, 32
        %v1581 = vpop.permute.xlu0 %1580
        %1582 = vrot.lane.b32.xlu0 %v1296, 32
        %v1583 = vpop.permute.xlu0 %1582
        %1584 = vrot.lane.b32.xlu0 %v1299, 32
        %v1585 = vpop.permute.xlu0 %1584
        %1586 = vrot.lane.b32.xlu0 %v1302, 32
        %v1587 = vpop.permute.xlu0 %1586
        %1588 = vrot.lane.b32.xlu0 %v1305, 32
        %v1589 = vpop.permute.xlu0 %1588
        %1590 = vrot.lane.b32.xlu0 %v1308, 32
        %v1591 = vpop.permute.xlu0 %1590
        %1592 = vrot.lane.b32.xlu0 %v1311, 32
        %v1593 = vpop.permute.xlu0 %1592
        %1594 = vrot.lane.b32.xlu0 %v1314, 32
        %v1595 = vpop.permute.xlu0 %1594
        %v1604 = vadd.f32 %v1572, %v1583
        %v1605 = vadd.f32 %v1573, %v1585
        %v1606 = vadd.f32 %v1574, %v1587
        %v1607 = vadd.f32 %v1575, %v1589
        %v1608 = vadd.f32 %v1576, %v1591
        %v1609 = vadd.f32 %v1577, %v1593
        %v1610 = vadd.f32 %v1578, %v1595
        %v1611 = vadd.f32 %v1579, %v1581
        %v1612 = vrot.slane %v1294, 1
        %v1613 = vrot.slane %v1297, 1
        %v1614 = vrot.slane %v1300, 1
        %v1615 = vrot.slane %v1303, 1
        %v1616 = vrot.slane %v1306, 1
        %v1617 = vrot.slane %v1309, 1
        %v1618 = vrot.slane %v1312, 1
        %v1619 = vrot.slane %v1315, 1
        %v1620 = vsel %vm841, %v1618, %v1619
        %v1621 = vsel %vm841, %v1617, %v1618
        %v1622 = vsel %vm841, %v1616, %v1617
        %v1623 = vsel %vm841, %v1615, %v1616
        %v1624 = vsel %vm841, %v1614, %v1615
        %v1625 = vsel %vm841, %v1613, %v1614
        %v1626 = vsel %vm841, %v1612, %v1613
        %v1627 = vsel %vm841, %v1619, %v1612
        %v1628 = vadd.f32 %v1604, %v1625
        %v1629 = vadd.f32 %v1605, %v1624
        %v1630 = vadd.f32 %v1606, %v1623
        %v1631 = vadd.f32 %v1607, %v1622
        %v1632 = vadd.f32 %v1608, %v1621
        %v1633 = vadd.f32 %v1609, %v1620
        %v1634 = vadd.f32 %v1610, %v1627
        %v1635 = vadd.f32 %v1611, %v1626
        %v1637 = vlaneseq
        %v1638 = vshrl.u32 %v1637, 7
        %v1639 = vsub.s32 0, %v1638
        %v1640 = vrot.slane %v1104, %v1639
        %v1642 = vadd.f32 %v1628, %v1640
        %v1643 = vadd.f32 %v1629, %v1640
        %v1644 = vadd.f32 %v1630, %v1640
        %v1645 = vadd.f32 %v1631, %v1640
        %v1646 = vadd.f32 %v1632, %v1640
        %v1647 = vadd.f32 %v1633, %v1640
        %v1648 = vadd.f32 %v1634, %v1640
        %v1649 = vadd.f32 %v1635, %v1640
        %v1650 = vmax.f32 %v1642, 0.0
        %v1651 = vmax.f32 %v1643, 0.0
        %v1652 = vmax.f32 %v1644, 0.0
        %v1653 = vmax.f32 %v1645, 0.0
        %v1654 = vmax.f32 %v1646, 0.0
        %v1655 = vmax.f32 %v1647, 0.0
        %v1656 = vmax.f32 %v1648, 0.0
        %v1657 = vmax.f32 %v1649, 0.0
        %s1658 = scalar_lea.vmem [#allocation3], 48
        %v1659 = vld [vmem:[%s1658] sm:$0xff]
        %v1660 = vld [vmem:[%s1658 + $0x8] sm:$0xf]
        %v1661 = vld [vmem:[%s1658 + $0xc] sm:$0xff]
        %v1662 = vld [vmem:[%s1658 + $0x14] sm:$0xf]
        %v1663 = vld [vmem:[%s1658 + $0x18] sm:$0xff]
        %v1664 = vld [vmem:[%s1658 + $0x20] sm:$0xf]
        %v1665 = vld [vmem:[%s1658 + $0x24] sm:$0xff]
        %v1666 = vld [vmem:[%s1658 + $0x2c] sm:$0xf]
        %s1667 = scalar_lea.vmem %s5, 1
        %v1668 = vld [vmem:[%s1667] sm:$0x1]
        %v1669 = vpack.c.bf16 %v1651, %v1650
        %v1670 = vpack.c.bf16 %v1653, %v1652
        %v1671 = vpack.c.bf16 %v1655, %v1654
        %v1672 = vpack.c.bf16 %v1657, %v1656
        %v1681 = vunpack.c.l.b16 %v1659
        %v1682 = vunpack.c.h.b16 %v1659
        %v1683 = vunpack.c.l.b16 %v1660
        %v1684 = vunpack.c.l.b16 %v1661
        %v1685 = vunpack.c.h.b16 %v1661
        %v1686 = vunpack.c.l.b16 %v1662
        %v1687 = vunpack.c.l.b16 %v1663
        %v1688 = vunpack.c.h.b16 %v1663
        %v1689 = vunpack.c.l.b16 %v1664
        %v1690 = vunpack.c.l.b16 %v1665
        %v1691 = vunpack.c.h.b16 %v1665
        %v1692 = vunpack.c.l.b16 %v1666
        %v1693 = vpack.c.b16 %v1684, %v1681
        %v1694 = vpack.c.b16 %v1685, %v1682
        %v1695 = vpack.c.b16 %v1686, %v1683
        %v1696 = vpack.c.b16 %v1690, %v1687
        %v1697 = vpack.c.b16 %v1691, %v1688
        %v1698 = vpack.c.b16 %v1692, %v1689
        %v1706 = vsel %vm1141, %v1669, 0
        %v1709 = vsel %vm1141, %v1670, 0
        %v1712 = vsel %vm1141, %v1671, 0
        %v1715 = vsel %vm1141, %v1672, 0
        %1717 = vmatprep.subr.bf16.mxu0 0
        %1718 = vmatpush1.bf16.msra.mxu0 0
        %1719 = vmatprep.subr.bf16.mxu0 0
        %1720 = vmatpush1.bf16.msra.mxu0 0
        %1721 = vmatprep.subr.bf16.mxu0 0
        %1722 = vmatpush1.bf16.msra.mxu0 0
        %1723 = vmatprep.subr.bf16.mxu0 0
        %1724 = vmatpush1.bf16.msra.mxu0 0
        %1725 = vmatprep.subr.bf16.mxu0 0
        %1726 = vmatpush1.bf16.msra.mxu0 0
        %1727 = vmatprep.subr.bf16.mxu0 0
        %1728 = vmatpush1.bf16.msra.mxu0 0
        %1729 = vmatprep.subr.bf16.mxu0 %v1697
        %1730 = vmatpush1.bf16.msra.mxu0 %v1696
        %1731 = vmatprep.subr.bf16.mxu0 %v1694
        %1732 = vmatpush1.bf16.msra.mxu0 %v1693
        %1733 = vmatprep.subr.bf16.mxu0 0
        %1734 = vmatpush2.bf16.msra.mxu0 0
        %1735 = vmatprep.subr.bf16.mxu0 0
        %1736 = vmatpush2.bf16.msra.mxu0 0
        %1737 = vmatprep.subr.bf16.mxu0 0
        %1738 = vmatpush2.bf16.msra.mxu0 0
        %1739 = vmatprep.subr.bf16.mxu0 0
        %1740 = vmatpush2.bf16.msra.mxu0 0
        %1741 = vmatprep.subr.bf16.mxu0 0
        %1742 = vmatpush2.bf16.msra.mxu0 0
        %1743 = vmatprep.subr.bf16.mxu0 0
        %1744 = vmatpush2.bf16.msra.mxu0 0
        %1745 = vmatprep.subr.bf16.mxu0 0
        %1746 = vmatpush2.bf16.msra.mxu0 0
        %1747 = vmatprep.subr.bf16.mxu0 0
        %1748 = vmatpush2.bf16.msra.mxu0 0
        %1749 = vmatprep.mubr.bf16.mxu0 0
        %1750 = vmatmul.mubr.bf16.gmra.mxu0 %v1706
        %v1751 = vpop.f32.mrf.mxu0
        %v1752 = vadd.f32 0.0, %v1751
        %v1753 = vpop.f32.mrf.mxu0
        %v1754 = vadd.f32 0.0, %v1753
        %v1755 = vpop.f32.mrf.mxu0
        %v1756 = vadd.f32 0.0, %v1755
        %v1757 = vpop.f32.mrf.mxu0
        %v1758 = vadd.f32 0.0, %v1757
        %1759 = vmatprep.mubr.bf16.mxu0 0
        %1760 = vmatmul.mubr.bf16.gmra.mxu0 %v1709
        %v1761 = vpop.f32.mrf.mxu0
        %v1762 = vadd.f32 0.0, %v1761
        %v1763 = vpop.f32.mrf.mxu0
        %v1764 = vadd.f32 0.0, %v1763
        %v1765 = vpop.f32.mrf.mxu0
        %v1766 = vadd.f32 0.0, %v1765
        %v1767 = vpop.f32.mrf.mxu0
        %v1768 = vadd.f32 0.0, %v1767
        %1769 = vmatprep.mubr.bf16.mxu0 0
        %1770 = vmatmul.mubr.bf16.gmra.mxu0 %v1712
        %v1771 = vpop.f32.mrf.mxu0
        %v1772 = vadd.f32 0.0, %v1771
        %v1773 = vpop.f32.mrf.mxu0
        %v1774 = vadd.f32 0.0, %v1773
        %v1775 = vpop.f32.mrf.mxu0
        %v1776 = vadd.f32 0.0, %v1775
        %v1777 = vpop.f32.mrf.mxu0
        %v1778 = vadd.f32 0.0, %v1777
        %1779 = vmatprep.mubr.bf16.mxu0 0
        %1780 = vmatmul.mubr.bf16.gmra.mxu0 %v1715
        %v1781 = vpop.f32.mrf.mxu0
        %v1782 = vadd.f32 0.0, %v1781
        %v1783 = vpop.f32.mrf.mxu0
        %v1784 = vadd.f32 0.0, %v1783
        %v1785 = vpop.f32.mrf.mxu0
        %v1786 = vadd.f32 0.0, %v1785
        %v1787 = vpop.f32.mrf.mxu0
        %v1788 = vadd.f32 0.0, %v1787
        %1789 = vdwg.mxu0
        %1790 = vmatprep.subr.bf16.mxu0 0
        %1791 = vmatpush1.bf16.msra.mxu0 0
        %1792 = vmatprep.subr.bf16.mxu0 0
        %1793 = vmatpush1.bf16.msra.mxu0 0
        %1794 = vmatprep.subr.bf16.mxu0 0
        %1795 = vmatpush1.bf16.msra.mxu0 0
        %1796 = vmatprep.subr.bf16.mxu0 0
        %1797 = vmatpush1.bf16.msra.mxu0 0
        %1798 = vmatprep.subr.bf16.mxu0 0
        %1799 = vmatpush1.bf16.msra.mxu0 0
        %1800 = vmatprep.subr.bf16.mxu0 0
        %1801 = vmatpush1.bf16.msra.mxu0 0
        %1802 = vmatprep.subr.bf16.mxu0 0
        %1803 = vmatpush1.bf16.msra.mxu0 %v1698
        %1804 = vmatprep.subr.bf16.mxu0 0
        %1805 = vmatpush1.bf16.msra.mxu0 %v1695
        %1806 = vmatprep.subr.bf16.mxu0 0
        %1807 = vmatpush2.bf16.msra.mxu0 0
        %1808 = vmatprep.subr.bf16.mxu0 0
        %1809 = vmatpush2.bf16.msra.mxu0 0
        %1810 = vmatprep.subr.bf16.mxu0 0
        %1811 = vmatpush2.bf16.msra.mxu0 0
        %1812 = vmatprep.subr.bf16.mxu0 0
        %1813 = vmatpush2.bf16.msra.mxu0 0
        %1814 = vmatprep.subr.bf16.mxu0 0
        %1815 = vmatpush2.bf16.msra.mxu0 0
        %1816 = vmatprep.subr.bf16.mxu0 0
        %1817 = vmatpush2.bf16.msra.mxu0 0
        %1818 = vmatprep.subr.bf16.mxu0 0
        %1819 = vmatpush2.bf16.msra.mxu0 0
        %1820 = vmatprep.subr.bf16.mxu0 0
        %1821 = vmatpush2.bf16.msra.mxu0 0
        %1822 = vmatprep.mubr.bf16.mxu0 0
        %1823 = vmatmul.mubr.bf16.gmra.mxu0 %v1706
        %v1824 = vpop.f32.mrf.mxu0
        %v1825 = vadd.f32 0.0, %v1824
        %v1826 = vpop.f32.mrf.mxu0
        %v1827 = vpop.f32.mrf.mxu0
        %v1828 = vadd.f32 0.0, %v1827
        %v1829 = vpop.f32.mrf.mxu0
        %1830 = vmatprep.mubr.bf16.mxu0 0
        %1831 = vmatmul.mubr.bf16.gmra.mxu0 %v1709
        %v1832 = vpop.f32.mrf.mxu0
        %v1833 = vadd.f32 0.0, %v1832
        %v1834 = vpop.f32.mrf.mxu0
        %v1835 = vpop.f32.mrf.mxu0
        %v1836 = vadd.f32 0.0, %v1835
        %v1837 = vpop.f32.mrf.mxu0
        %1838 = vmatprep.mubr.bf16.mxu0 0
        %1839 = vmatmul.mubr.bf16.gmra.mxu0 %v1712
        %v1840 = vpop.f32.mrf.mxu0
        %v1841 = vadd.f32 0.0, %v1840
        %v1842 = vpop.f32.mrf.mxu0
        %v1843 = vpop.f32.mrf.mxu0
        %v1844 = vadd.f32 0.0, %v1843
        %v1845 = vpop.f32.mrf.mxu0
        %1846 = vmatprep.mubr.bf16.mxu0 0
        %1847 = vmatmul.mubr.bf16.gmra.mxu0 %v1715
        %v1848 = vpop.f32.mrf.mxu0
        %v1849 = vadd.f32 0.0, %v1848
        %v1850 = vpop.f32.mrf.mxu0
        %v1851 = vpop.f32.mrf.mxu0
        %v1852 = vadd.f32 0.0, %v1851
        %v1853 = vpop.f32.mrf.mxu0
        %1854 = vdwg.mxu0
        %v1855 = vmul.f32 %v1752, %v509
        %v1856 = vmul.f32 %v1754, %v510
        %v1857 = vmul.f32 %v1825, %v511
        %v1858 = vmul.f32 %v1756, %v512
        %v1859 = vmul.f32 %v1758, %v513
        %v1860 = vmul.f32 %v1828, %v514
        %v1861 = vmul.f32 %v1762, %v515
        %v1862 = vmul.f32 %v1764, %v516
        %v1863 = vmul.f32 %v1833, %v517
        %v1864 = vmul.f32 %v1766, %v518
        %v1865 = vmul.f32 %v1768, %v519
        %v1866 = vmul.f32 %v1836, %v520
        %v1867 = vmul.f32 %v1772, %v521
        %v1868 = vmul.f32 %v1774, %v522
        %v1869 = vmul.f32 %v1841, %v523
        %v1870 = vmul.f32 %v1776, %v524
        %v1871 = vmul.f32 %v1778, %v525
        %v1872 = vmul.f32 %v1844, %v526
        %v1873 = vmul.f32 %v1782, %v527
        %v1874 = vmul.f32 %v1784, %v528
        %v1875 = vmul.f32 %v1849, %v529
        %v1876 = vmul.f32 %v1786, %v530
        %v1877 = vmul.f32 %v1788, %v531
        %v1878 = vmul.f32 %v1852, %v532
        %v1879 = vrot.slane %v1855, 7
        %v1880 = vrot.slane %v1858, 7
        %v1881 = vrot.slane %v1861, 7
        %v1882 = vrot.slane %v1864, 7
        %v1883 = vrot.slane %v1867, 7
        %v1884 = vrot.slane %v1870, 7
        %v1885 = vrot.slane %v1873, 7
        %v1886 = vrot.slane %v1876, 7
        %v1887 = vsel %vm760, %v1885, %v1886
        %v1888 = vsel %vm760, %v1884, %v1885
        %v1889 = vsel %vm760, %v1883, %v1884
        %v1890 = vsel %vm760, %v1882, %v1883
        %v1891 = vsel %vm760, %v1881, %v1882
        %v1892 = vsel %vm760, %v1880, %v1881
        %v1893 = vsel %vm760, %v1879, %v1880
        %v1894 = vsel %vm760, %v1886, %v1879
        %1903 = vrot.lane.b32.xlu0 %v1855, 96
        %v1904 = vpop.permute.xlu0 %1903
        %1905 = vrot.lane.b32.xlu0 %v1858, 96
        %v1906 = vpop.permute.xlu0 %1905
        %1907 = vrot.lane.b32.xlu0 %v1861, 96
        %v1908 = vpop.permute.xlu0 %1907
        %1909 = vrot.lane.b32.xlu0 %v1864, 96
        %v1910 = vpop.permute.xlu0 %1909
        %1911 = vrot.lane.b32.xlu0 %v1867, 96
        %v1912 = vpop.permute.xlu0 %1911
        %1913 = vrot.lane.b32.xlu0 %v1870, 96
        %v1914 = vpop.permute.xlu0 %1913
        %1915 = vrot.lane.b32.xlu0 %v1873, 96
        %v1916 = vpop.permute.xlu0 %1915
        %1917 = vrot.lane.b32.xlu0 %v1876, 96
        %v1918 = vpop.permute.xlu0 %1917
        %v1927 = vadd.f32 %v1887, %v1918
        %v1928 = vadd.f32 %v1894, %v1904
        %v1929 = vadd.f32 %v1893, %v1906
        %v1930 = vadd.f32 %v1892, %v1908
        %v1931 = vadd.f32 %v1891, %v1910
        %v1932 = vadd.f32 %v1890, %v1912
        %v1933 = vadd.f32 %v1889, %v1914
        %v1934 = vadd.f32 %v1888, %v1916
        %1935 = vrot.lane.b32.xlu0 %v1855, 64
        %v1936 = vpop.permute.xlu0 %1935
        %1937 = vrot.lane.b32.xlu0 %v1858, 64
        %v1938 = vpop.permute.xlu0 %1937
        %1939 = vrot.lane.b32.xlu0 %v1861, 64
        %v1940 = vpop.permute.xlu0 %1939
        %1941 = vrot.lane.b32.xlu0 %v1864, 64
        %v1942 = vpop.permute.xlu0 %1941
        %1943 = vrot.lane.b32.xlu0 %v1867, 64
        %v1944 = vpop.permute.xlu0 %1943
        %1945 = vrot.lane.b32.xlu0 %v1870, 64
        %v1946 = vpop.permute.xlu0 %1945
        %1947 = vrot.lane.b32.xlu0 %v1873, 64
        %v1948 = vpop.permute.xlu0 %1947
        %1949 = vrot.lane.b32.xlu0 %v1876, 64
        %v1950 = vpop.permute.xlu0 %1949
        %v1959 = vrot.slane %v1936, 1
        %v1960 = vrot.slane %v1938, 1
        %v1961 = vrot.slane %v1940, 1
        %v1962 = vrot.slane %v1942, 1
        %v1963 = vrot.slane %v1944, 1
        %v1964 = vrot.slane %v1946, 1
        %v1965 = vrot.slane %v1948, 1
        %v1966 = vrot.slane %v1950, 1
        %v1967 = vsel %vm841, %v1965, %v1966
        %v1968 = vsel %vm841, %v1964, %v1965
        %v1969 = vsel %vm841, %v1963, %v1964
        %v1970 = vsel %vm841, %v1962, %v1963
        %v1971 = vsel %vm841, %v1961, %v1962
        %v1972 = vsel %vm841, %v1960, %v1961
        %v1973 = vsel %vm841, %v1959, %v1960
        %v1974 = vsel %vm841, %v1966, %v1959
        %v1975 = vadd.f32 %v1927, %v1974
        %v1976 = vadd.f32 %v1928, %v1973
        %v1977 = vadd.f32 %v1929, %v1972
        %v1978 = vadd.f32 %v1930, %v1971
        %v1979 = vadd.f32 %v1931, %v1970
        %v1980 = vadd.f32 %v1932, %v1969
        %v1981 = vadd.f32 %v1933, %v1968
        %v1982 = vadd.f32 %v1934, %v1967
        %1983 = vrot.lane.b32.xlu0 %v1855, 32
        %v1984 = vpop.permute.xlu0 %1983
        %1985 = vrot.lane.b32.xlu0 %v1858, 32
        %v1986 = vpop.permute.xlu0 %1985
        %1987 = vrot.lane.b32.xlu0 %v1861, 32
        %v1988 = vpop.permute.xlu0 %1987
        %1989 = vrot.lane.b32.xlu0 %v1864, 32
        %v1990 = vpop.permute.xlu0 %1989
        %1991 = vrot.lane.b32.xlu0 %v1867, 32
        %v1992 = vpop.permute.xlu0 %1991
        %1993 = vrot.lane.b32.xlu0 %v1870, 32
        %v1994 = vpop.permute.xlu0 %1993
        %1995 = vrot.lane.b32.xlu0 %v1873, 32
        %v1996 = vpop.permute.xlu0 %1995
        %1997 = vrot.lane.b32.xlu0 %v1876, 32
        %v1998 = vpop.permute.xlu0 %1997
        %v2007 = vrot.slane %v1984, 7
        %v2008 = vrot.slane %v1986, 7
        %v2009 = vrot.slane %v1988, 7
        %v2010 = vrot.slane %v1990, 7
        %v2011 = vrot.slane %v1992, 7
        %v2012 = vrot.slane %v1994, 7
        %v2013 = vrot.slane %v1996, 7
        %v2014 = vrot.slane %v1998, 7
        %v2015 = vsel %vm760, %v2013, %v2014
        %v2016 = vsel %vm760, %v2012, %v2013
        %v2017 = vsel %vm760, %v2011, %v2012
        %v2018 = vsel %vm760, %v2010, %v2011
        %v2019 = vsel %vm760, %v2009, %v2010
        %v2020 = vsel %vm760, %v2008, %v2009
        %v2021 = vsel %vm760, %v2007, %v2008
        %v2022 = vsel %vm760, %v2014, %v2007
        %v2023 = vadd.f32 %v1975, %v2022
        %v2024 = vadd.f32 %v1976, %v2021
        %v2025 = vadd.f32 %v1977, %v2020
        %v2026 = vadd.f32 %v1978, %v2019
        %v2027 = vadd.f32 %v1979, %v2018
        %v2028 = vadd.f32 %v1980, %v2017
        %v2029 = vadd.f32 %v1981, %v2016
        %v2030 = vadd.f32 %v1982, %v2015
        %v2031 = vadd.f32 %v2023, %v1856
        %v2032 = vadd.f32 %v2024, %v1859
        %v2033 = vadd.f32 %v2025, %v1862
        %v2034 = vadd.f32 %v2026, %v1865
        %v2035 = vadd.f32 %v2027, %v1868
        %v2036 = vadd.f32 %v2028, %v1871
        %v2037 = vadd.f32 %v2029, %v1874
        %v2038 = vadd.f32 %v2030, %v1877
        %2047 = vrot.lane.b32.xlu0 %v1856, 96
        %v2048 = vpop.permute.xlu0 %2047
        %2049 = vrot.lane.b32.xlu0 %v1859, 96
        %v2050 = vpop.permute.xlu0 %2049
        %2051 = vrot.lane.b32.xlu0 %v1862, 96
        %v2052 = vpop.permute.xlu0 %2051
        %2053 = vrot.lane.b32.xlu0 %v1865, 96
        %v2054 = vpop.permute.xlu0 %2053
        %2055 = vrot.lane.b32.xlu0 %v1868, 96
        %v2056 = vpop.permute.xlu0 %2055
        %2057 = vrot.lane.b32.xlu0 %v1871, 96
        %v2058 = vpop.permute.xlu0 %2057
        %2059 = vrot.lane.b32.xlu0 %v1874, 96
        %v2060 = vpop.permute.xlu0 %2059
        %2061 = vrot.lane.b32.xlu0 %v1877, 96
        %v2062 = vpop.permute.xlu0 %2061
        %v2071 = vrot.slane %v2048, 1
        %v2072 = vrot.slane %v2050, 1
        %v2073 = vrot.slane %v2052, 1
        %v2074 = vrot.slane %v2054, 1
        %v2075 = vrot.slane %v2056, 1
        %v2076 = vrot.slane %v2058, 1
        %v2077 = vrot.slane %v2060, 1
        %v2078 = vrot.slane %v2062, 1
        %v2079 = vsel %vm841, %v2077, %v2078
        %v2080 = vsel %vm841, %v2076, %v2077
        %v2081 = vsel %vm841, %v2075, %v2076
        %v2082 = vsel %vm841, %v2074, %v2075
        %v2083 = vsel %vm841, %v2073, %v2074
        %v2084 = vsel %vm841, %v2072, %v2073
        %v2085 = vsel %vm841, %v2071, %v2072
        %v2086 = vsel %vm841, %v2078, %v2071
        %v2087 = vadd.f32 %v2031, %v2085
        %v2088 = vadd.f32 %v2032, %v2084
        %v2089 = vadd.f32 %v2033, %v2083
        %v2090 = vadd.f32 %v2034, %v2082
        %v2091 = vadd.f32 %v2035, %v2081
        %v2092 = vadd.f32 %v2036, %v2080
        %v2093 = vadd.f32 %v2037, %v2079
        %v2094 = vadd.f32 %v2038, %v2086
        %2095 = vrot.lane.b32.xlu0 %v1856, 64
        %v2096 = vpop.permute.xlu0 %2095
        %2097 = vrot.lane.b32.xlu0 %v1859, 64
        %v2098 = vpop.permute.xlu0 %2097
        %2099 = vrot.lane.b32.xlu0 %v1862, 64
        %v2100 = vpop.permute.xlu0 %2099
        %2101 = vrot.lane.b32.xlu0 %v1865, 64
        %v2102 = vpop.permute.xlu0 %2101
        %2103 = vrot.lane.b32.xlu0 %v1868, 64
        %v2104 = vpop.permute.xlu0 %2103
        %2105 = vrot.lane.b32.xlu0 %v1871, 64
        %v2106 = vpop.permute.xlu0 %2105
        %2107 = vrot.lane.b32.xlu0 %v1874, 64
        %v2108 = vpop.permute.xlu0 %2107
        %2109 = vrot.lane.b32.xlu0 %v1877, 64
        %v2110 = vpop.permute.xlu0 %2109
        %v2119 = vrot.slane %v2096, 7
        %v2120 = vrot.slane %v2098, 7
        %v2121 = vrot.slane %v2100, 7
        %v2122 = vrot.slane %v2102, 7
        %v2123 = vrot.slane %v2104, 7
        %v2124 = vrot.slane %v2106, 7
        %v2125 = vrot.slane %v2108, 7
        %v2126 = vrot.slane %v2110, 7
        %v2127 = vsel %vm760, %v2125, %v2126
        %v2128 = vsel %vm760, %v2124, %v2125
        %v2129 = vsel %vm760, %v2123, %v2124
        %v2130 = vsel %vm760, %v2122, %v2123
        %v2131 = vsel %vm760, %v2121, %v2122
        %v2132 = vsel %vm760, %v2120, %v2121
        %v2133 = vsel %vm760, %v2119, %v2120
        %v2134 = vsel %vm760, %v2126, %v2119
        %v2135 = vadd.f32 %v2087, %v2133
        %v2136 = vadd.f32 %v2088, %v2132
        %v2137 = vadd.f32 %v2089, %v2131
        %v2138 = vadd.f32 %v2090, %v2130
        %v2139 = vadd.f32 %v2091, %v2129
        %v2140 = vadd.f32 %v2092, %v2128
        %v2141 = vadd.f32 %v2093, %v2127
        %v2142 = vadd.f32 %v2094, %v2134
        %2143 = vrot.lane.b32.xlu0 %v1856, 32
        %v2144 = vpop.permute.xlu0 %2143
        %2145 = vrot.lane.b32.xlu0 %v1859, 32
        %v2146 = vpop.permute.xlu0 %2145
        %2147 = vrot.lane.b32.xlu0 %v1862, 32
        %v2148 = vpop.permute.xlu0 %2147
        %2149 = vrot.lane.b32.xlu0 %v1865, 32
        %v2150 = vpop.permute.xlu0 %2149
        %2151 = vrot.lane.b32.xlu0 %v1868, 32
        %v2152 = vpop.permute.xlu0 %2151
        %2153 = vrot.lane.b32.xlu0 %v1871, 32
        %v2154 = vpop.permute.xlu0 %2153
        %2155 = vrot.lane.b32.xlu0 %v1874, 32
        %v2156 = vpop.permute.xlu0 %2155
        %2157 = vrot.lane.b32.xlu0 %v1877, 32
        %v2158 = vpop.permute.xlu0 %2157
        %v2167 = vadd.f32 %v2135, %v2146
        %v2168 = vadd.f32 %v2136, %v2148
        %v2169 = vadd.f32 %v2137, %v2150
        %v2170 = vadd.f32 %v2138, %v2152
        %v2171 = vadd.f32 %v2139, %v2154
        %v2172 = vadd.f32 %v2140, %v2156
        %v2173 = vadd.f32 %v2141, %v2158
        %v2174 = vadd.f32 %v2142, %v2144
        %v2175 = vrot.slane %v1857, 1
        %v2176 = vrot.slane %v1860, 1
        %v2177 = vrot.slane %v1863, 1
        %v2178 = vrot.slane %v1866, 1
        %v2179 = vrot.slane %v1869, 1
        %v2180 = vrot.slane %v1872, 1
        %v2181 = vrot.slane %v1875, 1
        %v2182 = vrot.slane %v1878, 1
        %v2183 = vsel %vm841, %v2181, %v2182
        %v2184 = vsel %vm841, %v2180, %v2181
        %v2185 = vsel %vm841, %v2179, %v2180
        %v2186 = vsel %vm841, %v2178, %v2179
        %v2187 = vsel %vm841, %v2177, %v2178
        %v2188 = vsel %vm841, %v2176, %v2177
        %v2189 = vsel %vm841, %v2175, %v2176
        %v2190 = vsel %vm841, %v2182, %v2175
        %v2191 = vadd.f32 %v2167, %v2188
        %v2192 = vadd.f32 %v2168, %v2187
        %v2193 = vadd.f32 %v2169, %v2186
        %v2194 = vadd.f32 %v2170, %v2185
        %v2195 = vadd.f32 %v2171, %v2184
        %v2196 = vadd.f32 %v2172, %v2183
        %v2197 = vadd.f32 %v2173, %v2190
        %v2198 = vadd.f32 %v2174, %v2189
        %v2200 = vlaneseq
        %v2201 = vshrl.u32 %v2200, 7
        %v2202 = vsub.s32 0, %v2201
        %v2203 = vrot.slane %v1668, %v2202
        %v2205 = vadd.f32 %v2191, %v2203
        %v2206 = vadd.f32 %v2192, %v2203
        %v2207 = vadd.f32 %v2193, %v2203
        %v2208 = vadd.f32 %v2194, %v2203
        %v2209 = vadd.f32 %v2195, %v2203
        %v2210 = vadd.f32 %v2196, %v2203
        %v2211 = vadd.f32 %v2197, %v2203
        %v2212 = vadd.f32 %v2198, %v2203
        %v2213 = vadd.f32 %v2205, %v1088
        %v2214 = vadd.f32 %v2206, %v1089
        %v2215 = vadd.f32 %v2207, %v1090
        %v2216 = vadd.f32 %v2208, %v1091
        %v2217 = vadd.f32 %v2209, %v1092
        %v2218 = vadd.f32 %v2210, %v1093
        %v2219 = vadd.f32 %v2211, %v1094
        %v2220 = vadd.f32 %v2212, %v1095
        %v2221 = vmax.f32 %v2213, 0.0
        %v2222 = vmax.f32 %v2214, 0.0
        %v2223 = vmax.f32 %v2215, 0.0
        %v2224 = vmax.f32 %v2216, 0.0
        %v2225 = vmax.f32 %v2217, 0.0
        %v2226 = vmax.f32 %v2218, 0.0
        %v2227 = vmax.f32 %v2219, 0.0
        %v2228 = vmax.f32 %v2220, 0.0
        %s2229 = scalar_lea.vmem [#allocation3], 96
        %v2230 = vld [vmem:[%s2229] sm:$0xff]
        %v2231 = vld [vmem:[%s2229 + $0x8] sm:$0xf]
        %v2232 = vld [vmem:[%s2229 + $0xc] sm:$0xff]
        %v2233 = vld [vmem:[%s2229 + $0x14] sm:$0xf]
        %v2234 = vld [vmem:[%s2229 + $0x18] sm:$0xff]
        %v2235 = vld [vmem:[%s2229 + $0x20] sm:$0xf]
        %v2236 = vld [vmem:[%s2229 + $0x24] sm:$0xff]
        %v2237 = vld [vmem:[%s2229 + $0x2c] sm:$0xf]
        %s2238 = scalar_lea.vmem %s5, 2
        %v2239 = vld [vmem:[%s2238] sm:$0x1]
        %v2240 = vpack.c.bf16 %v2222, %v2221
        %v2241 = vpack.c.bf16 %v2224, %v2223
        %v2242 = vpack.c.bf16 %v2226, %v2225
        %v2243 = vpack.c.bf16 %v2228, %v2227
        %v2252 = vunpack.c.l.b16 %v2230
        %v2253 = vunpack.c.h.b16 %v2230
        %v2254 = vunpack.c.l.b16 %v2231
        %v2255 = vunpack.c.l.b16 %v2232
        %v2256 = vunpack.c.h.b16 %v2232
        %v2257 = vunpack.c.l.b16 %v2233
        %v2258 = vunpack.c.l.b16 %v2234
        %v2259 = vunpack.c.h.b16 %v2234
        %v2260 = vunpack.c.l.b16 %v2235
        %v2261 = vunpack.c.l.b16 %v2236
        %v2262 = vunpack.c.h.b16 %v2236
        %v2263 = vunpack.c.l.b16 %v2237
        %v2264 = vpack.c.b16 %v2255, %v2252
        %v2265 = vpack.c.b16 %v2256, %v2253
        %v2266 = vpack.c.b16 %v2257, %v2254
        %v2267 = vpack.c.b16 %v2261, %v2258
        %v2268 = vpack.c.b16 %v2262, %v2259
        %v2269 = vpack.c.b16 %v2263, %v2260
        %v2277 = vsel %vm1141, %v2240, 0
        %v2280 = vsel %vm1141, %v2241, 0
        %v2283 = vsel %vm1141, %v2242, 0
        %v2286 = vsel %vm1141, %v2243, 0
        %2288 = vmatprep.subr.bf16.mxu0 0
        %2289 = vmatpush1.bf16.msra.mxu0 0
        %2290 = vmatprep.subr.bf16.mxu0 0
        %2291 = vmatpush1.bf16.msra.mxu0 0
        %2292 = vmatprep.subr.bf16.mxu0 0
        %2293 = vmatpush1.bf16.msra.mxu0 0
        %2294 = vmatprep.subr.bf16.mxu0 0
        %2295 = vmatpush1.bf16.msra.mxu0 0
        %2296 = vmatprep.subr.bf16.mxu0 0
        %2297 = vmatpush1.bf16.msra.mxu0 0
        %2298 = vmatprep.subr.bf16.mxu0 0
        %2299 = vmatpush1.bf16.msra.mxu0 0
        %2300 = vmatprep.subr.bf16.mxu0 %v2268
        %2301 = vmatpush1.bf16.msra.mxu0 %v2267
        %2302 = vmatprep.subr.bf16.mxu0 %v2265
        %2303 = vmatpush1.bf16.msra.mxu0 %v2264
        %2304 = vmatprep.subr.bf16.mxu0 0
        %2305 = vmatpush2.bf16.msra.mxu0 0
        %2306 = vmatprep.subr.bf16.mxu0 0
        %2307 = vmatpush2.bf16.msra.mxu0 0
        %2308 = vmatprep.subr.bf16.mxu0 0
        %2309 = vmatpush2.bf16.msra.mxu0 0
        %2310 = vmatprep.subr.bf16.mxu0 0
        %2311 = vmatpush2.bf16.msra.mxu0 0
        %2312 = vmatprep.subr.bf16.mxu0 0
        %2313 = vmatpush2.bf16.msra.mxu0 0
        %2314 = vmatprep.subr.bf16.mxu0 0
        %2315 = vmatpush2.bf16.msra.mxu0 0
        %2316 = vmatprep.subr.bf16.mxu0 0
        %2317 = vmatpush2.bf16.msra.mxu0 0
        %2318 = vmatprep.subr.bf16.mxu0 0
        %2319 = vmatpush2.bf16.msra.mxu0 0
        %2320 = vmatprep.mubr.bf16.mxu0 0
        %2321 = vmatmul.mubr.bf16.gmra.mxu0 %v2277
        %v2322 = vpop.f32.mrf.mxu0
        %v2323 = vadd.f32 0.0, %v2322
        %v2324 = vpop.f32.mrf.mxu0
        %v2325 = vadd.f32 0.0, %v2324
        %v2326 = vpop.f32.mrf.mxu0
        %v2327 = vadd.f32 0.0, %v2326
        %v2328 = vpop.f32.mrf.mxu0
        %v2329 = vadd.f32 0.0, %v2328
        %2330 = vmatprep.mubr.bf16.mxu0 0
        %2331 = vmatmul.mubr.bf16.gmra.mxu0 %v2280
        %v2332 = vpop.f32.mrf.mxu0
        %v2333 = vadd.f32 0.0, %v2332
        %v2334 = vpop.f32.mrf.mxu0
        %v2335 = vadd.f32 0.0, %v2334
        %v2336 = vpop.f32.mrf.mxu0
        %v2337 = vadd.f32 0.0, %v2336
        %v2338 = vpop.f32.mrf.mxu0
        %v2339 = vadd.f32 0.0, %v2338
        %2340 = vmatprep.mubr.bf16.mxu0 0
        %2341 = vmatmul.mubr.bf16.gmra.mxu0 %v2283
        %v2342 = vpop.f32.mrf.mxu0
        %v2343 = vadd.f32 0.0, %v2342
        %v2344 = vpop.f32.mrf.mxu0
        %v2345 = vadd.f32 0.0, %v2344
        %v2346 = vpop.f32.mrf.mxu0
        %v2347 = vadd.f32 0.0, %v2346
        %v2348 = vpop.f32.mrf.mxu0
        %v2349 = vadd.f32 0.0, %v2348
        %2350 = vmatprep.mubr.bf16.mxu0 0
        %2351 = vmatmul.mubr.bf16.gmra.mxu0 %v2286
        %v2352 = vpop.f32.mrf.mxu0
        %v2353 = vadd.f32 0.0, %v2352
        %v2354 = vpop.f32.mrf.mxu0
        %v2355 = vadd.f32 0.0, %v2354
        %v2356 = vpop.f32.mrf.mxu0
        %v2357 = vadd.f32 0.0, %v2356
        %v2358 = vpop.f32.mrf.mxu0
        %v2359 = vadd.f32 0.0, %v2358
        %2360 = vdwg.mxu0
        %2361 = vmatprep.subr.bf16.mxu0 0
        %2362 = vmatpush1.bf16.msra.mxu0 0
        %2363 = vmatprep.subr.bf16.mxu0 0
        %2364 = vmatpush1.bf16.msra.mxu0 0
        %2365 = vmatprep.subr.bf16.mxu0 0
        %2366 = vmatpush1.bf16.msra.mxu0 0
        %2367 = vmatprep.subr.bf16.mxu0 0
        %2368 = vmatpush1.bf16.msra.mxu0 0
        %2369 = vmatprep.subr.bf16.mxu0 0
        %2370 = vmatpush1.bf16.msra.mxu0 0
        %2371 = vmatprep.subr.bf16.mxu0 0
        %2372 = vmatpush1.bf16.msra.mxu0 0
        %2373 = vmatprep.subr.bf16.mxu0 0
        %2374 = vmatpush1.bf16.msra.mxu0 %v2269
        %2375 = vmatprep.subr.bf16.mxu0 0
        %2376 = vmatpush1.bf16.msra.mxu0 %v2266
        %2377 = vmatprep.subr.bf16.mxu0 0
        %2378 = vmatpush2.bf16.msra.mxu0 0
        %2379 = vmatprep.subr.bf16.mxu0 0
        %2380 = vmatpush2.bf16.msra.mxu0 0
        %2381 = vmatprep.subr.bf16.mxu0 0
        %2382 = vmatpush2.bf16.msra.mxu0 0
        %2383 = vmatprep.subr.bf16.mxu0 0
        %2384 = vmatpush2.bf16.msra.mxu0 0
        %2385 = vmatprep.subr.bf16.mxu0 0
        %2386 = vmatpush2.bf16.msra.mxu0 0
        %2387 = vmatprep.subr.bf16.mxu0 0
        %2388 = vmatpush2.bf16.msra.mxu0 0
        %2389 = vmatprep.subr.bf16.mxu0 0
        %2390 = vmatpush2.bf16.msra.mxu0 0
        %2391 = vmatprep.subr.bf16.mxu0 0
        %2392 = vmatpush2.bf16.msra.mxu0 0
        %2393 = vmatprep.mubr.bf16.mxu0 0
        %2394 = vmatmul.mubr.bf16.gmra.mxu0 %v2277
        %v2395 = vpop.f32.mrf.mxu0
        %v2396 = vadd.f32 0.0, %v2395
        %v2397 = vpop.f32.mrf.mxu0
        %v2398 = vpop.f32.mrf.mxu0
        %v2399 = vadd.f32 0.0, %v2398
        %v2400 = vpop.f32.mrf.mxu0
        %2401 = vmatprep.mubr.bf16.mxu0 0
        %2402 = vmatmul.mubr.bf16.gmra.mxu0 %v2280
        %v2403 = vpop.f32.mrf.mxu0
        %v2404 = vadd.f32 0.0, %v2403
        %v2405 = vpop.f32.mrf.mxu0
        %v2406 = vpop.f32.mrf.mxu0
        %v2407 = vadd.f32 0.0, %v2406
        %v2408 = vpop.f32.mrf.mxu0
        %2409 = vmatprep.mubr.bf16.mxu0 0
        %2410 = vmatmul.mubr.bf16.gmra.mxu0 %v2283
        %v2411 = vpop.f32.mrf.mxu0
        %v2412 = vadd.f32 0.0, %v2411
        %v2413 = vpop.f32.mrf.mxu0
        %v2414 = vpop.f32.mrf.mxu0
        %v2415 = vadd.f32 0.0, %v2414
        %v2416 = vpop.f32.mrf.mxu0
        %2417 = vmatprep.mubr.bf16.mxu0 0
        %2418 = vmatmul.mubr.bf16.gmra.mxu0 %v2286
        %v2419 = vpop.f32.mrf.mxu0
        %v2420 = vadd.f32 0.0, %v2419
        %v2421 = vpop.f32.mrf.mxu0
        %v2422 = vpop.f32.mrf.mxu0
        %v2423 = vadd.f32 0.0, %v2422
        %v2424 = vpop.f32.mrf.mxu0
        %2425 = vdwg.mxu0
        %v2426 = vmul.f32 %v2323, %v509
        %v2427 = vmul.f32 %v2325, %v510
        %v2428 = vmul.f32 %v2396, %v511
        %v2429 = vmul.f32 %v2327, %v512
        %v2430 = vmul.f32 %v2329, %v513
        %v2431 = vmul.f32 %v2399, %v514
        %v2432 = vmul.f32 %v2333, %v515
        %v2433 = vmul.f32 %v2335, %v516
        %v2434 = vmul.f32 %v2404, %v517
        %v2435 = vmul.f32 %v2337, %v518
        %v2436 = vmul.f32 %v2339, %v519
        %v2437 = vmul.f32 %v2407, %v520
        %v2438 = vmul.f32 %v2343, %v521
        %v2439 = vmul.f32 %v2345, %v522
        %v2440 = vmul.f32 %v2412, %v523
        %v2441 = vmul.f32 %v2347, %v524
        %v2442 = vmul.f32 %v2349, %v525
        %v2443 = vmul.f32 %v2415, %v526
        %v2444 = vmul.f32 %v2353, %v527
        %v2445 = vmul.f32 %v2355, %v528
        %v2446 = vmul.f32 %v2420, %v529
        %v2447 = vmul.f32 %v2357, %v530
        %v2448 = vmul.f32 %v2359, %v531
        %v2449 = vmul.f32 %v2423, %v532
        %v2450 = vrot.slane %v2426, 7
        %v2451 = vrot.slane %v2429, 7
        %v2452 = vrot.slane %v2432, 7
        %v2453 = vrot.slane %v2435, 7
        %v2454 = vrot.slane %v2438, 7
        %v2455 = vrot.slane %v2441, 7
        %v2456 = vrot.slane %v2444, 7
        %v2457 = vrot.slane %v2447, 7
        %v2458 = vsel %vm760, %v2456, %v2457
        %v2459 = vsel %vm760, %v2455, %v2456
        %v2460 = vsel %vm760, %v2454, %v2455
        %v2461 = vsel %vm760, %v2453, %v2454
        %v2462 = vsel %vm760, %v2452, %v2453
        %v2463 = vsel %vm760, %v2451, %v2452
        %v2464 = vsel %vm760, %v2450, %v2451
        %v2465 = vsel %vm760, %v2457, %v2450
        %2474 = vrot.lane.b32.xlu0 %v2426, 96
        %v2475 = vpop.permute.xlu0 %2474
        %2476 = vrot.lane.b32.xlu0 %v2429, 96
        %v2477 = vpop.permute.xlu0 %2476
        %2478 = vrot.lane.b32.xlu0 %v2432, 96
        %v2479 = vpop.permute.xlu0 %2478
        %2480 = vrot.lane.b32.xlu0 %v2435, 96
        %v2481 = vpop.permute.xlu0 %2480
        %2482 = vrot.lane.b32.xlu0 %v2438, 96
        %v2483 = vpop.permute.xlu0 %2482
        %2484 = vrot.lane.b32.xlu0 %v2441, 96
        %v2485 = vpop.permute.xlu0 %2484
        %2486 = vrot.lane.b32.xlu0 %v2444, 96
        %v2487 = vpop.permute.xlu0 %2486
        %2488 = vrot.lane.b32.xlu0 %v2447, 96
        %v2489 = vpop.permute.xlu0 %2488
        %v2498 = vadd.f32 %v2458, %v2489
        %v2499 = vadd.f32 %v2465, %v2475
        %v2500 = vadd.f32 %v2464, %v2477
        %v2501 = vadd.f32 %v2463, %v2479
        %v2502 = vadd.f32 %v2462, %v2481
        %v2503 = vadd.f32 %v2461, %v2483
        %v2504 = vadd.f32 %v2460, %v2485
        %v2505 = vadd.f32 %v2459, %v2487
        %2506 = vrot.lane.b32.xlu0 %v2426, 64
        %v2507 = vpop.permute.xlu0 %2506
        %2508 = vrot.lane.b32.xlu0 %v2429, 64
        %v2509 = vpop.permute.xlu0 %2508
        %2510 = vrot.lane.b32.xlu0 %v2432, 64
        %v2511 = vpop.permute.xlu0 %2510
        %2512 = vrot.lane.b32.xlu0 %v2435, 64
        %v2513 = vpop.permute.xlu0 %2512
        %2514 = vrot.lane.b32.xlu0 %v2438, 64
        %v2515 = vpop.permute.xlu0 %2514
        %2516 = vrot.lane.b32.xlu0 %v2441, 64
        %v2517 = vpop.permute.xlu0 %2516
        %2518 = vrot.lane.b32.xlu0 %v2444, 64
        %v2519 = vpop.permute.xlu0 %2518
        %2520 = vrot.lane.b32.xlu0 %v2447, 64
        %v2521 = vpop.permute.xlu0 %2520
        %v2530 = vrot.slane %v2507, 1
        %v2531 = vrot.slane %v2509, 1
        %v2532 = vrot.slane %v2511, 1
        %v2533 = vrot.slane %v2513, 1
        %v2534 = vrot.slane %v2515, 1
        %v2535 = vrot.slane %v2517, 1
        %v2536 = vrot.slane %v2519, 1
        %v2537 = vrot.slane %v2521, 1
        %v2538 = vsel %vm841, %v2536, %v2537
        %v2539 = vsel %vm841, %v2535, %v2536
        %v2540 = vsel %vm841, %v2534, %v2535
        %v2541 = vsel %vm841, %v2533, %v2534
        %v2542 = vsel %vm841, %v2532, %v2533
        %v2543 = vsel %vm841, %v2531, %v2532
        %v2544 = vsel %vm841, %v2530, %v2531
        %v2545 = vsel %vm841, %v2537, %v2530
        %v2546 = vadd.f32 %v2498, %v2545
        %v2547 = vadd.f32 %v2499, %v2544
        %v2548 = vadd.f32 %v2500, %v2543
        %v2549 = vadd.f32 %v2501, %v2542
        %v2550 = vadd.f32 %v2502, %v2541
        %v2551 = vadd.f32 %v2503, %v2540
        %v2552 = vadd.f32 %v2504, %v2539
        %v2553 = vadd.f32 %v2505, %v2538
        %2554 = vrot.lane.b32.xlu0 %v2426, 32
        %v2555 = vpop.permute.xlu0 %2554
        %2556 = vrot.lane.b32.xlu0 %v2429, 32
        %v2557 = vpop.permute.xlu0 %2556
        %2558 = vrot.lane.b32.xlu0 %v2432, 32
        %v2559 = vpop.permute.xlu0 %2558
        %2560 = vrot.lane.b32.xlu0 %v2435, 32
        %v2561 = vpop.permute.xlu0 %2560
        %2562 = vrot.lane.b32.xlu0 %v2438, 32
        %v2563 = vpop.permute.xlu0 %2562
        %2564 = vrot.lane.b32.xlu0 %v2441, 32
        %v2565 = vpop.permute.xlu0 %2564
        %2566 = vrot.lane.b32.xlu0 %v2444, 32
        %v2567 = vpop.permute.xlu0 %2566
        %2568 = vrot.lane.b32.xlu0 %v2447, 32
        %v2569 = vpop.permute.xlu0 %2568
        %v2578 = vrot.slane %v2555, 7
        %v2579 = vrot.slane %v2557, 7
        %v2580 = vrot.slane %v2559, 7
        %v2581 = vrot.slane %v2561, 7
        %v2582 = vrot.slane %v2563, 7
        %v2583 = vrot.slane %v2565, 7
        %v2584 = vrot.slane %v2567, 7
        %v2585 = vrot.slane %v2569, 7
        %v2586 = vsel %vm760, %v2584, %v2585
        %v2587 = vsel %vm760, %v2583, %v2584
        %v2588 = vsel %vm760, %v2582, %v2583
        %v2589 = vsel %vm760, %v2581, %v2582
        %v2590 = vsel %vm760, %v2580, %v2581
        %v2591 = vsel %vm760, %v2579, %v2580
        %v2592 = vsel %vm760, %v2578, %v2579
        %v2593 = vsel %vm760, %v2585, %v2578
        %v2594 = vadd.f32 %v2546, %v2593
        %v2595 = vadd.f32 %v2547, %v2592
        %v2596 = vadd.f32 %v2548, %v2591
        %v2597 = vadd.f32 %v2549, %v2590
        %v2598 = vadd.f32 %v2550, %v2589
        %v2599 = vadd.f32 %v2551, %v2588
        %v2600 = vadd.f32 %v2552, %v2587
        %v2601 = vadd.f32 %v2553, %v2586
        %v2602 = vadd.f32 %v2594, %v2427
        %v2603 = vadd.f32 %v2595, %v2430
        %v2604 = vadd.f32 %v2596, %v2433
        %v2605 = vadd.f32 %v2597, %v2436
        %v2606 = vadd.f32 %v2598, %v2439
        %v2607 = vadd.f32 %v2599, %v2442
        %v2608 = vadd.f32 %v2600, %v2445
        %v2609 = vadd.f32 %v2601, %v2448
        %2618 = vrot.lane.b32.xlu0 %v2427, 96
        %v2619 = vpop.permute.xlu0 %2618
        %2620 = vrot.lane.b32.xlu0 %v2430, 96
        %v2621 = vpop.permute.xlu0 %2620
        %2622 = vrot.lane.b32.xlu0 %v2433, 96
        %v2623 = vpop.permute.xlu0 %2622
        %2624 = vrot.lane.b32.xlu0 %v2436, 96
        %v2625 = vpop.permute.xlu0 %2624
        %2626 = vrot.lane.b32.xlu0 %v2439, 96
        %v2627 = vpop.permute.xlu0 %2626
        %2628 = vrot.lane.b32.xlu0 %v2442, 96
        %v2629 = vpop.permute.xlu0 %2628
        %2630 = vrot.lane.b32.xlu0 %v2445, 96
        %v2631 = vpop.permute.xlu0 %2630
        %2632 = vrot.lane.b32.xlu0 %v2448, 96
        %v2633 = vpop.permute.xlu0 %2632
        %v2642 = vrot.slane %v2619, 1
        %v2643 = vrot.slane %v2621, 1
        %v2644 = vrot.slane %v2623, 1
        %v2645 = vrot.slane %v2625, 1
        %v2646 = vrot.slane %v2627, 1
        %v2647 = vrot.slane %v2629, 1
        %v2648 = vrot.slane %v2631, 1
        %v2649 = vrot.slane %v2633, 1
        %v2650 = vsel %vm841, %v2648, %v2649
        %v2651 = vsel %vm841, %v2647, %v2648
        %v2652 = vsel %vm841, %v2646, %v2647
        %v2653 = vsel %vm841, %v2645, %v2646
        %v2654 = vsel %vm841, %v2644, %v2645
        %v2655 = vsel %vm841, %v2643, %v2644
        %v2656 = vsel %vm841, %v2642, %v2643
        %v2657 = vsel %vm841, %v2649, %v2642
        %v2658 = vadd.f32 %v2602, %v2656
        %v2659 = vadd.f32 %v2603, %v2655
        %v2660 = vadd.f32 %v2604, %v2654
        %v2661 = vadd.f32 %v2605, %v2653
        %v2662 = vadd.f32 %v2606, %v2652
        %v2663 = vadd.f32 %v2607, %v2651
        %v2664 = vadd.f32 %v2608, %v2650
        %v2665 = vadd.f32 %v2609, %v2657
        %2666 = vrot.lane.b32.xlu0 %v2427, 64
        %v2667 = vpop.permute.xlu0 %2666
        %2668 = vrot.lane.b32.xlu0 %v2430, 64
        %v2669 = vpop.permute.xlu0 %2668
        %2670 = vrot.lane.b32.xlu0 %v2433, 64
        %v2671 = vpop.permute.xlu0 %2670
        %2672 = vrot.lane.b32.xlu0 %v2436, 64
        %v2673 = vpop.permute.xlu0 %2672
        %2674 = vrot.lane.b32.xlu0 %v2439, 64
        %v2675 = vpop.permute.xlu0 %2674
        %2676 = vrot.lane.b32.xlu0 %v2442, 64
        %v2677 = vpop.permute.xlu0 %2676
        %2678 = vrot.lane.b32.xlu0 %v2445, 64
        %v2679 = vpop.permute.xlu0 %2678
        %2680 = vrot.lane.b32.xlu0 %v2448, 64
        %v2681 = vpop.permute.xlu0 %2680
        %v2690 = vrot.slane %v2667, 7
        %v2691 = vrot.slane %v2669, 7
        %v2692 = vrot.slane %v2671, 7
        %v2693 = vrot.slane %v2673, 7
        %v2694 = vrot.slane %v2675, 7
        %v2695 = vrot.slane %v2677, 7
        %v2696 = vrot.slane %v2679, 7
        %v2697 = vrot.slane %v2681, 7
        %v2698 = vsel %vm760, %v2696, %v2697
        %v2699 = vsel %vm760, %v2695, %v2696
        %v2700 = vsel %vm760, %v2694, %v2695
        %v2701 = vsel %vm760, %v2693, %v2694
        %v2702 = vsel %vm760, %v2692, %v2693
        %v2703 = vsel %vm760, %v2691, %v2692
        %v2704 = vsel %vm760, %v2690, %v2691
        %v2705 = vsel %vm760, %v2697, %v2690
        %v2706 = vadd.f32 %v2658, %v2704
        %v2707 = vadd.f32 %v2659, %v2703
        %v2708 = vadd.f32 %v2660, %v2702
        %v2709 = vadd.f32 %v2661, %v2701
        %v2710 = vadd.f32 %v2662, %v2700
        %v2711 = vadd.f32 %v2663, %v2699
        %v2712 = vadd.f32 %v2664, %v2698
        %v2713 = vadd.f32 %v2665, %v2705
        %2714 = vrot.lane.b32.xlu0 %v2427, 32
        %v2715 = vpop.permute.xlu0 %2714
        %2716 = vrot.lane.b32.xlu0 %v2430, 32
        %v2717 = vpop.permute.xlu0 %2716
        %2718 = vrot.lane.b32.xlu0 %v2433, 32
        %v2719 = vpop.permute.xlu0 %2718
        %2720 = vrot.lane.b32.xlu0 %v2436, 32
        %v2721 = vpop.permute.xlu0 %2720
        %2722 = vrot.lane.b32.xlu0 %v2439, 32
        %v2723 = vpop.permute.xlu0 %2722
        %2724 = vrot.lane.b32.xlu0 %v2442, 32
        %v2725 = vpop.permute.xlu0 %2724
        %2726 = vrot.lane.b32.xlu0 %v2445, 32
        %v2727 = vpop.permute.xlu0 %2726
        %2728 = vrot.lane.b32.xlu0 %v2448, 32
        %v2729 = vpop.permute.xlu0 %2728
        %v2738 = vadd.f32 %v2706, %v2717
        %v2739 = vadd.f32 %v2707, %v2719
        %v2740 = vadd.f32 %v2708, %v2721
        %v2741 = vadd.f32 %v2709, %v2723
        %v2742 = vadd.f32 %v2710, %v2725
        %v2743 = vadd.f32 %v2711, %v2727
        %v2744 = vadd.f32 %v2712, %v2729
        %v2745 = vadd.f32 %v2713, %v2715
        %v2746 = vrot.slane %v2428, 1
        %v2747 = vrot.slane %v2431, 1
        %v2748 = vrot.slane %v2434, 1
        %v2749 = vrot.slane %v2437, 1
        %v2750 = vrot.slane %v2440, 1
        %v2751 = vrot.slane %v2443, 1
        %v2752 = vrot.slane %v2446, 1
        %v2753 = vrot.slane %v2449, 1
        %v2754 = vsel %vm841, %v2752, %v2753
        %v2755 = vsel %vm841, %v2751, %v2752
        %v2756 = vsel %vm841, %v2750, %v2751
        %v2757 = vsel %vm841, %v2749, %v2750
        %v2758 = vsel %vm841, %v2748, %v2749
        %v2759 = vsel %vm841, %v2747, %v2748
        %v2760 = vsel %vm841, %v2746, %v2747
        %v2761 = vsel %vm841, %v2753, %v2746
        %v2762 = vadd.f32 %v2738, %v2759
        %v2763 = vadd.f32 %v2739, %v2758
        %v2764 = vadd.f32 %v2740, %v2757
        %v2765 = vadd.f32 %v2741, %v2756
        %v2766 = vadd.f32 %v2742, %v2755
        %v2767 = vadd.f32 %v2743, %v2754
        %v2768 = vadd.f32 %v2744, %v2761
        %v2769 = vadd.f32 %v2745, %v2760
        %v2771 = vlaneseq
        %v2772 = vshrl.u32 %v2771, 7
        %v2773 = vsub.s32 0, %v2772
        %v2774 = vrot.slane %v2239, %v2773
        %v2776 = vadd.f32 %v2762, %v2774
        %v2777 = vadd.f32 %v2763, %v2774
        %v2778 = vadd.f32 %v2764, %v2774
        %v2779 = vadd.f32 %v2765, %v2774
        %v2780 = vadd.f32 %v2766, %v2774
        %v2781 = vadd.f32 %v2767, %v2774
        %v2782 = vadd.f32 %v2768, %v2774
        %v2783 = vadd.f32 %v2769, %v2774
        %v2784 = vmax.f32 %v2776, 0.0
        %v2785 = vmax.f32 %v2777, 0.0
        %v2786 = vmax.f32 %v2778, 0.0
        %v2787 = vmax.f32 %v2779, 0.0
        %v2788 = vmax.f32 %v2780, 0.0
        %v2789 = vmax.f32 %v2781, 0.0
        %v2790 = vmax.f32 %v2782, 0.0
        %v2791 = vmax.f32 %v2783, 0.0
        %s2792 = scalar_lea.vmem [#allocation3], 144
        %v2793 = vld [vmem:[%s2792] sm:$0xff]
        %v2794 = vld [vmem:[%s2792 + $0x8] sm:$0xf]
        %v2795 = vld [vmem:[%s2792 + $0xc] sm:$0xff]
        %v2796 = vld [vmem:[%s2792 + $0x14] sm:$0xf]
        %v2797 = vld [vmem:[%s2792 + $0x18] sm:$0xff]
        %v2798 = vld [vmem:[%s2792 + $0x20] sm:$0xf]
        %v2799 = vld [vmem:[%s2792 + $0x24] sm:$0xff]
        %v2800 = vld [vmem:[%s2792 + $0x2c] sm:$0xf]
        %s2801 = scalar_lea.vmem %s5, 3
        %v2802 = vld [vmem:[%s2801] sm:$0x1]
        %v2803 = vpack.c.bf16 %v2785, %v2784
        %v2804 = vpack.c.bf16 %v2787, %v2786
        %v2805 = vpack.c.bf16 %v2789, %v2788
        %v2806 = vpack.c.bf16 %v2791, %v2790
        %v2815 = vunpack.c.l.b16 %v2793
        %v2816 = vunpack.c.h.b16 %v2793
        %v2817 = vunpack.c.l.b16 %v2794
        %v2818 = vunpack.c.l.b16 %v2795
        %v2819 = vunpack.c.h.b16 %v2795
        %v2820 = vunpack.c.l.b16 %v2796
        %v2821 = vunpack.c.l.b16 %v2797
        %v2822 = vunpack.c.h.b16 %v2797
        %v2823 = vunpack.c.l.b16 %v2798
        %v2824 = vunpack.c.l.b16 %v2799
        %v2825 = vunpack.c.h.b16 %v2799
        %v2826 = vunpack.c.l.b16 %v2800
        %v2827 = vpack.c.b16 %v2818, %v2815
        %v2828 = vpack.c.b16 %v2819, %v2816
        %v2829 = vpack.c.b16 %v2820, %v2817
        %v2830 = vpack.c.b16 %v2824, %v2821
        %v2831 = vpack.c.b16 %v2825, %v2822
        %v2832 = vpack.c.b16 %v2826, %v2823
        %v2840 = vsel %vm1141, %v2803, 0
        %v2843 = vsel %vm1141, %v2804, 0
        %v2846 = vsel %vm1141, %v2805, 0
        %v2849 = vsel %vm1141, %v2806, 0
        %2851 = vmatprep.subr.bf16.mxu0 0
        %2852 = vmatpush1.bf16.msra.mxu0 0
        %2853 = vmatprep.subr.bf16.mxu0 0
        %2854 = vmatpush1.bf16.msra.mxu0 0
        %2855 = vmatprep.subr.bf16.mxu0 0
        %2856 = vmatpush1.bf16.msra.mxu0 0
        %2857 = vmatprep.subr.bf16.mxu0 0
        %2858 = vmatpush1.bf16.msra.mxu0 0
        %2859 = vmatprep.subr.bf16.mxu0 0
        %2860 = vmatpush1.bf16.msra.mxu0 0
        %2861 = vmatprep.subr.bf16.mxu0 0
        %2862 = vmatpush1.bf16.msra.mxu0 0
        %2863 = vmatprep.subr.bf16.mxu0 %v2831
        %2864 = vmatpush1.bf16.msra.mxu0 %v2830
        %2865 = vmatprep.subr.bf16.mxu0 %v2828
        %2866 = vmatpush1.bf16.msra.mxu0 %v2827
        %2867 = vmatprep.subr.bf16.mxu0 0
        %2868 = vmatpush2.bf16.msra.mxu0 0
        %2869 = vmatprep.subr.bf16.mxu0 0
        %2870 = vmatpush2.bf16.msra.mxu0 0
        %2871 = vmatprep.subr.bf16.mxu0 0
        %2872 = vmatpush2.bf16.msra.mxu0 0
        %2873 = vmatprep.subr.bf16.mxu0 0
        %2874 = vmatpush2.bf16.msra.mxu0 0
        %2875 = vmatprep.subr.bf16.mxu0 0
        %2876 = vmatpush2.bf16.msra.mxu0 0
        %2877 = vmatprep.subr.bf16.mxu0 0
        %2878 = vmatpush2.bf16.msra.mxu0 0
        %2879 = vmatprep.subr.bf16.mxu0 0
        %2880 = vmatpush2.bf16.msra.mxu0 0
        %2881 = vmatprep.subr.bf16.mxu0 0
        %2882 = vmatpush2.bf16.msra.mxu0 0
        %2883 = vmatprep.mubr.bf16.mxu0 0
        %2884 = vmatmul.mubr.bf16.gmra.mxu0 %v2840
        %v2885 = vpop.f32.mrf.mxu0
        %v2886 = vadd.f32 0.0, %v2885
        %v2887 = vpop.f32.mrf.mxu0
        %v2888 = vadd.f32 0.0, %v2887
        %v2889 = vpop.f32.mrf.mxu0
        %v2890 = vadd.f32 0.0, %v2889
        %v2891 = vpop.f32.mrf.mxu0
        %v2892 = vadd.f32 0.0, %v2891
        %2893 = vmatprep.mubr.bf16.mxu0 0
        %2894 = vmatmul.mubr.bf16.gmra.mxu0 %v2843
        %v2895 = vpop.f32.mrf.mxu0
        %v2896 = vadd.f32 0.0, %v2895
        %v2897 = vpop.f32.mrf.mxu0
        %v2898 = vadd.f32 0.0, %v2897
        %v2899 = vpop.f32.mrf.mxu0
        %v2900 = vadd.f32 0.0, %v2899
        %v2901 = vpop.f32.mrf.mxu0
        %v2902 = vadd.f32 0.0, %v2901
        %2903 = vmatprep.mubr.bf16.mxu0 0
        %2904 = vmatmul.mubr.bf16.gmra.mxu0 %v2846
        %v2905 = vpop.f32.mrf.mxu0
        %v2906 = vadd.f32 0.0, %v2905
        %v2907 = vpop.f32.mrf.mxu0
        %v2908 = vadd.f32 0.0, %v2907
        %v2909 = vpop.f32.mrf.mxu0
        %v2910 = vadd.f32 0.0, %v2909
        %v2911 = vpop.f32.mrf.mxu0
        %v2912 = vadd.f32 0.0, %v2911
        %2913 = vmatprep.mubr.bf16.mxu0 0
        %2914 = vmatmul.mubr.bf16.gmra.mxu0 %v2849
        %v2915 = vpop.f32.mrf.mxu0
        %v2916 = vadd.f32 0.0, %v2915
        %v2917 = vpop.f32.mrf.mxu0
        %v2918 = vadd.f32 0.0, %v2917
        %v2919 = vpop.f32.mrf.mxu0
        %v2920 = vadd.f32 0.0, %v2919
        %v2921 = vpop.f32.mrf.mxu0
        %v2922 = vadd.f32 0.0, %v2921
        %2923 = vdwg.mxu0
        %2924 = vmatprep.subr.bf16.mxu0 0
        %2925 = vmatpush1.bf16.msra.mxu0 0
        %2926 = vmatprep.subr.bf16.mxu0 0
        %2927 = vmatpush1.bf16.msra.mxu0 0
        %2928 = vmatprep.subr.bf16.mxu0 0
        %2929 = vmatpush1.bf16.msra.mxu0 0
        %2930 = vmatprep.subr.bf16.mxu0 0
        %2931 = vmatpush1.bf16.msra.mxu0 0
        %2932 = vmatprep.subr.bf16.mxu0 0
        %2933 = vmatpush1.bf16.msra.mxu0 0
        %2934 = vmatprep.subr.bf16.mxu0 0
        %2935 = vmatpush1.bf16.msra.mxu0 0
        %2936 = vmatprep.subr.bf16.mxu0 0
        %2937 = vmatpush1.bf16.msra.mxu0 %v2832
        %2938 = vmatprep.subr.bf16.mxu0 0
        %2939 = vmatpush1.bf16.msra.mxu0 %v2829
        %2940 = vmatprep.subr.bf16.mxu0 0
        %2941 = vmatpush2.bf16.msra.mxu0 0
        %2942 = vmatprep.subr.bf16.mxu0 0
        %2943 = vmatpush2.bf16.msra.mxu0 0
        %2944 = vmatprep.subr.bf16.mxu0 0
        %2945 = vmatpush2.bf16.msra.mxu0 0
        %2946 = vmatprep.subr.bf16.mxu0 0
        %2947 = vmatpush2.bf16.msra.mxu0 0
        %2948 = vmatprep.subr.bf16.mxu0 0
        %2949 = vmatpush2.bf16.msra.mxu0 0
        %2950 = vmatprep.subr.bf16.mxu0 0
        %2951 = vmatpush2.bf16.msra.mxu0 0
        %2952 = vmatprep.subr.bf16.mxu0 0
        %2953 = vmatpush2.bf16.msra.mxu0 0
        %2954 = vmatprep.subr.bf16.mxu0 0
        %2955 = vmatpush2.bf16.msra.mxu0 0
        %2956 = vmatprep.mubr.bf16.mxu0 0
        %2957 = vmatmul.mubr.bf16.gmra.mxu0 %v2840
        %v2958 = vpop.f32.mrf.mxu0
        %v2959 = vadd.f32 0.0, %v2958
        %v2960 = vpop.f32.mrf.mxu0
        %v2961 = vpop.f32.mrf.mxu0
        %v2962 = vadd.f32 0.0, %v2961
        %v2963 = vpop.f32.mrf.mxu0
        %2964 = vmatprep.mubr.bf16.mxu0 0
        %2965 = vmatmul.mubr.bf16.gmra.mxu0 %v2843
        %v2966 = vpop.f32.mrf.mxu0
        %v2967 = vadd.f32 0.0, %v2966
        %v2968 = vpop.f32.mrf.mxu0
        %v2969 = vpop.f32.mrf.mxu0
        %v2970 = vadd.f32 0.0, %v2969
        %v2971 = vpop.f32.mrf.mxu0
        %2972 = vmatprep.mubr.bf16.mxu0 0
        %2973 = vmatmul.mubr.bf16.gmra.mxu0 %v2846
        %v2974 = vpop.f32.mrf.mxu0
        %v2975 = vadd.f32 0.0, %v2974
        %v2976 = vpop.f32.mrf.mxu0
        %v2977 = vpop.f32.mrf.mxu0
        %v2978 = vadd.f32 0.0, %v2977
        %v2979 = vpop.f32.mrf.mxu0
        %2980 = vmatprep.mubr.bf16.mxu0 0
        %2981 = vmatmul.mubr.bf16.gmra.mxu0 %v2849
        %v2982 = vpop.f32.mrf.mxu0
        %v2983 = vadd.f32 0.0, %v2982
        %v2984 = vpop.f32.mrf.mxu0
        %v2985 = vpop.f32.mrf.mxu0
        %v2986 = vadd.f32 0.0, %v2985
        %v2987 = vpop.f32.mrf.mxu0
        %2988 = vdwg.mxu0
        %v2989 = vmul.f32 %v2886, %v509
        %v2990 = vmul.f32 %v2888, %v510
        %v2991 = vmul.f32 %v2959, %v511
        %v2992 = vmul.f32 %v2890, %v512
        %v2993 = vmul.f32 %v2892, %v513
        %v2994 = vmul.f32 %v2962, %v514
        %v2995 = vmul.f32 %v2896, %v515
        %v2996 = vmul.f32 %v2898, %v516
        %v2997 = vmul.f32 %v2967, %v517
        %v2998 = vmul.f32 %v2900, %v518
        %v2999 = vmul.f32 %v2902, %v519
        %v3000 = vmul.f32 %v2970, %v520
        %v3001 = vmul.f32 %v2906, %v521
        %v3002 = vmul.f32 %v2908, %v522
        %v3003 = vmul.f32 %v2975, %v523
        %v3004 = vmul.f32 %v2910, %v524
        %v3005 = vmul.f32 %v2912, %v525
        %v3006 = vmul.f32 %v2978, %v526
        %v3007 = vmul.f32 %v2916, %v527
        %v3008 = vmul.f32 %v2918, %v528
        %v3009 = vmul.f32 %v2983, %v529
        %v3010 = vmul.f32 %v2920, %v530
        %v3011 = vmul.f32 %v2922, %v531
        %v3012 = vmul.f32 %v2986, %v532
        %v3013 = vrot.slane %v2989, 7
        %v3014 = vrot.slane %v2992, 7
        %v3015 = vrot.slane %v2995, 7
        %v3016 = vrot.slane %v2998, 7
        %v3017 = vrot.slane %v3001, 7
        %v3018 = vrot.slane %v3004, 7
        %v3019 = vrot.slane %v3007, 7
        %v3020 = vrot.slane %v3010, 7
        %v3021 = vsel %vm760, %v3019, %v3020
        %v3022 = vsel %vm760, %v3018, %v3019
        %v3023 = vsel %vm760, %v3017, %v3018
        %v3024 = vsel %vm760, %v3016, %v3017
        %v3025 = vsel %vm760, %v3015, %v3016
        %v3026 = vsel %vm760, %v3014, %v3015
        %v3027 = vsel %vm760, %v3013, %v3014
        %v3028 = vsel %vm760, %v3020, %v3013
        %3037 = vrot.lane.b32.xlu0 %v2989, 96
        %v3038 = vpop.permute.xlu0 %3037
        %3039 = vrot.lane.b32.xlu0 %v2992, 96
        %v3040 = vpop.permute.xlu0 %3039
        %3041 = vrot.lane.b32.xlu0 %v2995, 96
        %v3042 = vpop.permute.xlu0 %3041
        %3043 = vrot.lane.b32.xlu0 %v2998, 96
        %v3044 = vpop.permute.xlu0 %3043
        %3045 = vrot.lane.b32.xlu0 %v3001, 96
        %v3046 = vpop.permute.xlu0 %3045
        %3047 = vrot.lane.b32.xlu0 %v3004, 96
        %v3048 = vpop.permute.xlu0 %3047
        %3049 = vrot.lane.b32.xlu0 %v3007, 96
        %v3050 = vpop.permute.xlu0 %3049
        %3051 = vrot.lane.b32.xlu0 %v3010, 96
        %v3052 = vpop.permute.xlu0 %3051
        %v3061 = vadd.f32 %v3021, %v3052
        %v3062 = vadd.f32 %v3028, %v3038
        %v3063 = vadd.f32 %v3027, %v3040
        %v3064 = vadd.f32 %v3026, %v3042
        %v3065 = vadd.f32 %v3025, %v3044
        %v3066 = vadd.f32 %v3024, %v3046
        %v3067 = vadd.f32 %v3023, %v3048
        %v3068 = vadd.f32 %v3022, %v3050
        %3069 = vrot.lane.b32.xlu0 %v2989, 64
        %v3070 = vpop.permute.xlu0 %3069
        %3071 = vrot.lane.b32.xlu0 %v2992, 64
        %v3072 = vpop.permute.xlu0 %3071
        %3073 = vrot.lane.b32.xlu0 %v2995, 64
        %v3074 = vpop.permute.xlu0 %3073
        %3075 = vrot.lane.b32.xlu0 %v2998, 64
        %v3076 = vpop.permute.xlu0 %3075
        %3077 = vrot.lane.b32.xlu0 %v3001, 64
        %v3078 = vpop.permute.xlu0 %3077
        %3079 = vrot.lane.b32.xlu0 %v3004, 64
        %v3080 = vpop.permute.xlu0 %3079
        %3081 = vrot.lane.b32.xlu0 %v3007, 64
        %v3082 = vpop.permute.xlu0 %3081
        %3083 = vrot.lane.b32.xlu0 %v3010, 64
        %v3084 = vpop.permute.xlu0 %3083
        %v3093 = vrot.slane %v3070, 1
        %v3094 = vrot.slane %v3072, 1
        %v3095 = vrot.slane %v3074, 1
        %v3096 = vrot.slane %v3076, 1
        %v3097 = vrot.slane %v3078, 1
        %v3098 = vrot.slane %v3080, 1
        %v3099 = vrot.slane %v3082, 1
        %v3100 = vrot.slane %v3084, 1
        %v3101 = vsel %vm841, %v3099, %v3100
        %v3102 = vsel %vm841, %v3098, %v3099
        %v3103 = vsel %vm841, %v3097, %v3098
        %v3104 = vsel %vm841, %v3096, %v3097
        %v3105 = vsel %vm841, %v3095, %v3096
        %v3106 = vsel %vm841, %v3094, %v3095
        %v3107 = vsel %vm841, %v3093, %v3094
        %v3108 = vsel %vm841, %v3100, %v3093
        %v3109 = vadd.f32 %v3061, %v3108
        %v3110 = vadd.f32 %v3062, %v3107
        %v3111 = vadd.f32 %v3063, %v3106
        %v3112 = vadd.f32 %v3064, %v3105
        %v3113 = vadd.f32 %v3065, %v3104
        %v3114 = vadd.f32 %v3066, %v3103
        %v3115 = vadd.f32 %v3067, %v3102
        %v3116 = vadd.f32 %v3068, %v3101
        %3117 = vrot.lane.b32.xlu0 %v2989, 32
        %v3118 = vpop.permute.xlu0 %3117
        %3119 = vrot.lane.b32.xlu0 %v2992, 32
        %v3120 = vpop.permute.xlu0 %3119
        %3121 = vrot.lane.b32.xlu0 %v2995, 32
        %v3122 = vpop.permute.xlu0 %3121
        %3123 = vrot.lane.b32.xlu0 %v2998, 32
        %v3124 = vpop.permute.xlu0 %3123
        %3125 = vrot.lane.b32.xlu0 %v3001, 32
        %v3126 = vpop.permute.xlu0 %3125
        %3127 = vrot.lane.b32.xlu0 %v3004, 32
        %v3128 = vpop.permute.xlu0 %3127
        %3129 = vrot.lane.b32.xlu0 %v3007, 32
        %v3130 = vpop.permute.xlu0 %3129
        %3131 = vrot.lane.b32.xlu0 %v3010, 32
        %v3132 = vpop.permute.xlu0 %3131
        %v3141 = vrot.slane %v3118, 7
        %v3142 = vrot.slane %v3120, 7
        %v3143 = vrot.slane %v3122, 7
        %v3144 = vrot.slane %v3124, 7
        %v3145 = vrot.slane %v3126, 7
        %v3146 = vrot.slane %v3128, 7
        %v3147 = vrot.slane %v3130, 7
        %v3148 = vrot.slane %v3132, 7
        %v3149 = vsel %vm760, %v3147, %v3148
        %v3150 = vsel %vm760, %v3146, %v3147
        %v3151 = vsel %vm760, %v3145, %v3146
        %v3152 = vsel %vm760, %v3144, %v3145
        %v3153 = vsel %vm760, %v3143, %v3144
        %v3154 = vsel %vm760, %v3142, %v3143
        %v3155 = vsel %vm760, %v3141, %v3142
        %v3156 = vsel %vm760, %v3148, %v3141
        %v3157 = vadd.f32 %v3109, %v3156
        %v3158 = vadd.f32 %v3110, %v3155
        %v3159 = vadd.f32 %v3111, %v3154
        %v3160 = vadd.f32 %v3112, %v3153
        %v3161 = vadd.f32 %v3113, %v3152
        %v3162 = vadd.f32 %v3114, %v3151
        %v3163 = vadd.f32 %v3115, %v3150
        %v3164 = vadd.f32 %v3116, %v3149
        %v3165 = vadd.f32 %v3157, %v2990
        %v3166 = vadd.f32 %v3158, %v2993
        %v3167 = vadd.f32 %v3159, %v2996
        %v3168 = vadd.f32 %v3160, %v2999
        %v3169 = vadd.f32 %v3161, %v3002
        %v3170 = vadd.f32 %v3162, %v3005
        %v3171 = vadd.f32 %v3163, %v3008
        %v3172 = vadd.f32 %v3164, %v3011
        %3181 = vrot.lane.b32.xlu0 %v2990, 96
        %v3182 = vpop.permute.xlu0 %3181
        %3183 = vrot.lane.b32.xlu0 %v2993, 96
        %v3184 = vpop.permute.xlu0 %3183
        %3185 = vrot.lane.b32.xlu0 %v2996, 96
        %v3186 = vpop.permute.xlu0 %3185
        %3187 = vrot.lane.b32.xlu0 %v2999, 96
        %v3188 = vpop.permute.xlu0 %3187
        %3189 = vrot.lane.b32.xlu0 %v3002, 96
        %v3190 = vpop.permute.xlu0 %3189
        %3191 = vrot.lane.b32.xlu0 %v3005, 96
        %v3192 = vpop.permute.xlu0 %3191
        %3193 = vrot.lane.b32.xlu0 %v3008, 96
        %v3194 = vpop.permute.xlu0 %3193
        %3195 = vrot.lane.b32.xlu0 %v3011, 96
        %v3196 = vpop.permute.xlu0 %3195
        %v3205 = vrot.slane %v3182, 1
        %v3206 = vrot.slane %v3184, 1
        %v3207 = vrot.slane %v3186, 1
        %v3208 = vrot.slane %v3188, 1
        %v3209 = vrot.slane %v3190, 1
        %v3210 = vrot.slane %v3192, 1
        %v3211 = vrot.slane %v3194, 1
        %v3212 = vrot.slane %v3196, 1
        %v3213 = vsel %vm841, %v3211, %v3212
        %v3214 = vsel %vm841, %v3210, %v3211
        %v3215 = vsel %vm841, %v3209, %v3210
        %v3216 = vsel %vm841, %v3208, %v3209
        %v3217 = vsel %vm841, %v3207, %v3208
        %v3218 = vsel %vm841, %v3206, %v3207
        %v3219 = vsel %vm841, %v3205, %v3206
        %v3220 = vsel %vm841, %v3212, %v3205
        %v3221 = vadd.f32 %v3165, %v3219
        %v3222 = vadd.f32 %v3166, %v3218
        %v3223 = vadd.f32 %v3167, %v3217
        %v3224 = vadd.f32 %v3168, %v3216
        %v3225 = vadd.f32 %v3169, %v3215
        %v3226 = vadd.f32 %v3170, %v3214
        %v3227 = vadd.f32 %v3171, %v3213
        %v3228 = vadd.f32 %v3172, %v3220
        %3229 = vrot.lane.b32.xlu0 %v2990, 64
        %v3230 = vpop.permute.xlu0 %3229
        %3231 = vrot.lane.b32.xlu0 %v2993, 64
        %v3232 = vpop.permute.xlu0 %3231
        %3233 = vrot.lane.b32.xlu0 %v2996, 64
        %v3234 = vpop.permute.xlu0 %3233
        %3235 = vrot.lane.b32.xlu0 %v2999, 64
        %v3236 = vpop.permute.xlu0 %3235
        %3237 = vrot.lane.b32.xlu0 %v3002, 64
        %v3238 = vpop.permute.xlu0 %3237
        %3239 = vrot.lane.b32.xlu0 %v3005, 64
        %v3240 = vpop.permute.xlu0 %3239
        %3241 = vrot.lane.b32.xlu0 %v3008, 64
        %v3242 = vpop.permute.xlu0 %3241
        %3243 = vrot.lane.b32.xlu0 %v3011, 64
        %v3244 = vpop.permute.xlu0 %3243
        %v3253 = vrot.slane %v3230, 7
        %v3254 = vrot.slane %v3232, 7
        %v3255 = vrot.slane %v3234, 7
        %v3256 = vrot.slane %v3236, 7
        %v3257 = vrot.slane %v3238, 7
        %v3258 = vrot.slane %v3240, 7
        %v3259 = vrot.slane %v3242, 7
        %v3260 = vrot.slane %v3244, 7
        %v3261 = vsel %vm760, %v3259, %v3260
        %v3262 = vsel %vm760, %v3258, %v3259
        %v3263 = vsel %vm760, %v3257, %v3258
        %v3264 = vsel %vm760, %v3256, %v3257
        %v3265 = vsel %vm760, %v3255, %v3256
        %v3266 = vsel %vm760, %v3254, %v3255
        %v3267 = vsel %vm760, %v3253, %v3254
        %v3268 = vsel %vm760, %v3260, %v3253
        %v3269 = vadd.f32 %v3221, %v3267
        %v3270 = vadd.f32 %v3222, %v3266
        %v3271 = vadd.f32 %v3223, %v3265
        %v3272 = vadd.f32 %v3224, %v3264
        %v3273 = vadd.f32 %v3225, %v3263
        %v3274 = vadd.f32 %v3226, %v3262
        %v3275 = vadd.f32 %v3227, %v3261
        %v3276 = vadd.f32 %v3228, %v3268
        %3277 = vrot.lane.b32.xlu0 %v2990, 32
        %v3278 = vpop.permute.xlu0 %3277
        %3279 = vrot.lane.b32.xlu0 %v2993, 32
        %v3280 = vpop.permute.xlu0 %3279
        %3281 = vrot.lane.b32.xlu0 %v2996, 32
        %v3282 = vpop.permute.xlu0 %3281
        %3283 = vrot.lane.b32.xlu0 %v2999, 32
        %v3284 = vpop.permute.xlu0 %3283
        %3285 = vrot.lane.b32.xlu0 %v3002, 32
        %v3286 = vpop.permute.xlu0 %3285
        %3287 = vrot.lane.b32.xlu0 %v3005, 32
        %v3288 = vpop.permute.xlu0 %3287
        %3289 = vrot.lane.b32.xlu0 %v3008, 32
        %v3290 = vpop.permute.xlu0 %3289
        %3291 = vrot.lane.b32.xlu0 %v3011, 32
        %v3292 = vpop.permute.xlu0 %3291
        %v3301 = vadd.f32 %v3269, %v3280
        %v3302 = vadd.f32 %v3270, %v3282
        %v3303 = vadd.f32 %v3271, %v3284
        %v3304 = vadd.f32 %v3272, %v3286
        %v3305 = vadd.f32 %v3273, %v3288
        %v3306 = vadd.f32 %v3274, %v3290
        %v3307 = vadd.f32 %v3275, %v3292
        %v3308 = vadd.f32 %v3276, %v3278
        %v3309 = vrot.slane %v2991, 1
        %v3310 = vrot.slane %v2994, 1
        %v3311 = vrot.slane %v2997, 1
        %v3312 = vrot.slane %v3000, 1
        %v3313 = vrot.slane %v3003, 1
        %v3314 = vrot.slane %v3006, 1
        %v3315 = vrot.slane %v3009, 1
        %v3316 = vrot.slane %v3012, 1
        %v3317 = vsel %vm841, %v3315, %v3316
        %v3318 = vsel %vm841, %v3314, %v3315
        %v3319 = vsel %vm841, %v3313, %v3314
        %v3320 = vsel %vm841, %v3312, %v3313
        %v3321 = vsel %vm841, %v3311, %v3312
        %v3322 = vsel %vm841, %v3310, %v3311
        %v3323 = vsel %vm841, %v3309, %v3310
        %v3324 = vsel %vm841, %v3316, %v3309
        %v3325 = vadd.f32 %v3301, %v3322
        %v3326 = vadd.f32 %v3302, %v3321
        %v3327 = vadd.f32 %v3303, %v3320
        %v3328 = vadd.f32 %v3304, %v3319
        %v3329 = vadd.f32 %v3305, %v3318
        %v3330 = vadd.f32 %v3306, %v3317
        %v3331 = vadd.f32 %v3307, %v3324
        %v3332 = vadd.f32 %v3308, %v3323
        %v3334 = vlaneseq
        %v3335 = vshrl.u32 %v3334, 7
        %v3336 = vsub.s32 0, %v3335
        %v3337 = vrot.slane %v2802, %v3336
        %v3339 = vadd.f32 %v3325, %v3337
        %v3340 = vadd.f32 %v3326, %v3337
        %v3341 = vadd.f32 %v3327, %v3337
        %v3342 = vadd.f32 %v3328, %v3337
        %v3343 = vadd.f32 %v3329, %v3337
        %v3344 = vadd.f32 %v3330, %v3337
        %v3345 = vadd.f32 %v3331, %v3337
        %v3346 = vadd.f32 %v3332, %v3337
        %v3347 = vadd.f32 %v3339, %v2221
        %v3348 = vadd.f32 %v3340, %v2222
        %v3349 = vadd.f32 %v3341, %v2223
        %v3350 = vadd.f32 %v3342, %v2224
        %v3351 = vadd.f32 %v3343, %v2225
        %v3352 = vadd.f32 %v3344, %v2226
        %v3353 = vadd.f32 %v3345, %v2227
        %v3354 = vadd.f32 %v3346, %v2228
        %v3355 = vmax.f32 %v3347, 0.0
        %v3356 = vmax.f32 %v3348, 0.0
        %v3357 = vmax.f32 %v3349, 0.0
        %v3358 = vmax.f32 %v3350, 0.0
        %v3359 = vmax.f32 %v3351, 0.0
        %v3360 = vmax.f32 %v3352, 0.0
        %v3361 = vmax.f32 %v3353, 0.0
        %v3362 = vmax.f32 %v3354, 0.0
        %v3363 = vpack.c.bf16 %v3356, %v3355
        %v3364 = vpack.c.bf16 %v3358, %v3357
        %v3365 = vpack.c.bf16 %v3360, %v3359
        %v3366 = vpack.c.bf16 %v3362, %v3361
        %v3367 = vld [vmem:[%s6] sm:$0xf]
        %v3368 = vld [vmem:[%s6 + $0x4] sm:$0xf]
        %v3369 = vld [vmem:[%s6 + $0x8] sm:$0xf]
        %v3370 = vld [vmem:[%s6 + $0xc] sm:$0xf]
        %v3371 = vld [vmem:[%s7] sm:$0x1]
        %v3373 = vlaneseq
        %v3374 = vshrl.u32 %v3373, 7
        %v3375 = vsub.s32 0, %v3374
        %v3376 = vrot.slane %v3371, %v3375
        %v3382 = vunpack.c.l.b16 %v3367
        %v3383 = vunpack.c.l.b16 %v3368
        %v3384 = vunpack.c.l.b16 %v3369
        %v3385 = vunpack.c.l.b16 %v3370
        %v3386 = vpack.c.b16 %v3383, %v3382
        %v3387 = vpack.c.b16 %v3385, %v3384
        %v3391 = vsel %vm1141, %v3363, 0
        %v3394 = vsel %vm1141, %v3364, 0
        %v3397 = vsel %vm1141, %v3365, 0
        %v3400 = vsel %vm1141, %v3366, 0
        %3402 = vmatprep.subr.bf16.mxu0 0
        %3403 = vmatpush1.bf16.msra.mxu0 0
        %3404 = vmatprep.subr.bf16.mxu0 0
        %3405 = vmatpush1.bf16.msra.mxu0 0
        %3406 = vmatprep.subr.bf16.mxu0 0
        %3407 = vmatpush1.bf16.msra.mxu0 0
        %3408 = vmatprep.subr.bf16.mxu0 0
        %3409 = vmatpush1.bf16.msra.mxu0 0
        %3410 = vmatprep.subr.bf16.mxu0 0
        %3411 = vmatpush1.bf16.msra.mxu0 0
        %3412 = vmatprep.subr.bf16.mxu0 0
        %3413 = vmatpush1.bf16.msra.mxu0 0
        %3414 = vmatprep.subr.bf16.mxu0 0
        %3415 = vmatpush1.bf16.msra.mxu0 %v3387
        %3416 = vmatprep.subr.bf16.mxu0 0
        %3417 = vmatpush1.bf16.msra.mxu0 %v3386
        %3418 = vmatprep.subr.bf16.mxu0 0
        %3419 = vmatpush2.bf16.msra.mxu0 0
        %3420 = vmatprep.subr.bf16.mxu0 0
        %3421 = vmatpush2.bf16.msra.mxu0 0
        %3422 = vmatprep.subr.bf16.mxu0 0
        %3423 = vmatpush2.bf16.msra.mxu0 0
        %3424 = vmatprep.subr.bf16.mxu0 0
        %3425 = vmatpush2.bf16.msra.mxu0 0
        %3426 = vmatprep.subr.bf16.mxu0 0
        %3427 = vmatpush2.bf16.msra.mxu0 0
        %3428 = vmatprep.subr.bf16.mxu0 0
        %3429 = vmatpush2.bf16.msra.mxu0 0
        %3430 = vmatprep.subr.bf16.mxu0 0
        %3431 = vmatpush2.bf16.msra.mxu0 0
        %3432 = vmatprep.subr.bf16.mxu0 0
        %3433 = vmatpush2.bf16.msra.mxu0 0
        %3434 = vmatprep.mubr.bf16.mxu0 0
        %3435 = vmatmul.mubr.bf16.gmra.mxu0 %v3391
        %v3436 = vpop.f32.mrf.mxu0
        %v3437 = vadd.f32 %v3376, %v3436
        %v3438 = vpop.f32.mrf.mxu0
        %v3439 = vpop.f32.mrf.mxu0
        %v3440 = vadd.f32 %v3376, %v3439
        %v3441 = vpop.f32.mrf.mxu0
        %3442 = vmatprep.mubr.bf16.mxu0 0
        %3443 = vmatmul.mubr.bf16.gmra.mxu0 %v3394
        %v3444 = vpop.f32.mrf.mxu0
        %v3445 = vadd.f32 %v3376, %v3444
        %v3446 = vpop.f32.mrf.mxu0
        %v3447 = vpop.f32.mrf.mxu0
        %v3448 = vadd.f32 %v3376, %v3447
        %v3449 = vpop.f32.mrf.mxu0
        %3450 = vmatprep.mubr.bf16.mxu0 0
        %3451 = vmatmul.mubr.bf16.gmra.mxu0 %v3397
        %v3452 = vpop.f32.mrf.mxu0
        %v3453 = vadd.f32 %v3376, %v3452
        %v3454 = vpop.f32.mrf.mxu0
        %v3455 = vpop.f32.mrf.mxu0
        %v3456 = vadd.f32 %v3376, %v3455
        %v3457 = vpop.f32.mrf.mxu0
        %3458 = vmatprep.mubr.bf16.mxu0 0
        %3459 = vmatmul.mubr.bf16.gmra.mxu0 %v3400
        %v3460 = vpop.f32.mrf.mxu0
        %v3461 = vadd.f32 %v3376, %v3460
        %v3462 = vpop.f32.mrf.mxu0
        %v3463 = vpop.f32.mrf.mxu0
        %v3464 = vadd.f32 %v3376, %v3463
        %v3465 = vpop.f32.mrf.mxu0
        %3466 = vdwg.mxu0
        %v3467 = vmax.f32 %v3437, 0.0
        %v3468 = vmax.f32 %v3440, 0.0
        %v3469 = vmax.f32 %v3445, 0.0
        %v3470 = vmax.f32 %v3448, 0.0
        %v3471 = vmax.f32 %v3453, 0.0
        %v3472 = vmax.f32 %v3456, 0.0
        %v3473 = vmax.f32 %v3461, 0.0
        %v3474 = vmax.f32 %v3464, 0.0
        %v3475 = vld [vmem:[%s8] sm:$0xff]
        %v3476 = vld [vmem:[%s8 + $0x8] sm:$0xff]
        %v3477 = vld [vmem:[%s8 + $0x10] sm:$0xff]
        %v3478 = vld [vmem:[%s8 + $0x18] sm:$0xff]
        %v3479 = vld [vmem:[%s8 + $0x20] sm:$0xff]
        %v3480 = vld [vmem:[%s8 + $0x28] sm:$0xff]
        %v3481 = vld [vmem:[%s8 + $0x30] sm:$0xff]
        %v3482 = vld [vmem:[%s8 + $0x38] sm:$0xff]
        %3484 = vset.pattern.permute.xlu0 0
        %3485 = vperm.xlu0 %3484, %v3467
        %v3486 = vpop.permute.xlu0 %3485
        %3489 = vset.pattern.permute.xlu0 0
        %3490 = vperm.xlu0 %3489, %v3468
        %v3491 = vpop.permute.xlu0 %3490
        %3494 = vset.pattern.permute.xlu0 0
        %3495 = vperm.xlu0 %3494, %v3469
        %v3496 = vpop.permute.xlu0 %3495
        %3499 = vset.pattern.permute.xlu0 0
        %3500 = vperm.xlu0 %3499, %v3470
        %v3501 = vpop.permute.xlu0 %3500
        %3504 = vset.pattern.permute.xlu0 0
        %3505 = vperm.xlu0 %3504, %v3471
        %v3506 = vpop.permute.xlu0 %3505
        %3509 = vset.pattern.permute.xlu0 0
        %3510 = vperm.xlu0 %3509, %v3472
        %v3511 = vpop.permute.xlu0 %3510
        %3514 = vset.pattern.permute.xlu0 0
        %3515 = vperm.xlu0 %3514, %v3473
        %v3516 = vpop.permute.xlu0 %3515
        %3519 = vset.pattern.permute.xlu0 0
        %3520 = vperm.xlu0 %3519, %v3474
        %v3521 = vpop.permute.xlu0 %3520
        %v3523 = vmul.f32 %v3486, %v3475
        %v3524 = vmul.f32 %v3491, %v3476
        %v3525 = vmul.f32 %v3496, %v3477
        %v3526 = vmul.f32 %v3501, %v3478
        %v3527 = vmul.f32 %v3506, %v3479
        %v3528 = vmul.f32 %v3511, %v3480
        %v3529 = vmul.f32 %v3516, %v3481
        %v3530 = vmul.f32 %v3521, %v3482
        %s3531 = scalar_lea.vmem %s8, 64
        %v3532 = vld [vmem:[%s3531] sm:$0xff]
        %v3533 = vld [vmem:[%s3531 + $0x8] sm:$0xff]
        %v3534 = vld [vmem:[%s3531 + $0x10] sm:$0xff]
        %v3535 = vld [vmem:[%s3531 + $0x18] sm:$0xff]
        %v3536 = vld [vmem:[%s3531 + $0x20] sm:$0xff]
        %v3537 = vld [vmem:[%s3531 + $0x28] sm:$0xff]
        %v3538 = vld [vmem:[%s3531 + $0x30] sm:$0xff]
        %v3539 = vld [vmem:[%s3531 + $0x38] sm:$0xff]
        %3540 = vset.pattern.permute.xlu0 1
        %3541 = vperm.xlu0 %3540, %v3467
        %v3542 = vpop.permute.xlu0 %3541
        %3544 = vset.pattern.permute.xlu0 1
        %3545 = vperm.xlu0 %3544, %v3468
        %v3546 = vpop.permute.xlu0 %3545
        %3548 = vset.pattern.permute.xlu0 1
        %3549 = vperm.xlu0 %3548, %v3469
        %v3550 = vpop.permute.xlu0 %3549
        %3552 = vset.pattern.permute.xlu0 1
        %3553 = vperm.xlu0 %3552, %v3470
        %v3554 = vpop.permute.xlu0 %3553
        %3556 = vset.pattern.permute.xlu0 1
        %3557 = vperm.xlu0 %3556, %v3471
        %v3558 = vpop.permute.xlu0 %3557
        %3560 = vset.pattern.permute.xlu0 1
        %3561 = vperm.xlu0 %3560, %v3472
        %v3562 = vpop.permute.xlu0 %3561
        %3564 = vset.pattern.permute.xlu0 1
        %3565 = vperm.xlu0 %3564, %v3473
        %v3566 = vpop.permute.xlu0 %3565
        %3568 = vset.pattern.permute.xlu0 1
        %3569 = vperm.xlu0 %3568, %v3474
        %v3570 = vpop.permute.xlu0 %3569
        %v3572 = vmul.f32 %v3542, %v3532
        %v3573 = vmul.f32 %v3546, %v3533
        %v3574 = vmul.f32 %v3550, %v3534
        %v3575 = vmul.f32 %v3554, %v3535
        %v3576 = vmul.f32 %v3558, %v3536
        %v3577 = vmul.f32 %v3562, %v3537
        %v3578 = vmul.f32 %v3566, %v3538
        %v3579 = vmul.f32 %v3570, %v3539
        %v3580 = vadd.f32 %v3523, %v3572
        %v3581 = vadd.f32 %v3524, %v3573
        %v3582 = vadd.f32 %v3525, %v3574
        %v3583 = vadd.f32 %v3526, %v3575
        %v3584 = vadd.f32 %v3527, %v3576
        %v3585 = vadd.f32 %v3528, %v3577
        %v3586 = vadd.f32 %v3529, %v3578
        %v3587 = vadd.f32 %v3530, %v3579
        %s3588 = scalar_lea.vmem %s8, 128
        %v3589 = vld [vmem:[%s3588] sm:$0xff]
        %v3590 = vld [vmem:[%s3588 + $0x8] sm:$0xff]
        %v3591 = vld [vmem:[%s3588 + $0x10] sm:$0xff]
        %v3592 = vld [vmem:[%s3588 + $0x18] sm:$0xff]
        %v3593 = vld [vmem:[%s3588 + $0x20] sm:$0xff]
        %v3594 = vld [vmem:[%s3588 + $0x28] sm:$0xff]
        %v3595 = vld [vmem:[%s3588 + $0x30] sm:$0xff]
        %v3596 = vld [vmem:[%s3588 + $0x38] sm:$0xff]
        %3597 = vset.pattern.permute.xlu0 2
        %3598 = vperm.xlu0 %3597, %v3467
        %v3599 = vpop.permute.xlu0 %3598
        %3601 = vset.pattern.permute.xlu0 2
        %3602 = vperm.xlu0 %3601, %v3468
        %v3603 = vpop.permute.xlu0 %3602
        %3605 = vset.pattern.permute.xlu0 2
        %3606 = vperm.xlu0 %3605, %v3469
        %v3607 = vpop.permute.xlu0 %3606
        %3609 = vset.pattern.permute.xlu0 2
        %3610 = vperm.xlu0 %3609, %v3470
        %v3611 = vpop.permute.xlu0 %3610
        %3613 = vset.pattern.permute.xlu0 2
        %3614 = vperm.xlu0 %3613, %v3471
        %v3615 = vpop.permute.xlu0 %3614
        %3617 = vset.pattern.permute.xlu0 2
        %3618 = vperm.xlu0 %3617, %v3472
        %v3619 = vpop.permute.xlu0 %3618
        %3621 = vset.pattern.permute.xlu0 2
        %3622 = vperm.xlu0 %3621, %v3473
        %v3623 = vpop.permute.xlu0 %3622
        %3625 = vset.pattern.permute.xlu0 2
        %3626 = vperm.xlu0 %3625, %v3474
        %v3627 = vpop.permute.xlu0 %3626
        %v3629 = vmul.f32 %v3599, %v3589
        %v3630 = vmul.f32 %v3603, %v3590
        %v3631 = vmul.f32 %v3607, %v3591
        %v3632 = vmul.f32 %v3611, %v3592
        %v3633 = vmul.f32 %v3615, %v3593
        %v3634 = vmul.f32 %v3619, %v3594
        %v3635 = vmul.f32 %v3623, %v3595
        %v3636 = vmul.f32 %v3627, %v3596
        %v3637 = vadd.f32 %v3580, %v3629
        %v3638 = vadd.f32 %v3581, %v3630
        %v3639 = vadd.f32 %v3582, %v3631
        %v3640 = vadd.f32 %v3583, %v3632
        %v3641 = vadd.f32 %v3584, %v3633
        %v3642 = vadd.f32 %v3585, %v3634
        %v3643 = vadd.f32 %v3586, %v3635
        %v3644 = vadd.f32 %v3587, %v3636
        %s3645 = scalar_lea.vmem %s8, 192
        %v3646 = vld [vmem:[%s3645] sm:$0xff]
        %v3647 = vld [vmem:[%s3645 + $0x8] sm:$0xff]
        %v3648 = vld [vmem:[%s3645 + $0x10] sm:$0xff]
        %v3649 = vld [vmem:[%s3645 + $0x18] sm:$0xff]
        %v3650 = vld [vmem:[%s3645 + $0x20] sm:$0xff]
        %v3651 = vld [vmem:[%s3645 + $0x28] sm:$0xff]
        %v3652 = vld [vmem:[%s3645 + $0x30] sm:$0xff]
        %v3653 = vld [vmem:[%s3645 + $0x38] sm:$0xff]
        %3654 = vset.pattern.permute.xlu0 3
        %3655 = vperm.xlu0 %3654, %v3467
        %v3656 = vpop.permute.xlu0 %3655
        %3658 = vset.pattern.permute.xlu0 3
        %3659 = vperm.xlu0 %3658, %v3468
        %v3660 = vpop.permute.xlu0 %3659
        %3662 = vset.pattern.permute.xlu0 3
        %3663 = vperm.xlu0 %3662, %v3469
        %v3664 = vpop.permute.xlu0 %3663
        %3666 = vset.pattern.permute.xlu0 3
        %3667 = vperm.xlu0 %3666, %v3470
        %v3668 = vpop.permute.xlu0 %3667
        %3670 = vset.pattern.permute.xlu0 3
        %3671 = vperm.xlu0 %3670, %v3471
        %v3672 = vpop.permute.xlu0 %3671
        %3674 = vset.pattern.permute.xlu0 3
        %3675 = vperm.xlu0 %3674, %v3472
        %v3676 = vpop.permute.xlu0 %3675
        %3678 = vset.pattern.permute.xlu0 3
        %3679 = vperm.xlu0 %3678, %v3473
        %v3680 = vpop.permute.xlu0 %3679
        %3682 = vset.pattern.permute.xlu0 3
        %3683 = vperm.xlu0 %3682, %v3474
        %v3684 = vpop.permute.xlu0 %3683
        %v3686 = vmul.f32 %v3656, %v3646
        %v3687 = vmul.f32 %v3660, %v3647
        %v3688 = vmul.f32 %v3664, %v3648
        %v3689 = vmul.f32 %v3668, %v3649
        %v3690 = vmul.f32 %v3672, %v3650
        %v3691 = vmul.f32 %v3676, %v3651
        %v3692 = vmul.f32 %v3680, %v3652
        %v3693 = vmul.f32 %v3684, %v3653
        %v3694 = vadd.f32 %v3637, %v3686
        %v3695 = vadd.f32 %v3638, %v3687
        %v3696 = vadd.f32 %v3639, %v3688
        %v3697 = vadd.f32 %v3640, %v3689
        %v3698 = vadd.f32 %v3641, %v3690
        %v3699 = vadd.f32 %v3642, %v3691
        %v3700 = vadd.f32 %v3643, %v3692
        %v3701 = vadd.f32 %v3644, %v3693
        %v3702 = vld [vmem:[%s9] sm:$0x1]
        %vm3703 = vcmask 523264
        %v3705 = vsel %vm3703, %v533, 0
        %3707 = vmatprep.subr.mxu0 0.0
        %3708 = vmatpush1.msra.mxu0 0.0
        %3709 = vmatprep.subr.mxu0 0.0
        %3710 = vmatpush1.msra.mxu0 0.0
        %3711 = vmatprep.subr.mxu0 0.0
        %3712 = vmatpush1.msra.mxu0 0.0
        %3713 = vmatprep.subr.mxu0 0.0
        %3714 = vmatpush1.msra.mxu0 0.0
        %3715 = vmatprep.subr.mxu0 0.0
        %3716 = vmatpush1.msra.mxu0 0.0
        %3717 = vmatprep.subr.mxu0 0.0
        %3718 = vmatpush1.msra.mxu0 0.0
        %3719 = vmatprep.subr.mxu0 0.0
        %3720 = vmatpush1.msra.mxu0 0.0
        %3721 = vmatprep.subr.mxu0 0.0
        %3722 = vmatpush1.msra.mxu0 0.0
        %3723 = vmatprep.subr.mxu0 0.0
        %3724 = vmatpush1.msra.mxu0 %v3701
        %3725 = vmatprep.subr.mxu0 0.0
        %3726 = vmatpush1.msra.mxu0 %v3700
        %3727 = vmatprep.subr.mxu0 0.0
        %3728 = vmatpush1.msra.mxu0 %v3699
        %3729 = vmatprep.subr.mxu0 0.0
        %3730 = vmatpush1.msra.mxu0 %v3698
        %3731 = vmatprep.subr.mxu0 0.0
        %3732 = vmatpush1.msra.mxu0 %v3697
        %3733 = vmatprep.subr.mxu0 0.0
        %3734 = vmatpush1.msra.mxu0 %v3696
        %3735 = vmatprep.subr.mxu0 0.0
        %3736 = vmatpush1.msra.mxu0 %v3695
        %3737 = vmatprep.subr.mxu0 0.0
        %3738 = vmatpush1.msra.mxu0 %v3694
        %3739 = vmatprep.subr.mxu0 0.0
        %3740 = vmatpush2.msra.mxu0 0.0
        %3741 = vmatprep.subr.mxu0 0.0
        %3742 = vmatpush2.msra.mxu0 0.0
        %3743 = vmatprep.subr.mxu0 0.0
        %3744 = vmatpush2.msra.mxu0 0.0
        %3745 = vmatprep.subr.mxu0 0.0
        %3746 = vmatpush2.msra.mxu0 0.0
        %3747 = vmatprep.subr.mxu0 0.0
        %3748 = vmatpush2.msra.mxu0 0.0
        %3749 = vmatprep.subr.mxu0 0.0
        %3750 = vmatpush2.msra.mxu0 0.0
        %3751 = vmatprep.subr.mxu0 0.0
        %3752 = vmatpush2.msra.mxu0 0.0
        %3753 = vmatprep.subr.mxu0 0.0
        %3754 = vmatpush2.msra.mxu0 0.0
        %3755 = vmatprep.subr.mxu0 0.0
        %3756 = vmatpush2.msra.mxu0 0.0
        %3757 = vmatprep.subr.mxu0 0.0
        %3758 = vmatpush2.msra.mxu0 0.0
        %3759 = vmatprep.subr.mxu0 0.0
        %3760 = vmatpush2.msra.mxu0 0.0
        %3761 = vmatprep.subr.mxu0 0.0
        %3762 = vmatpush2.msra.mxu0 0.0
        %3763 = vmatprep.subr.mxu0 0.0
        %3764 = vmatpush2.msra.mxu0 0.0
        %3765 = vmatprep.subr.mxu0 0.0
        %3766 = vmatpush2.msra.mxu0 0.0
        %3767 = vmatprep.subr.mxu0 0.0
        %3768 = vmatpush2.msra.mxu0 0.0
        %3769 = vmatprep.subr.mxu0 0.0
        %3770 = vmatpush2.msra.mxu0 0.0
        %3771 = vmatprep.mubr.f32.mxu0 0.0
        %3772 = vmatmul.mubr.f32.gmra.mxu0 %v3705
        %v3773 = vpop.f32.mrf.mxu0
        %v3774 = vadd.f32 %v3702, %v3773
        %v3775 = vpop.f32.mrf.mxu0
        %3776 = vdwg.mxu0
        %v3777 = vld [vmem:[%s10] sm:$0xff]
        %v3778 = vld [vmem:[%s10 + $0x8] sm:$0xff]
        %v3779 = vld [vmem:[%s10 + $0x10] sm:$0xff]
        %v3780 = vld [vmem:[%s10 + $0x18] sm:$0xff]
        %v3781 = vld [vmem:[%s10 + $0x20] sm:$0xff]
        %v3782 = vld [vmem:[%s10 + $0x28] sm:$0xff]
        %v3783 = vld [vmem:[%s10 + $0x30] sm:$0xff]
        %v3784 = vld [vmem:[%s10 + $0x38] sm:$0xff]
        %3785 = vset.pattern.permute.xlu0 4
        %3786 = vperm.xlu0 %3785, %v3467
        %v3787 = vpop.permute.xlu0 %3786
        %3789 = vset.pattern.permute.xlu0 4
        %3790 = vperm.xlu0 %3789, %v3468
        %v3791 = vpop.permute.xlu0 %3790
        %3793 = vset.pattern.permute.xlu0 4
        %3794 = vperm.xlu0 %3793, %v3469
        %v3795 = vpop.permute.xlu0 %3794
        %3797 = vset.pattern.permute.xlu0 4
        %3798 = vperm.xlu0 %3797, %v3470
        %v3799 = vpop.permute.xlu0 %3798
        %3801 = vset.pattern.permute.xlu0 4
        %3802 = vperm.xlu0 %3801, %v3471
        %v3803 = vpop.permute.xlu0 %3802
        %3805 = vset.pattern.permute.xlu0 4
        %3806 = vperm.xlu0 %3805, %v3472
        %v3807 = vpop.permute.xlu0 %3806
        %3809 = vset.pattern.permute.xlu0 4
        %3810 = vperm.xlu0 %3809, %v3473
        %v3811 = vpop.permute.xlu0 %3810
        %3813 = vset.pattern.permute.xlu0 4
        %3814 = vperm.xlu0 %3813, %v3474
        %v3815 = vpop.permute.xlu0 %3814
        %v3817 = vmul.f32 %v3787, %v3777
        %v3818 = vmul.f32 %v3791, %v3778
        %v3819 = vmul.f32 %v3795, %v3779
        %v3820 = vmul.f32 %v3799, %v3780
        %v3821 = vmul.f32 %v3803, %v3781
        %v3822 = vmul.f32 %v3807, %v3782
        %v3823 = vmul.f32 %v3811, %v3783
        %v3824 = vmul.f32 %v3815, %v3784
        %s3825 = scalar_lea.vmem %s10, 64
        %v3826 = vld [vmem:[%s3825] sm:$0xff]
        %v3827 = vld [vmem:[%s3825 + $0x8] sm:$0xff]
        %v3828 = vld [vmem:[%s3825 + $0x10] sm:$0xff]
        %v3829 = vld [vmem:[%s3825 + $0x18] sm:$0xff]
        %v3830 = vld [vmem:[%s3825 + $0x20] sm:$0xff]
        %v3831 = vld [vmem:[%s3825 + $0x28] sm:$0xff]
        %v3832 = vld [vmem:[%s3825 + $0x30] sm:$0xff]
        %v3833 = vld [vmem:[%s3825 + $0x38] sm:$0xff]
        %3834 = vset.pattern.permute.xlu0 5
        %3835 = vperm.xlu0 %3834, %v3467
        %v3836 = vpop.permute.xlu0 %3835
        %3838 = vset.pattern.permute.xlu0 5
        %3839 = vperm.xlu0 %3838, %v3468
        %v3840 = vpop.permute.xlu0 %3839
        %3842 = vset.pattern.permute.xlu0 5
        %3843 = vperm.xlu0 %3842, %v3469
        %v3844 = vpop.permute.xlu0 %3843
        %3846 = vset.pattern.permute.xlu0 5
        %3847 = vperm.xlu0 %3846, %v3470
        %v3848 = vpop.permute.xlu0 %3847
        %3850 = vset.pattern.permute.xlu0 5
        %3851 = vperm.xlu0 %3850, %v3471
        %v3852 = vpop.permute.xlu0 %3851
        %3854 = vset.pattern.permute.xlu0 5
        %3855 = vperm.xlu0 %3854, %v3472
        %v3856 = vpop.permute.xlu0 %3855
        %3858 = vset.pattern.permute.xlu0 5
        %3859 = vperm.xlu0 %3858, %v3473
        %v3860 = vpop.permute.xlu0 %3859
        %3862 = vset.pattern.permute.xlu0 5
        %3863 = vperm.xlu0 %3862, %v3474
        %v3864 = vpop.permute.xlu0 %3863
        %v3866 = vmul.f32 %v3836, %v3826
        %v3867 = vmul.f32 %v3840, %v3827
        %v3868 = vmul.f32 %v3844, %v3828
        %v3869 = vmul.f32 %v3848, %v3829
        %v3870 = vmul.f32 %v3852, %v3830
        %v3871 = vmul.f32 %v3856, %v3831
        %v3872 = vmul.f32 %v3860, %v3832
        %v3873 = vmul.f32 %v3864, %v3833
        %v3874 = vadd.f32 %v3817, %v3866
        %v3875 = vadd.f32 %v3818, %v3867
        %v3876 = vadd.f32 %v3819, %v3868
        %v3877 = vadd.f32 %v3820, %v3869
        %v3878 = vadd.f32 %v3821, %v3870
        %v3879 = vadd.f32 %v3822, %v3871
        %v3880 = vadd.f32 %v3823, %v3872
        %v3881 = vadd.f32 %v3824, %v3873
        %s3882 = scalar_lea.vmem %s10, 128
        %v3883 = vld [vmem:[%s3882] sm:$0xff]
        %v3884 = vld [vmem:[%s3882 + $0x8] sm:$0xff]
        %v3885 = vld [vmem:[%s3882 + $0x10] sm:$0xff]
        %v3886 = vld [vmem:[%s3882 + $0x18] sm:$0xff]
        %v3887 = vld [vmem:[%s3882 + $0x20] sm:$0xff]
        %v3888 = vld [vmem:[%s3882 + $0x28] sm:$0xff]
        %v3889 = vld [vmem:[%s3882 + $0x30] sm:$0xff]
        %v3890 = vld [vmem:[%s3882 + $0x38] sm:$0xff]
        %3891 = vset.pattern.permute.xlu0 6
        %3892 = vperm.xlu0 %3891, %v3467
        %v3893 = vpop.permute.xlu0 %3892
        %3895 = vset.pattern.permute.xlu0 6
        %3896 = vperm.xlu0 %3895, %v3468
        %v3897 = vpop.permute.xlu0 %3896
        %3899 = vset.pattern.permute.xlu0 6
        %3900 = vperm.xlu0 %3899, %v3469
        %v3901 = vpop.permute.xlu0 %3900
        %3903 = vset.pattern.permute.xlu0 6
        %3904 = vperm.xlu0 %3903, %v3470
        %v3905 = vpop.permute.xlu0 %3904
        %3907 = vset.pattern.permute.xlu0 6
        %3908 = vperm.xlu0 %3907, %v3471
        %v3909 = vpop.permute.xlu0 %3908
        %3911 = vset.pattern.permute.xlu0 6
        %3912 = vperm.xlu0 %3911, %v3472
        %v3913 = vpop.permute.xlu0 %3912
        %3915 = vset.pattern.permute.xlu0 6
        %3916 = vperm.xlu0 %3915, %v3473
        %v3917 = vpop.permute.xlu0 %3916
        %3919 = vset.pattern.permute.xlu0 6
        %3920 = vperm.xlu0 %3919, %v3474
        %v3921 = vpop.permute.xlu0 %3920
        %v3923 = vmul.f32 %v3893, %v3883
        %v3924 = vmul.f32 %v3897, %v3884
        %v3925 = vmul.f32 %v3901, %v3885
        %v3926 = vmul.f32 %v3905, %v3886
        %v3927 = vmul.f32 %v3909, %v3887
        %v3928 = vmul.f32 %v3913, %v3888
        %v3929 = vmul.f32 %v3917, %v3889
        %v3930 = vmul.f32 %v3921, %v3890
        %v3931 = vadd.f32 %v3874, %v3923
        %v3932 = vadd.f32 %v3875, %v3924
        %v3933 = vadd.f32 %v3876, %v3925
        %v3934 = vadd.f32 %v3877, %v3926
        %v3935 = vadd.f32 %v3878, %v3927
        %v3936 = vadd.f32 %v3879, %v3928
        %v3937 = vadd.f32 %v3880, %v3929
        %v3938 = vadd.f32 %v3881, %v3930
        %s3939 = scalar_lea.vmem %s10, 192
        %v3940 = vld [vmem:[%s3939] sm:$0xff]
        %v3941 = vld [vmem:[%s3939 + $0x8] sm:$0xff]
        %v3942 = vld [vmem:[%s3939 + $0x10] sm:$0xff]
        %v3943 = vld [vmem:[%s3939 + $0x18] sm:$0xff]
        %v3944 = vld [vmem:[%s3939 + $0x20] sm:$0xff]
        %v3945 = vld [vmem:[%s3939 + $0x28] sm:$0xff]
        %v3946 = vld [vmem:[%s3939 + $0x30] sm:$0xff]
        %v3947 = vld [vmem:[%s3939 + $0x38] sm:$0xff]
        %3948 = vset.pattern.permute.xlu0 7
        %3949 = vperm.xlu0 %3948, %v3467
        %v3950 = vpop.permute.xlu0 %3949
        %3952 = vset.pattern.permute.xlu0 7
        %3953 = vperm.xlu0 %3952, %v3468
        %v3954 = vpop.permute.xlu0 %3953
        %3956 = vset.pattern.permute.xlu0 7
        %3957 = vperm.xlu0 %3956, %v3469
        %v3958 = vpop.permute.xlu0 %3957
        %3960 = vset.pattern.permute.xlu0 7
        %3961 = vperm.xlu0 %3960, %v3470
        %v3962 = vpop.permute.xlu0 %3961
        %3964 = vset.pattern.permute.xlu0 7
        %3965 = vperm.xlu0 %3964, %v3471
        %v3966 = vpop.permute.xlu0 %3965
        %3968 = vset.pattern.permute.xlu0 7
        %3969 = vperm.xlu0 %3968, %v3472
        %v3970 = vpop.permute.xlu0 %3969
        %3972 = vset.pattern.permute.xlu0 7
        %3973 = vperm.xlu0 %3972, %v3473
        %v3974 = vpop.permute.xlu0 %3973
        %3976 = vset.pattern.permute.xlu0 7
        %3977 = vperm.xlu0 %3976, %v3474
        %v3978 = vpop.permute.xlu0 %3977
        %v3980 = vmul.f32 %v3950, %v3940
        %v3981 = vmul.f32 %v3954, %v3941
        %v3982 = vmul.f32 %v3958, %v3942
        %v3983 = vmul.f32 %v3962, %v3943
        %v3984 = vmul.f32 %v3966, %v3944
        %v3985 = vmul.f32 %v3970, %v3945
        %v3986 = vmul.f32 %v3974, %v3946
        %v3987 = vmul.f32 %v3978, %v3947
        %v3988 = vadd.f32 %v3931, %v3980
        %v3989 = vadd.f32 %v3932, %v3981
        %v3990 = vadd.f32 %v3933, %v3982
        %v3991 = vadd.f32 %v3934, %v3983
        %v3992 = vadd.f32 %v3935, %v3984
        %v3993 = vadd.f32 %v3936, %v3985
        %v3994 = vadd.f32 %v3937, %v3986
        %v3995 = vadd.f32 %v3938, %v3987
        %v3996 = vld [vmem:[%s11] sm:$0x1]
        %3997 = vmatprep.subr.mxu0 0.0
        %3998 = vmatpush1.msra.mxu0 0.0
        %3999 = vmatprep.subr.mxu0 0.0
        %4000 = vmatpush1.msra.mxu0 0.0
        %4001 = vmatprep.subr.mxu0 0.0
        %4002 = vmatpush1.msra.mxu0 0.0
        %4003 = vmatprep.subr.mxu0 0.0
        %4004 = vmatpush1.msra.mxu0 0.0
        %4005 = vmatprep.subr.mxu0 0.0
        %4006 = vmatpush1.msra.mxu0 0.0
        %4007 = vmatprep.subr.mxu0 0.0
        %4008 = vmatpush1.msra.mxu0 0.0
        %4009 = vmatprep.subr.mxu0 0.0
        %4010 = vmatpush1.msra.mxu0 0.0
        %4011 = vmatprep.subr.mxu0 0.0
        %4012 = vmatpush1.msra.mxu0 0.0
        %4013 = vmatprep.subr.mxu0 0.0
        %4014 = vmatpush1.msra.mxu0 %v3995
        %4015 = vmatprep.subr.mxu0 0.0
        %4016 = vmatpush1.msra.mxu0 %v3994
        %4017 = vmatprep.subr.mxu0 0.0
        %4018 = vmatpush1.msra.mxu0 %v3993
        %4019 = vmatprep.subr.mxu0 0.0
        %4020 = vmatpush1.msra.mxu0 %v3992
        %4021 = vmatprep.subr.mxu0 0.0
        %4022 = vmatpush1.msra.mxu0 %v3991
        %4023 = vmatprep.subr.mxu0 0.0
        %4024 = vmatpush1.msra.mxu0 %v3990
        %4025 = vmatprep.subr.mxu0 0.0
        %4026 = vmatpush1.msra.mxu0 %v3989
        %4027 = vmatprep.subr.mxu0 0.0
        %4028 = vmatpush1.msra.mxu0 %v3988
        %4029 = vmatprep.subr.mxu0 0.0
        %4030 = vmatpush2.msra.mxu0 0.0
        %4031 = vmatprep.subr.mxu0 0.0
        %4032 = vmatpush2.msra.mxu0 0.0
        %4033 = vmatprep.subr.mxu0 0.0
        %4034 = vmatpush2.msra.mxu0 0.0
        %4035 = vmatprep.subr.mxu0 0.0
        %4036 = vmatpush2.msra.mxu0 0.0
        %4037 = vmatprep.subr.mxu0 0.0
        %4038 = vmatpush2.msra.mxu0 0.0
        %4039 = vmatprep.subr.mxu0 0.0
        %4040 = vmatpush2.msra.mxu0 0.0
        %4041 = vmatprep.subr.mxu0 0.0
        %4042 = vmatpush2.msra.mxu0 0.0
        %4043 = vmatprep.subr.mxu0 0.0
        %4044 = vmatpush2.msra.mxu0 0.0
        %4045 = vmatprep.subr.mxu0 0.0
        %4046 = vmatpush2.msra.mxu0 0.0
        %4047 = vmatprep.subr.mxu0 0.0
        %4048 = vmatpush2.msra.mxu0 0.0
        %4049 = vmatprep.subr.mxu0 0.0
        %4050 = vmatpush2.msra.mxu0 0.0
        %4051 = vmatprep.subr.mxu0 0.0
        %4052 = vmatpush2.msra.mxu0 0.0
        %4053 = vmatprep.subr.mxu0 0.0
        %4054 = vmatpush2.msra.mxu0 0.0
        %4055 = vmatprep.subr.mxu0 0.0
        %4056 = vmatpush2.msra.mxu0 0.0
        %4057 = vmatprep.subr.mxu0 0.0
        %4058 = vmatpush2.msra.mxu0 0.0
        %4059 = vmatprep.subr.mxu0 0.0
        %4060 = vmatpush2.msra.mxu0 0.0
        %4061 = vmatprep.mubr.f32.mxu0 0.0
        %4062 = vmatmul.mubr.f32.gmra.mxu0 %v3705
        %v4063 = vpop.f32.mrf.mxu0
        %v4064 = vadd.f32 %v3996, %v4063
        %v4065 = vpop.f32.mrf.mxu0
        %4066 = vdwg.mxu0
        %v4067 = vmax.f32 %v4064, 0.0
        %v4068 = vld [vmem:[%s12] sm:$0x1]
        %v4069 = vmul.f32 %v4067, %v4068
        %vm4070 = vcmask 253952
        %v4071 = vsel %vm4070, %v4069, 0.0
        %4072 = vadd.xlane.f32.xlu0 %v4071
        %v4073 = vpop.xlane.xlu0 %4072
        %v4074 = vld [vmem:[#allocation2] sm:$0x1]
        %v4075 = vadd.f32 %v4073, %v4074
        %v4076 = vtanh.pop %v4075
        %4078 = vset.pattern.permute.xlu0 0
        %4079 = vperm.xlu0 %4078, %v4076
        %v4080 = vpop.permute.xlu0 %4079
        %v4082 = vsel %vm3703, %v3774, %v4080
        %4083 = vst [vmem:[%s507] sm:$0x1] %v4082
        %p4084 = scmp.lt.s32.totalorder %s29, 1
        %s4085 = scalar_select %p4084, %s29, 1
        %s4086 = scalar_lea.vmem %s15, %s4085
        // Predicated region
        $region85: #{resnet_for_state_forward.1} parent=79 // pred_check
          %p4087 = pneg %p367
        $region86: #{resnet_for_state_forward.1} parent=79 // pred_check_branch
          %4089 = sbr.rel (%p4087) target = $region88
        $region87: #{resnet_for_state_forward.1} parent=79 // pred_region
          _
        $region88: #{resnet_for_state_forward.1} parent=79 // pred_fallthru
          _
      $region80: #{resnet_for_state_forward.1} parent=5 // pred_fallthru
        _
      %p4090 = scmp.le.s32.totalorder 2, %s24
      // Predicated region
      $region89: #{resnet_for_state_forward.1} parent=5 // pred_check
        %p4091 = pneg %p4090
      $region90: #{resnet_for_state_forward.1} parent=5 // pred_check_branch
        %4093 = sbr.rel (%p4091) target = $region92
      $region91: #{resnet_for_state_forward.1} parent=5 // pred_region
        %s4094 = ssub.s32 %s24, 2
        // Predicated region
        $region93: #{resnet_for_state_forward.1} parent=91 // pred_check
          %p4095 = pneg %p373
        $region94: #{resnet_for_state_forward.1} parent=91 // pred_check_branch
          %4097 = sbr.rel (%p4095) target = $region96
        $region95: #{resnet_for_state_forward.1} parent=91 // pred_region
          %p4098 = scmp.lt.s32.totalorder %s30, 1
          %s4099 = scalar_select %p4098, %s30, 1
          %s4100 = scalar_lea.vmem %s15, %s4099
        $region96: #{resnet_for_state_forward.1} parent=91 // pred_fallthru
          _
      $region92: #{resnet_for_state_forward.1} parent=5 // pred_fallthru
        _
    $region6: #{resnet_for_state_forward.1} parent=1 // loop_footer
      %s28 = sadd.s32 1, %s24
    $region7: #{resnet_for_state_forward.1} parent=1 // loop_footer_branch
      %23 = sbr.rel target = $region3
    $region8: #{resnet_for_state_forward.1} parent=1 // loop_exit
      _
    %4101 = vsyncpa [#allocation4], 1
    %s4102 = scalar_lea.sflag [#allocation4], 1
    %4103 = vsyncpa %s4102, 1

</llo_original>
